<compile_context>
chip_gen: v7x
topology: tpu7x:2x2x1
jax: 0.10.0
libtpu: 0.0.40
codegen_flags: <defaults>
</compile_context>

<pallas_src>
import functools

import jax
import jax.numpy as jnp
from jax.experimental import pallas as pl
from jax.experimental.pallas import tpu as pltpu


def _round_up(x, m):
    return ((x + m - 1) // m) * m


def _vmem_limit_bytes():
    """~50% of physical VMEM, shared by the tile heuristic and CompilerParams."""
    try:
        cap = int(pltpu.get_tpu_info().vmem_capacity_bytes)  # 128 MiB v5e/v6e, 64 MiB v7x
    except Exception:
        cap = 64 * 1024 * 1024  # conservative fallback (v7x physical VMEM)
    return max(16 * 1024 * 1024, cap // 2)


def _choose_tile_n(n_rows, dims, w_itemsize, *, budget_bytes, core_splits=1):
    """MXU/sublane-aligned batch tile that does not over-pad the batch.

    dims = [D_in, H1, ..., C_padded].  Weights are assumed single-buffered
    (pl.Buffered(1)); the x/out tiles are double-buffered by the pipeline.
    """
    if n_rows <= 64:
        # Tiny batches: only round up to the 8-row sublane quantum.
        return _round_up(max(n_rows, 1), 8)

    tile = min(512, _round_up(n_rows, 128))
    if core_splits > 1:
        # v7x (2 TensorCores/chip): make sure the batch grid has >= core_splits
        # blocks so every core gets work, keeping 128-row MXU M alignment.
        per_core = _round_up(pl.cdiv(n_rows, core_splits), 128)
        tile = max(128, min(tile, per_core))

    def est_bytes(t):
        x_b = 2 * t * dims[0] * 4                      # double-buffered input tile
        o_b = 2 * t * dims[-1] * 4                     # double-buffered output tile
        act = 2 * t * max(dims) * 4                    # live f32 activations
        w_b = sum(dims[l] * dims[l + 1] * w_itemsize + dims[l + 1] * 4
                  for l in range(len(dims) - 1))       # single-buffered params
        return x_b + o_b + act + w_b

    while tile > 128 and est_bytes(tile) > budget_bytes:
        tile = _round_up(tile // 2, 8)
    return tile


def _ptdeep_kernel(*refs, num_layers, n_classes):
    """refs = (x_ref, w0_ref, b0_ref, ..., w{L-1}_ref, b{L-1}_ref, out_ref)."""
    x_ref = refs[0]
    out_ref = refs[-1]

    h = x_ref[...].astype(jnp.float32)
    for l in range(num_layers):
        w_ref = refs[1 + 2 * l]
        b_ref = refs[2 + 2 * l]                    # (1, D_out) f32 -- broadcasts over rows
        # bf16 path: cast the activations (not the bias/elementwise math) so the
        # MXU sees bf16 x bf16 with f32 accumulation (v6e/v7x native).
        lhs = h if jnp.dtype(w_ref.dtype) == jnp.dtype(jnp.float32) else h.astype(w_ref.dtype)
        h = jnp.dot(lhs, w_ref[...], preferred_element_type=jnp.float32)
        h = h + b_ref[...]
        h = jnp.maximum(h, 0.0)                    # activation after EVERY layer (as in the module)

    # Mask padded class columns so they get exactly zero probability.
    c_pad = out_ref.shape[-1]
    if c_pad != n_classes:
        col = jax.lax.broadcasted_iota(jnp.int32, h.shape, 1)
        h = jnp.where(col < n_classes, h, -1e30)

    # torch.softmax(X, dim=1): numerically stable row softmax.
    m = jnp.max(h, axis=1, keepdims=True)
    e = jnp.exp(h - m)
    denom = jnp.sum(e, axis=1, keepdims=True)
    inv = pl.reciprocal(denom, approx=True)        # EUP slot (nearly free)
    inv = inv * (2.0 - denom * inv)                # one Newton step on the VALU -> ~f32-exact
    out_ref[...] = (e * inv).astype(out_ref.dtype)


def pt_deep_forward(x, weights, biases, *, tile_n=None, param_dtype=None, core_splits=1):
    """Fused MLP forward.

    x: [N, D]; weights[l]: [D_l, D_{l+1}]; biases[l]: [D_{l+1}].
    param_dtype: optional weight dtype for the MXU (e.g. jnp.bfloat16 on v6e/v7x).
    core_splits: set to 2 on v7x so the batch grid has >= 2 "parallel" blocks
      (one per TensorCore); leave 1 on v5e/v6e (single TensorCore).
      TODO(synk): consider pltpu.CORE_PARALLEL once validated on this config.
    """
    N, D = x.shape
    num_layers = len(weights)
    n_classes = weights[-1].shape[1]
    c_pad = _round_up(n_classes, 128)

    weights = list(weights)
    biases = list(biases)
    # Lane-dense final layer: pad classes to a 128 multiple with zero columns.
    if c_pad != n_classes:
        weights[-1] = jnp.pad(weights[-1], ((0, 0), (0, c_pad - n_classes)))
        biases[-1] = jnp.pad(biases[-1], (0, c_pad - n_classes))
    if param_dtype is not None and jnp.dtype(param_dtype) != jnp.dtype(jnp.float32):
        weights = [w.astype(param_dtype) for w in weights]
    # Biases stay f32 (elementwise math is f32 on all generations), as (1, C) rows.
    biases_2d = [b.astype(jnp.float32).reshape(1, -1) for b in biases]

    dims = [D] + [w.shape[1] for w in weights]
    w_itemsize = jnp.dtype(weights[0].dtype).itemsize
    vmem_limit = _vmem_limit_bytes()
    if tile_n is None:
        tile_n = _choose_tile_n(N, dims, w_itemsize,
                                budget_bytes=(vmem_limit * 3) // 4,
                                core_splits=core_splits)

    # No wrapper-side batch padding: ragged last block, OOB output rows dropped.
    n_blocks = pl.cdiv(N, tile_n)

    flat_params = []
    for w, b2 in zip(weights, biases_2d):
        flat_params.extend([w, b2])

    out_shape = jax.ShapeDtypeStruct((N, c_pad), jnp.float32)
    out_spec = pl.BlockSpec((tile_n, c_pad), lambda i: (i, 0))
    # "parallel" only when explicitly sharding the batch across v7x cores;
    # otherwise "arbitrary" (review: near-zero codegen difference, and the
    # sequential semantics are the most robust for incidental multi-block grids).
    dim_sem = ("parallel",) if core_splits > 1 else ("arbitrary",)
    cparams = pltpu.CompilerParams(dimension_semantics=dim_sem,
                                   vmem_limit_bytes=vmem_limit)

    def _run(weight_buffers):
        in_specs = [pl.BlockSpec((tile_n, D), lambda i: (i, 0))]
        pm = pl.Buffered(weight_buffers) if weight_buffers is not None else None
        for w, b2 in zip(weights, biases_2d):
            if pm is not None:
                # Constant index_map -> fetched once; single buffer halves VMEM use.
                in_specs.append(pl.BlockSpec(w.shape, lambda i: (0, 0), pipeline_mode=pm))
                in_specs.append(pl.BlockSpec(b2.shape, lambda i: (0, 0), pipeline_mode=pm))
            else:
                in_specs.append(pl.BlockSpec(w.shape, lambda i: (0, 0)))
                in_specs.append(pl.BlockSpec(b2.shape, lambda i: (0, 0)))
        fn = pl.pallas_call(
            functools.partial(_ptdeep_kernel, num_layers=num_layers, n_classes=n_classes),
            out_shape=out_shape,
            grid=(n_blocks,),
            in_specs=in_specs,
            out_specs=out_spec,
            compiler_params=cparams,
        )
        return fn(x, *flat_params)

    try:
        out = _run(1)            # single-buffered resident weights/biases
    except Exception:
        # TODO(synk): JAX version without BlockSpec(pipeline_mode=...) support --
        # fall back to the default double-buffered params (correct, more VMEM).
        out = _run(None)

    if c_pad != n_classes:
        out = out[:, :n_classes]
    return out


def pt_deep_reference(x, weights, biases, param_dtype=None):
    """Plain-JAX reference mirroring the PyTorch forward (and the bf16 MXU path)."""
    h = x
    for w, b in zip(weights, biases):
        if param_dtype is not None and jnp.dtype(param_dtype) != jnp.dtype(jnp.float32):
            h = jnp.dot(h.astype(param_dtype), w.astype(param_dtype),
                        preferred_element_type=jnp.float32) + b
        else:
            h = jnp.dot(h, w, preferred_element_type=jnp.float32) + b
        h = jnp.maximum(h, 0.0)
    return jax.nn.softmax(h, axis=1)


if __name__ == "__main__":
    # config = [D, H1, H2, C] as in PTDeep(config, activ_function=torch.relu)
    config = [16, 32, 32, 10]
    N = 300  # not a multiple of 8/128: exercises the ragged (un-padded) batch path

    key = jax.random.PRNGKey(0)
    key, kx = jax.random.split(key)
    x = jax.random.normal(kx, (N, config[0]), dtype=jnp.float32)

    weights, biases = [], []
    for i in range(len(config) - 1):
        key, kw, kb = jax.random.split(key, 3)
        # torch.randn-style weights; small random biases so the bias add is actually tested
        # (the module initializes biases to zeros, but the forward accepts any values).
        weights.append(jax.random.normal(kw, (config[i], config[i + 1]), dtype=jnp.float32))
        biases.append(0.1 * jax.random.normal(kb, (config[i + 1],), dtype=jnp.float32))

    # --- f32 path (default: auto tile = round_up(300,128)=384, single block) ---
    ref = pt_deep_reference(x, weights, biases)
    out = jax.block_until_ready(pt_deep_forward(x, weights, biases))
    assert out.shape == (N, config[-1])
    assert jnp.allclose(out, ref, atol=1e-3, rtol=1e-3), "mismatch vs reference (f32)"
    assert jnp.allclose(jnp.sum(out, axis=1), 1.0, atol=1e-3), "softmax rows must sum to 1"

    # --- bf16-weight MXU path (v6e/v7x-oriented), vs a bf16-matched reference ---
    ref_bf16 = pt_deep_reference(x, weights, biases, param_dtype=jnp.bfloat16)
    out_bf16 = jax.block_until_ready(
        pt_deep_forward(x, weights, biases, param_dtype=jnp.bfloat16))
    assert out_bf16.shape == (N, config[-1])
    assert jnp.allclose(out_bf16, ref_bf16, atol=2e-3, rtol=2e-3), "mismatch vs reference (bf16)"

    print("KERNEL_OK")
</pallas_src>

<mosaic_0001>
module attributes {stable_mosaic.version = 11 : i64} {
  func.func @_ptdeep_kernel(%arg0: i32, %arg1: memref<384x16xf32, #tpu.memory_space<vmem>>, %arg2: memref<16x32xf32, #tpu.memory_space<vmem>>, %arg3: memref<1x32xf32, #tpu.memory_space<vmem>>, %arg4: memref<32x32xf32, #tpu.memory_space<vmem>>, %arg5: memref<1x32xf32, #tpu.memory_space<vmem>>, %arg6: memref<32x128xf32, #tpu.memory_space<vmem>>, %arg7: memref<1x128xf32, #tpu.memory_space<vmem>>, %arg8: memref<384x128xf32, #tpu.memory_space<vmem>>) attributes {dimension_semantics = [#tpu.dimension_semantics<arbitrary>], iteration_bounds = array<i64: 1>, scalar_prefetch = 0 : i64, scratch_operands = 0 : i64, tpu.core_type = #tpu.core_type<tc>, window_params = [{transform_indices = @transform_0, window_bounds = array<i64: 384, 16>}, {pipeline_mode = #tpu.pipeline_mode<synchronous>, transform_indices = @transform_1, window_bounds = array<i64: 16, 32>}, {pipeline_mode = #tpu.pipeline_mode<synchronous>, transform_indices = @transform_2, window_bounds = array<i64: 1, 32>}, {pipeline_mode = #tpu.pipeline_mode<synchronous>, transform_indices = @transform_3, window_bounds = array<i64: 32, 32>}, {pipeline_mode = #tpu.pipeline_mode<synchronous>, transform_indices = @transform_4, window_bounds = array<i64: 1, 32>}, {pipeline_mode = #tpu.pipeline_mode<synchronous>, transform_indices = @transform_5, window_bounds = array<i64: 32, 128>}, {pipeline_mode = #tpu.pipeline_mode<synchronous>, transform_indices = @transform_6, window_bounds = array<i64: 1, 128>}, {transform_indices = @transform_7, window_bounds = array<i64: 384, 128>}]} {
    %c0 = arith.constant 0 : index
    %c0_0 = arith.constant 0 : index
    %0 = vector.load %arg1[%c0, %c0_0] : memref<384x16xf32, #tpu.memory_space<vmem>>, vector<384x16xf32>
    %c0_1 = arith.constant 0 : index
    %c0_2 = arith.constant 0 : index
    %1 = vector.load %arg2[%c0_1, %c0_2] : memref<16x32xf32, #tpu.memory_space<vmem>>, vector<16x32xf32>
    %cst = arith.constant dense<0.000000e+00> : vector<384x32xf32>
    %2 = tpu.matmul %0, %1, %cst {dimension_numbers = #tpu.dot_dimension_numbers<[1], [0], [0], [1], [0, 0, 1, 1], [], []>} : vector<384x16xf32>, vector<16x32xf32>, vector<384x32xf32> -> vector<384x32xf32>
    %c0_3 = arith.constant 0 : index
    %c0_4 = arith.constant 0 : index
    %3 = vector.load %arg3[%c0_3, %c0_4] : memref<1x32xf32, #tpu.memory_space<vmem>>, vector<1x32xf32>
    %4 = vector.broadcast %3 : vector<1x32xf32> to vector<384x32xf32>
    %5 = arith.addf %2, %4 : vector<384x32xf32>
    %cst_5 = arith.constant 0.000000e+00 : f32
    %6 = vector.broadcast %cst_5 : f32 to vector<384x32xf32>
    %7 = arith.maximumf %5, %6 : vector<384x32xf32>
    %c0_6 = arith.constant 0 : index
    %c0_7 = arith.constant 0 : index
    %8 = vector.load %arg4[%c0_6, %c0_7] : memref<32x32xf32, #tpu.memory_space<vmem>>, vector<32x32xf32>
    %cst_8 = arith.constant dense<0.000000e+00> : vector<384x32xf32>
    %9 = tpu.matmul %7, %8, %cst_8 {dimension_numbers = #tpu.dot_dimension_numbers<[1], [0], [0], [1], [0, 0, 1, 1], [], []>} : vector<384x32xf32>, vector<32x32xf32>, vector<384x32xf32> -> vector<384x32xf32>
    %c0_9 = arith.constant 0 : index
    %c0_10 = arith.constant 0 : index
    %10 = vector.load %arg5[%c0_9, %c0_10] : memref<1x32xf32, #tpu.memory_space<vmem>>, vector<1x32xf32>
    %11 = vector.broadcast %10 : vector<1x32xf32> to vector<384x32xf32>
    %12 = arith.addf %9, %11 : vector<384x32xf32>
    %cst_11 = arith.constant 0.000000e+00 : f32
    %13 = vector.broadcast %cst_11 : f32 to vector<384x32xf32>
    %14 = arith.maximumf %12, %13 : vector<384x32xf32>
    %c0_12 = arith.constant 0 : index
    %c0_13 = arith.constant 0 : index
    %15 = vector.load %arg6[%c0_12, %c0_13] : memref<32x128xf32, #tpu.memory_space<vmem>>, vector<32x128xf32>
    %cst_14 = arith.constant dense<0.000000e+00> : vector<384x128xf32>
    %16 = tpu.matmul %14, %15, %cst_14 {dimension_numbers = #tpu.dot_dimension_numbers<[1], [0], [0], [1], [0, 0, 1, 1], [], []>} : vector<384x32xf32>, vector<32x128xf32>, vector<384x128xf32> -> vector<384x128xf32>
    %c0_15 = arith.constant 0 : index
    %c0_16 = arith.constant 0 : index
    %17 = vector.load %arg7[%c0_15, %c0_16] : memref<1x128xf32, #tpu.memory_space<vmem>>, vector<1x128xf32>
    %18 = vector.broadcast %17 : vector<1x128xf32> to vector<384x128xf32>
    %19 = arith.addf %16, %18 : vector<384x128xf32>
    %cst_17 = arith.constant 0.000000e+00 : f32
    %20 = vector.broadcast %cst_17 : f32 to vector<384x128xf32>
    %21 = arith.maximumf %19, %20 : vector<384x128xf32>
    %22 = tpu.iota {dimensions = array<i32: 1>} : vector<384x128xi32>
    %c10_i32 = arith.constant 10 : i32
    %23 = vector.broadcast %c10_i32 : i32 to vector<384x128xi32>
    %24 = arith.cmpi slt, %22, %23 : vector<384x128xi32>
    %cst_18 = arith.constant -1.000000e+30 : f32
    %25 = vector.broadcast %cst_18 : f32 to vector<384x128xf32>
    %26 = arith.select %24, %21, %25 : vector<384x128xi1>, vector<384x128xf32>
    %cst_19 = arith.constant dense<0xFF800000> : vector<384xf32>
    %27 = vector.multi_reduction <maximumf>, %26, %cst_19 [1] : vector<384x128xf32> to vector<384xf32>
    %28 = vector.shape_cast %27 : vector<384xf32> to vector<384x1xf32>
    %29 = vector.broadcast %28 : vector<384x1xf32> to vector<384x128xf32>
    %30 = arith.subf %26, %29 : vector<384x128xf32>
    %31 = math.exp %30 : vector<384x128xf32>
    %cst_20 = arith.constant dense<0.000000e+00> : vector<384xf32>
    %32 = vector.multi_reduction <add>, %31, %cst_20 [1] : vector<384x128xf32> to vector<384xf32>
    %33 = vector.shape_cast %32 : vector<384xf32> to vector<384x1xf32>
    %34 = tpu.reciprocal %33 {approx = true} : vector<384x1xf32> -> vector<384x1xf32>
    %35 = arith.mulf %33, %34 : vector<384x1xf32>
    %cst_21 = arith.constant 2.000000e+00 : f32
    %36 = vector.broadcast %cst_21 : f32 to vector<384x1xf32>
    %37 = arith.subf %36, %35 : vector<384x1xf32>
    %38 = arith.mulf %34, %37 : vector<384x1xf32>
    %39 = vector.broadcast %38 : vector<384x1xf32> to vector<384x128xf32>
    %40 = arith.mulf %31, %39 : vector<384x128xf32>
    %c0_22 = arith.constant 0 : index
    %c0_23 = arith.constant 0 : index
    %41 = vector.load %arg8[%c0_22, %c0_23] : memref<384x128xf32, #tpu.memory_space<vmem>>, vector<384x128xf32>
    tpu.vector_store %arg8[%c0_22, %c0_23], %40 {strides = array<i32>} : memref<384x128xf32, #tpu.memory_space<vmem>>, vector<384x128xf32>,
    return
  }
  func.func @transform_0(%arg0: i32) -> (i32, i32) {
    %c0_i32 = arith.constant 0 : i32
    %c0_i32_0 = arith.constant 0 : i32
    return %arg0, %c0_i32 : i32, i32
  }
  func.func @transform_1(%arg0: i32) -> (i32, i32) {
    %c0_i32 = arith.constant 0 : i32
    %c0_i32_0 = arith.constant 0 : i32
    %c0_i32_1 = arith.constant 0 : i32
    return %c0_i32, %c0_i32_0 : i32, i32
  }
  func.func @transform_2(%arg0: i32) -> (i32, i32) {
    %c0_i32 = arith.constant 0 : i32
    %c0_i32_0 = arith.constant 0 : i32
    %c0_i32_1 = arith.constant 0 : i32
    return %c0_i32, %c0_i32_0 : i32, i32
  }
  func.func @transform_3(%arg0: i32) -> (i32, i32) {
    %c0_i32 = arith.constant 0 : i32
    %c0_i32_0 = arith.constant 0 : i32
    %c0_i32_1 = arith.constant 0 : i32
    return %c0_i32, %c0_i32_0 : i32, i32
  }
  func.func @transform_4(%arg0: i32) -> (i32, i32) {
    %c0_i32 = arith.constant 0 : i32
    %c0_i32_0 = arith.constant 0 : i32
    %c0_i32_1 = arith.constant 0 : i32
    return %c0_i32, %c0_i32_0 : i32, i32
  }
  func.func @transform_5(%arg0: i32) -> (i32, i32) {
    %c0_i32 = arith.constant 0 : i32
    %c0_i32_0 = arith.constant 0 : i32
    %c0_i32_1 = arith.constant 0 : i32
    return %c0_i32, %c0_i32_0 : i32, i32
  }
  func.func @transform_6(%arg0: i32) -> (i32, i32) {
    %c0_i32 = arith.constant 0 : i32
    %c0_i32_0 = arith.constant 0 : i32
    %c0_i32_1 = arith.constant 0 : i32
    return %c0_i32, %c0_i32_0 : i32, i32
  }
  func.func @transform_7(%arg0: i32) -> (i32, i32) {
    %c0_i32 = arith.constant 0 : i32
    %c0_i32_0 = arith.constant 0 : i32
    return %arg0, %c0_i32 : i32, i32
  }
}

module attributes {stable_mosaic.version = 11 : i64} {
  func.func @_ptdeep_kernel(%arg0: i32, %arg1: memref<384x16xf32, #tpu.memory_space<vmem>>, %arg2: memref<16x32xf32, #tpu.memory_space<vmem>>, %arg3: memref<1x32xf32, #tpu.memory_space<vmem>>, %arg4: memref<32x32xf32, #tpu.memory_space<vmem>>, %arg5: memref<1x32xf32, #tpu.memory_space<vmem>>, %arg6: memref<32x128xf32, #tpu.memory_space<vmem>>, %arg7: memref<1x128xf32, #tpu.memory_space<vmem>>, %arg8: memref<384x128xf32, #tpu.memory_space<vmem>>) attributes {dimension_semantics = [#tpu.dimension_semantics<arbitrary>], iteration_bounds = array<i64: 1>, scalar_prefetch = 0 : i64, scratch_operands = 0 : i64, tpu.core_type = #tpu.core_type<tc>, window_params = [{transform_indices = @transform_0, window_bounds = array<i64: 384, 16>}, {pipeline_mode = #tpu.pipeline_mode<synchronous>, transform_indices = @transform_1, window_bounds = array<i64: 16, 32>}, {pipeline_mode = #tpu.pipeline_mode<synchronous>, transform_indices = @transform_2, window_bounds = array<i64: 1, 32>}, {pipeline_mode = #tpu.pipeline_mode<synchronous>, transform_indices = @transform_3, window_bounds = array<i64: 32, 32>}, {pipeline_mode = #tpu.pipeline_mode<synchronous>, transform_indices = @transform_4, window_bounds = array<i64: 1, 32>}, {pipeline_mode = #tpu.pipeline_mode<synchronous>, transform_indices = @transform_5, window_bounds = array<i64: 32, 128>}, {pipeline_mode = #tpu.pipeline_mode<synchronous>, transform_indices = @transform_6, window_bounds = array<i64: 1, 128>}, {transform_indices = @transform_7, window_bounds = array<i64: 384, 128>}]} {
    %c0 = arith.constant 0 : index
    %c0_0 = arith.constant 0 : index
    %0 = vector.load %arg1[%c0, %c0_0] : memref<384x16xf32, #tpu.memory_space<vmem>>, vector<384x16xf32>
    %c0_1 = arith.constant 0 : index
    %c0_2 = arith.constant 0 : index
    %1 = vector.load %arg2[%c0_1, %c0_2] : memref<16x32xf32, #tpu.memory_space<vmem>>, vector<16x32xf32>
    %cst = arith.constant dense<0.000000e+00> : vector<384x32xf32>
    %2 = tpu.matmul %0, %1, %cst {dimension_numbers = #tpu.dot_dimension_numbers<[1], [0], [0], [1], [0, 0, 1, 1], [], []>} : vector<384x16xf32>, vector<16x32xf32>, vector<384x32xf32> -> vector<384x32xf32>
    %c0_3 = arith.constant 0 : index
    %c0_4 = arith.constant 0 : index
    %3 = vector.load %arg3[%c0_3, %c0_4] : memref<1x32xf32, #tpu.memory_space<vmem>>, vector<1x32xf32>
    %4 = vector.broadcast %3 : vector<1x32xf32> to vector<384x32xf32>
    %5 = arith.addf %2, %4 : vector<384x32xf32>
    %cst_5 = arith.constant 0.000000e+00 : f32
    %6 = vector.broadcast %cst_5 : f32 to vector<384x32xf32>
    %7 = arith.maximumf %5, %6 : vector<384x32xf32>
    %c0_6 = arith.constant 0 : index
    %c0_7 = arith.constant 0 : index
    %8 = vector.load %arg4[%c0_6, %c0_7] : memref<32x32xf32, #tpu.memory_space<vmem>>, vector<32x32xf32>
    %cst_8 = arith.constant dense<0.000000e+00> : vector<384x32xf32>
    %9 = tpu.matmul %7, %8, %cst_8 {dimension_numbers = #tpu.dot_dimension_numbers<[1], [0], [0], [1], [0, 0, 1, 1], [], []>} : vector<384x32xf32>, vector<32x32xf32>, vector<384x32xf32> -> vector<384x32xf32>
    %c0_9 = arith.constant 0 : index
    %c0_10 = arith.constant 0 : index
    %10 = vector.load %arg5[%c0_9, %c0_10] : memref<1x32xf32, #tpu.memory_space<vmem>>, vector<1x32xf32>
    %11 = vector.broadcast %10 : vector<1x32xf32> to vector<384x32xf32>
    %12 = arith.addf %9, %11 : vector<384x32xf32>
    %cst_11 = arith.constant 0.000000e+00 : f32
    %13 = vector.broadcast %cst_11 : f32 to vector<384x32xf32>
    %14 = arith.maximumf %12, %13 : vector<384x32xf32>
    %c0_12 = arith.constant 0 : index
    %c0_13 = arith.constant 0 : index
    %15 = vector.load %arg6[%c0_12, %c0_13] : memref<32x128xf32, #tpu.memory_space<vmem>>, vector<32x128xf32>
    %cst_14 = arith.constant dense<0.000000e+00> : vector<384x128xf32>
    %16 = tpu.matmul %14, %15, %cst_14 {dimension_numbers = #tpu.dot_dimension_numbers<[1], [0], [0], [1], [0, 0, 1, 1], [], []>} : vector<384x32xf32>, vector<32x128xf32>, vector<384x128xf32> -> vector<384x128xf32>
    %c0_15 = arith.constant 0 : index
    %c0_16 = arith.constant 0 : index
    %17 = vector.load %arg7[%c0_15, %c0_16] : memref<1x128xf32, #tpu.memory_space<vmem>>, vector<1x128xf32>
    %18 = vector.broadcast %17 : vector<1x128xf32> to vector<384x128xf32>
    %19 = arith.addf %16, %18 : vector<384x128xf32>
    %cst_17 = arith.constant 0.000000e+00 : f32
    %20 = vector.broadcast %cst_17 : f32 to vector<384x128xf32>
    %21 = arith.maximumf %19, %20 : vector<384x128xf32>
    %22 = tpu.iota {dimensions = array<i32: 1>} : vector<384x128xi32>
    %c10_i32 = arith.constant 10 : i32
    %23 = vector.broadcast %c10_i32 : i32 to vector<384x128xi32>
    %24 = arith.cmpi slt, %22, %23 : vector<384x128xi32>
    %cst_18 = arith.constant -1.000000e+30 : f32
    %25 = vector.broadcast %cst_18 : f32 to vector<384x128xf32>
    %26 = arith.select %24, %21, %25 : vector<384x128xi1>, vector<384x128xf32>
    %cst_19 = arith.constant dense<0xFF800000> : vector<384xf32>
    %27 = vector.multi_reduction <maximumf>, %26, %cst_19 [1] : vector<384x128xf32> to vector<384xf32>
    %28 = vector.shape_cast %27 : vector<384xf32> to vector<384x1xf32>
    %29 = vector.broadcast %28 : vector<384x1xf32> to vector<384x128xf32>
    %30 = arith.subf %26, %29 : vector<384x128xf32>
    %31 = math.exp %30 : vector<384x128xf32>
    %cst_20 = arith.constant dense<0.000000e+00> : vector<384xf32>
    %32 = vector.multi_reduction <add>, %31, %cst_20 [1] : vector<384x128xf32> to vector<384xf32>
    %33 = vector.shape_cast %32 : vector<384xf32> to vector<384x1xf32>
    %34 = tpu.reciprocal %33 {approx = true} : vector<384x1xf32> -> vector<384x1xf32>
    %35 = arith.mulf %33, %34 : vector<384x1xf32>
    %cst_21 = arith.constant 2.000000e+00 : f32
    %36 = vector.broadcast %cst_21 : f32 to vector<384x1xf32>
    %37 = arith.subf %36, %35 : vector<384x1xf32>
    %38 = arith.mulf %34, %37 : vector<384x1xf32>
    %39 = vector.broadcast %38 : vector<384x1xf32> to vector<384x128xf32>
    %40 = arith.mulf %31, %39 : vector<384x128xf32>
    %c0_22 = arith.constant 0 : index
    %c0_23 = arith.constant 0 : index
    %41 = vector.load %arg8[%c0_22, %c0_23] : memref<384x128xf32, #tpu.memory_space<vmem>>, vector<384x128xf32>
    tpu.vector_store %arg8[%c0_22, %c0_23], %40 {strides = array<i32>} : memref<384x128xf32, #tpu.memory_space<vmem>>, vector<384x128xf32>,
    return
  }
  func.func @transform_0(%arg0: i32) -> (i32, i32) {
    %c0_i32 = arith.constant 0 : i32
    %c0_i32_0 = arith.constant 0 : i32
    return %arg0, %c0_i32 : i32, i32
  }
  func.func @transform_1(%arg0: i32) -> (i32, i32) {
    %c0_i32 = arith.constant 0 : i32
    %c0_i32_0 = arith.constant 0 : i32
    %c0_i32_1 = arith.constant 0 : i32
    return %c0_i32, %c0_i32_0 : i32, i32
  }
  func.func @transform_2(%arg0: i32) -> (i32, i32) {
    %c0_i32 = arith.constant 0 : i32
    %c0_i32_0 = arith.constant 0 : i32
    %c0_i32_1 = arith.constant 0 : i32
    return %c0_i32, %c0_i32_0 : i32, i32
  }
  func.func @transform_3(%arg0: i32) -> (i32, i32) {
    %c0_i32 = arith.constant 0 : i32
    %c0_i32_0 = arith.constant 0 : i32
    %c0_i32_1 = arith.constant 0 : i32
    return %c0_i32, %c0_i32_0 : i32, i32
  }
  func.func @transform_4(%arg0: i32) -> (i32, i32) {
    %c0_i32 = arith.constant 0 : i32
    %c0_i32_0 = arith.constant 0 : i32
    %c0_i32_1 = arith.constant 0 : i32
    return %c0_i32, %c0_i32_0 : i32, i32
  }
  func.func @transform_5(%arg0: i32) -> (i32, i32) {
    %c0_i32 = arith.constant 0 : i32
    %c0_i32_0 = arith.constant 0 : i32
    %c0_i32_1 = arith.constant 0 : i32
    return %c0_i32, %c0_i32_0 : i32, i32
  }
  func.func @transform_6(%arg0: i32) -> (i32, i32) {
    %c0_i32 = arith.constant 0 : i32
    %c0_i32_0 = arith.constant 0 : i32
    %c0_i32_1 = arith.constant 0 : i32
    return %c0_i32, %c0_i32_0 : i32, i32
  }
  func.func @transform_7(%arg0: i32) -> (i32, i32) {
    %c0_i32 = arith.constant 0 : i32
    %c0_i32_0 = arith.constant 0 : i32
    return %arg0, %c0_i32 : i32, i32
  }
}

</mosaic_0001>

<llo_original>
// kernel: tpu_custom_call.1
$region0: #{tpu_custom_call.1}
  #allocation0 [shape = 'u32[]', space=smem, size = 0x4, offset = 0x4, fixed_abs, tag = 'smem constant byte address 0x4 - core index']
  #allocation1 [shape = 'u32[144,128]{1,0:T(1,128)}', space=vmem, size = 0x12000, scoped, tag = 'internal scratch']
  %s0 = inlined_call_operand.vmem [shape: f32[300,16], index: 0, kind: input, shape index: {}]
  %s1 = inlined_call_operand.vmem [shape: f32[16,32], index: 1, kind: input, shape index: {}]
  %s2 = inlined_call_operand.vmem [shape: f32[1,32], index: 2, kind: input, shape index: {}]
  %s3 = inlined_call_operand.vmem [shape: f32[32,32], index: 3, kind: input, shape index: {}]
  %s4 = inlined_call_operand.vmem [shape: f32[1,32], index: 4, kind: input, shape index: {}]
  %s5 = inlined_call_operand.vmem [shape: f32[32,128], index: 5, kind: input, shape index: {}]
  %s6 = inlined_call_operand.vmem [shape: f32[1,128], index: 6, kind: input, shape index: {}]
  %s7 = inlined_call_operand.hbm [shape: f32[300,128], index: 7, kind: output, shape index: {}]
  %s8 = sld [smem:[#allocation0]]
  $region38: #{tpu_custom_call.1} parent=0
    _
  %s10 = ssub.s32 1, %s8
  %s11 = scalar_select 0, %s10, %s8
  $region1: #{tpu_custom_call.1} parent=0
    #allocation2 [shape = 'u8[196608]{0}', space=vmem, size = 0x30000, scoped, tag = 'output window, operand 0, single buffered']
    #allocation3 [shape = 's32[1]{0}', space=sflag, size = 0x4, scoped, tag = 'scoped memory for tpu_custom_call.1']
    %12 = vsyncpa [#allocation3], 0
    // Predicated region
    $region2: #{tpu_custom_call.1} parent=1 // pred_check
      _
    $region3: #{tpu_custom_call.1} parent=1 // pred_check_branch
      %14 = sbr.rel (0) target = $region5
    $region4: #{tpu_custom_call.1} parent=1 // pred_region
      _
    $region5: #{tpu_custom_call.1} parent=1 // pred_fallthru
      _
    // Predicated region
    $region6: #{tpu_custom_call.1} parent=1 // pred_check
      _
    $region7: #{tpu_custom_call.1} parent=1 // pred_check_branch
      %16 = sbr.rel (0) target = $region9
    $region8: #{tpu_custom_call.1} parent=1 // pred_region
      _
    $region9: #{tpu_custom_call.1} parent=1 // pred_fallthru
      _
    // Predicated region
    $region10: #{tpu_custom_call.1} parent=1 // pred_check
      _
    $region11: #{tpu_custom_call.1} parent=1 // pred_check_branch
      %18 = sbr.rel (0) target = $region13
    $region12: #{tpu_custom_call.1} parent=1 // pred_region
      _
    $region13: #{tpu_custom_call.1} parent=1 // pred_fallthru
      _
    // Predicated region
    $region14: #{tpu_custom_call.1} parent=1 // pred_check
      _
    $region15: #{tpu_custom_call.1} parent=1 // pred_check_branch
      %20 = sbr.rel (0) target = $region17
    $region16: #{tpu_custom_call.1} parent=1 // pred_region
      _
    $region17: #{tpu_custom_call.1} parent=1 // pred_fallthru
      _
    // Predicated region
    $region18: #{tpu_custom_call.1} parent=1 // pred_check
      _
    $region19: #{tpu_custom_call.1} parent=1 // pred_check_branch
      %22 = sbr.rel (0) target = $region21
    $region20: #{tpu_custom_call.1} parent=1 // pred_region
      _
    $region21: #{tpu_custom_call.1} parent=1 // pred_fallthru
      _
    // Predicated region
    $region22: #{tpu_custom_call.1} parent=1 // pred_check
      _
    $region23: #{tpu_custom_call.1} parent=1 // pred_check_branch
      %24 = sbr.rel (0) target = $region25
    $region24: #{tpu_custom_call.1} parent=1 // pred_region
      _
    $region25: #{tpu_custom_call.1} parent=1 // pred_fallthru
      _
    // Predicated region
    $region26: #{tpu_custom_call.1} parent=1 // pred_check
      _
    $region27: #{tpu_custom_call.1} parent=1 // pred_check_branch
      %26 = sbr.rel (0) target = $region29
    $region28: #{tpu_custom_call.1} parent=1 // pred_region
      _
    $region29: #{tpu_custom_call.1} parent=1 // pred_fallthru
      _
    %v27 = vld [vmem:[%s0] sm:$0xff]
    %v28 = vld [vmem:[%s0 + $0x8] sm:$0xff]
    %v29 = vld [vmem:[%s0 + $0x10] sm:$0xff]
    %v30 = vld [vmem:[%s0 + $0x18] sm:$0xff]
    %v31 = vld [vmem:[%s0 + $0x20] sm:$0xff]
    %v32 = vld [vmem:[%s0 + $0x28] sm:$0xff]
    %v33 = vld [vmem:[%s0 + $0x30] sm:$0xff]
    %v34 = vld [vmem:[%s0 + $0x38] sm:$0xff]
    %v35 = vld [vmem:[%s0 + $0x40] sm:$0xff]
    %v36 = vld [vmem:[%s0 + $0x48] sm:$0xff]
    %v37 = vld [vmem:[%s0 + $0x50] sm:$0xff]
    %v38 = vld [vmem:[%s0 + $0x58] sm:$0xff]
    %v39 = vld [vmem:[%s0 + $0x60] sm:$0xff]
    %v40 = vld [vmem:[%s0 + $0x68] sm:$0xff]
    %v41 = vld [vmem:[%s0 + $0x70] sm:$0xff]
    %v42 = vld [vmem:[%s0 + $0x78] sm:$0xff]
    %v43 = vld [vmem:[%s0 + $0x80] sm:$0xff]
    %v44 = vld [vmem:[%s0 + $0x88] sm:$0xff]
    %v45 = vld [vmem:[%s0 + $0x90] sm:$0xff]
    %v46 = vld [vmem:[%s0 + $0x98] sm:$0xff]
    %v47 = vld [vmem:[%s0 + $0xa0] sm:$0xff]
    %v48 = vld [vmem:[%s0 + $0xa8] sm:$0xff]
    %v49 = vld [vmem:[%s0 + $0xb0] sm:$0xff]
    %v50 = vld [vmem:[%s0 + $0xb8] sm:$0xff]
    %v51 = vld [vmem:[%s0 + $0xc0] sm:$0xff]
    %v52 = vld [vmem:[%s0 + $0xc8] sm:$0xff]
    %v53 = vld [vmem:[%s0 + $0xd0] sm:$0xff]
    %v54 = vld [vmem:[%s0 + $0xd8] sm:$0xff]
    %v55 = vld [vmem:[%s0 + $0xe0] sm:$0xff]
    %v56 = vld [vmem:[%s0 + $0xe8] sm:$0xff]
    %v57 = vld [vmem:[%s0 + $0xf0] sm:$0xff]
    %v58 = vld [vmem:[%s0 + $0xf8] sm:$0xff]
    %v59 = vld [vmem:[%s0 + $0x100] sm:$0xff]
    %v60 = vld [vmem:[%s0 + $0x108] sm:$0xff]
    %v61 = vld [vmem:[%s0 + $0x110] sm:$0xff]
    %v62 = vld [vmem:[%s0 + $0x118] sm:$0xff]
    %v63 = vld [vmem:[%s0 + $0x120] sm:$0xff]
    %v64 = vld [vmem:[%s0 + $0x128] sm:$0xff]
    %v65 = vld [vmem:[%s0 + $0x130] sm:$0xff]
    %v66 = vld [vmem:[%s0 + $0x138] sm:$0xff]
    %v67 = vld [vmem:[%s0 + $0x140] sm:$0xff]
    %v68 = vld [vmem:[%s0 + $0x148] sm:$0xff]
    %v69 = vld [vmem:[%s0 + $0x150] sm:$0xff]
    %v70 = vld [vmem:[%s0 + $0x158] sm:$0xff]
    %v71 = vld [vmem:[%s0 + $0x160] sm:$0xff]
    %v72 = vld [vmem:[%s0 + $0x168] sm:$0xff]
    %v73 = vld [vmem:[%s0 + $0x170] sm:$0xff]
    %v74 = vld [vmem:[%s0 + $0x178] sm:$0xff]
    %v75 = vld [vmem:[%s1] sm:$0xff]
    %v76 = vld [vmem:[%s1 + $0x8] sm:$0xff]
    %v77 = vld [vmem:[%s2] sm:$0x1]
    %v79 = vlaneseq
    %v80 = vshrl.u32 %v79, 7
    %v81 = vsub.s32 0, %v80
    %v82 = vrot.slane %v77, %v81
    %vm84 = vcmask 130048
    %v86 = vsel %vm84, %v27, 0
    %v89 = vsel %vm84, %v28, 0
    %v92 = vsel %vm84, %v29, 0
    %v95 = vsel %vm84, %v30, 0
    %v98 = vsel %vm84, %v31, 0
    %v101 = vsel %vm84, %v32, 0
    %v104 = vsel %vm84, %v33, 0
    %v107 = vsel %vm84, %v34, 0
    %v110 = vsel %vm84, %v35, 0
    %v113 = vsel %vm84, %v36, 0
    %v116 = vsel %vm84, %v37, 0
    %v119 = vsel %vm84, %v38, 0
    %v122 = vsel %vm84, %v39, 0
    %v125 = vsel %vm84, %v40, 0
    %v128 = vsel %vm84, %v41, 0
    %v131 = vsel %vm84, %v42, 0
    %v134 = vsel %vm84, %v43, 0
    %v137 = vsel %vm84, %v44, 0
    %v140 = vsel %vm84, %v45, 0
    %v143 = vsel %vm84, %v46, 0
    %v146 = vsel %vm84, %v47, 0
    %v149 = vsel %vm84, %v48, 0
    %v152 = vsel %vm84, %v49, 0
    %v155 = vsel %vm84, %v50, 0
    %v158 = vsel %vm84, %v51, 0
    %v161 = vsel %vm84, %v52, 0
    %v164 = vsel %vm84, %v53, 0
    %v167 = vsel %vm84, %v54, 0
    %v170 = vsel %vm84, %v55, 0
    %v173 = vsel %vm84, %v56, 0
    %v176 = vsel %vm84, %v57, 0
    %v179 = vsel %vm84, %v58, 0
    %v182 = vsel %vm84, %v59, 0
    %v185 = vsel %vm84, %v60, 0
    %v188 = vsel %vm84, %v61, 0
    %v191 = vsel %vm84, %v62, 0
    %v194 = vsel %vm84, %v63, 0
    %v197 = vsel %vm84, %v64, 0
    %v200 = vsel %vm84, %v65, 0
    %v203 = vsel %vm84, %v66, 0
    %v206 = vsel %vm84, %v67, 0
    %v209 = vsel %vm84, %v68, 0
    %v212 = vsel %vm84, %v69, 0
    %v215 = vsel %vm84, %v70, 0
    %v218 = vsel %vm84, %v71, 0
    %v221 = vsel %vm84, %v72, 0
    %v224 = vsel %vm84, %v73, 0
    %v227 = vsel %vm84, %v74, 0
    %229 = vmatprep.subr.mxu0 0.0
    %230 = vmatpush1.msra.mxu0 %v75
    %231 = vmatprep.subr.mxu0 0.0
    %232 = vmatpush1.msra.mxu0 %v76
    %233 = vmatprep.subr.mxu0 0.0
    %234 = vmatpush1.msra.mxu0 0.0
    %235 = vmatprep.subr.mxu0 0.0
    %236 = vmatpush1.msra.mxu0 0.0
    %237 = vmatprep.subr.mxu0 0.0
    %238 = vmatpush1.msra.mxu0 0.0
    %239 = vmatprep.subr.mxu0 0.0
    %240 = vmatpush1.msra.mxu0 0.0
    %241 = vmatprep.subr.mxu0 0.0
    %242 = vmatpush1.msra.mxu0 0.0
    %243 = vmatprep.subr.mxu0 0.0
    %244 = vmatpush1.msra.mxu0 0.0
    %245 = vmatprep.subr.mxu0 0.0
    %246 = vmatpush1.msra.mxu0 0.0
    %247 = vmatprep.subr.mxu0 0.0
    %248 = vmatpush1.msra.mxu0 0.0
    %249 = vmatprep.subr.mxu0 0.0
    %250 = vmatpush1.msra.mxu0 0.0
    %251 = vmatprep.subr.mxu0 0.0
    %252 = vmatpush1.msra.mxu0 0.0
    %253 = vmatprep.subr.mxu0 0.0
    %254 = vmatpush1.msra.mxu0 0.0
    %255 = vmatprep.subr.mxu0 0.0
    %256 = vmatpush1.msra.mxu0 0.0
    %257 = vmatprep.subr.mxu0 0.0
    %258 = vmatpush1.msra.mxu0 0.0
    %259 = vmatprep.subr.mxu0 0.0
    %260 = vmatpush1.msra.mxu0 0.0
    %261 = vmatprep.subr.mxu0 0.0
    %262 = vmatpush1.msra.mxu0 0.0
    %263 = vmatprep.subr.mxu0 0.0
    %264 = vmatpush1.msra.mxu0 0.0
    %265 = vmatprep.subr.mxu0 0.0
    %266 = vmatpush1.msra.mxu0 0.0
    %267 = vmatprep.subr.mxu0 0.0
    %268 = vmatpush1.msra.mxu0 0.0
    %269 = vmatprep.subr.mxu0 0.0
    %270 = vmatpush1.msra.mxu0 0.0
    %271 = vmatprep.subr.mxu0 0.0
    %272 = vmatpush1.msra.mxu0 0.0
    %273 = vmatprep.subr.mxu0 0.0
    %274 = vmatpush1.msra.mxu0 0.0
    %275 = vmatprep.subr.mxu0 0.0
    %276 = vmatpush1.msra.mxu0 0.0
    %277 = vmatprep.subr.mxu0 0.0
    %278 = vmatpush1.msra.mxu0 0.0
    %279 = vmatprep.subr.mxu0 0.0
    %280 = vmatpush1.msra.mxu0 0.0
    %281 = vmatprep.subr.mxu0 0.0
    %282 = vmatpush1.msra.mxu0 0.0
    %283 = vmatprep.subr.mxu0 0.0
    %284 = vmatpush1.msra.mxu0 0.0
    %285 = vmatprep.subr.mxu0 0.0
    %286 = vmatpush1.msra.mxu0 0.0
    %287 = vmatprep.subr.mxu0 0.0
    %288 = vmatpush1.msra.mxu0 0.0
    %289 = vmatprep.subr.mxu0 0.0
    %290 = vmatpush1.msra.mxu0 0.0
    %291 = vmatprep.subr.mxu0 0.0
    %292 = vmatpush1.msra.mxu0 0.0
    %293 = vmatprep.mubr.f32.mxu0 0.0
    %294 = vmatmul.mubr.f32.gmra.mrb[0].mxu0 %v86
    %v295 = vpop.f32.mrb[0].mxu0
    %v296 = vadd.f32 %v82, %v295
    %v297 = vpop.f32.mrb[0].mxu0
    %298 = vmatprep.mubr.f32.mxu0 0.0
    %299 = vmatmul.mubr.f32.gmra.mrb[0].mxu0 %v89
    %v300 = vpop.f32.mrb[0].mxu0
    %v301 = vadd.f32 %v82, %v300
    %v302 = vpop.f32.mrb[0].mxu0
    %303 = vmatprep.mubr.f32.mxu0 0.0
    %304 = vmatmul.mubr.f32.gmra.mrb[0].mxu0 %v92
    %v305 = vpop.f32.mrb[0].mxu0
    %v306 = vadd.f32 %v82, %v305
    %v307 = vpop.f32.mrb[0].mxu0
    %308 = vmatprep.mubr.f32.mxu0 0.0
    %309 = vmatmul.mubr.f32.gmra.mrb[0].mxu0 %v95
    %v310 = vpop.f32.mrb[0].mxu0
    %v311 = vadd.f32 %v82, %v310
    %v312 = vpop.f32.mrb[0].mxu0
    %313 = vmatprep.mubr.f32.mxu0 0.0
    %314 = vmatmul.mubr.f32.gmra.mrb[0].mxu0 %v98
    %v315 = vpop.f32.mrb[0].mxu0
    %v316 = vadd.f32 %v82, %v315
    %v317 = vpop.f32.mrb[0].mxu0
    %318 = vmatprep.mubr.f32.mxu0 0.0
    %319 = vmatmul.mubr.f32.gmra.mrb[0].mxu0 %v101
    %v320 = vpop.f32.mrb[0].mxu0
    %v321 = vadd.f32 %v82, %v320
    %v322 = vpop.f32.mrb[0].mxu0
    %323 = vmatprep.mubr.f32.mxu0 0.0
    %324 = vmatmul.mubr.f32.gmra.mrb[0].mxu0 %v104
    %v325 = vpop.f32.mrb[0].mxu0
    %v326 = vadd.f32 %v82, %v325
    %v327 = vpop.f32.mrb[0].mxu0
    %328 = vmatprep.mubr.f32.mxu0 0.0
    %329 = vmatmul.mubr.f32.gmra.mrb[0].mxu0 %v107
    %v330 = vpop.f32.mrb[0].mxu0
    %v331 = vadd.f32 %v82, %v330
    %v332 = vpop.f32.mrb[0].mxu0
    %333 = vmatprep.mubr.f32.mxu0 0.0
    %334 = vmatmul.mubr.f32.gmra.mrb[0].mxu0 %v110
    %v335 = vpop.f32.mrb[0].mxu0
    %v336 = vadd.f32 %v82, %v335
    %v337 = vpop.f32.mrb[0].mxu0
    %338 = vmatprep.mubr.f32.mxu0 0.0
    %339 = vmatmul.mubr.f32.gmra.mrb[0].mxu0 %v113
    %v340 = vpop.f32.mrb[0].mxu0
    %v341 = vadd.f32 %v82, %v340
    %v342 = vpop.f32.mrb[0].mxu0
    %343 = vmatprep.mubr.f32.mxu0 0.0
    %344 = vmatmul.mubr.f32.gmra.mrb[0].mxu0 %v116
    %v345 = vpop.f32.mrb[0].mxu0
    %v346 = vadd.f32 %v82, %v345
    %v347 = vpop.f32.mrb[0].mxu0
    %348 = vmatprep.mubr.f32.mxu0 0.0
    %349 = vmatmul.mubr.f32.gmra.mrb[0].mxu0 %v119
    %v350 = vpop.f32.mrb[0].mxu0
    %v351 = vadd.f32 %v82, %v350
    %v352 = vpop.f32.mrb[0].mxu0
    %353 = vmatprep.mubr.f32.mxu0 0.0
    %354 = vmatmul.mubr.f32.gmra.mrb[0].mxu0 %v122
    %v355 = vpop.f32.mrb[0].mxu0
    %v356 = vadd.f32 %v82, %v355
    %v357 = vpop.f32.mrb[0].mxu0
    %358 = vmatprep.mubr.f32.mxu0 0.0
    %359 = vmatmul.mubr.f32.gmra.mrb[0].mxu0 %v125
    %v360 = vpop.f32.mrb[0].mxu0
    %v361 = vadd.f32 %v82, %v360
    %v362 = vpop.f32.mrb[0].mxu0
    %363 = vmatprep.mubr.f32.mxu0 0.0
    %364 = vmatmul.mubr.f32.gmra.mrb[0].mxu0 %v128
    %v365 = vpop.f32.mrb[0].mxu0
    %v366 = vadd.f32 %v82, %v365
    %v367 = vpop.f32.mrb[0].mxu0
    %368 = vmatprep.mubr.f32.mxu0 0.0
    %369 = vmatmul.mubr.f32.gmra.mrb[0].mxu0 %v131
    %v370 = vpop.f32.mrb[0].mxu0
    %v371 = vadd.f32 %v82, %v370
    %v372 = vpop.f32.mrb[0].mxu0
    %373 = vmatprep.mubr.f32.mxu0 0.0
    %374 = vmatmul.mubr.f32.gmra.mrb[0].mxu0 %v134
    %v375 = vpop.f32.mrb[0].mxu0
    %v376 = vadd.f32 %v82, %v375
    %v377 = vpop.f32.mrb[0].mxu0
    %378 = vmatprep.mubr.f32.mxu0 0.0
    %379 = vmatmul.mubr.f32.gmra.mrb[0].mxu0 %v137
    %v380 = vpop.f32.mrb[0].mxu0
    %v381 = vadd.f32 %v82, %v380
    %v382 = vpop.f32.mrb[0].mxu0
    %383 = vmatprep.mubr.f32.mxu0 0.0
    %384 = vmatmul.mubr.f32.gmra.mrb[0].mxu0 %v140
    %v385 = vpop.f32.mrb[0].mxu0
    %v386 = vadd.f32 %v82, %v385
    %v387 = vpop.f32.mrb[0].mxu0
    %388 = vmatprep.mubr.f32.mxu0 0.0
    %389 = vmatmul.mubr.f32.gmra.mrb[0].mxu0 %v143
    %v390 = vpop.f32.mrb[0].mxu0
    %v391 = vadd.f32 %v82, %v390
    %v392 = vpop.f32.mrb[0].mxu0
    %393 = vmatprep.mubr.f32.mxu0 0.0
    %394 = vmatmul.mubr.f32.gmra.mrb[0].mxu0 %v146
    %v395 = vpop.f32.mrb[0].mxu0
    %v396 = vadd.f32 %v82, %v395
    %v397 = vpop.f32.mrb[0].mxu0
    %398 = vmatprep.mubr.f32.mxu0 0.0
    %399 = vmatmul.mubr.f32.gmra.mrb[0].mxu0 %v149
    %v400 = vpop.f32.mrb[0].mxu0
    %v401 = vadd.f32 %v82, %v400
    %v402 = vpop.f32.mrb[0].mxu0
    %403 = vmatprep.mubr.f32.mxu0 0.0
    %404 = vmatmul.mubr.f32.gmra.mrb[0].mxu0 %v152
    %v405 = vpop.f32.mrb[0].mxu0
    %v406 = vadd.f32 %v82, %v405
    %v407 = vpop.f32.mrb[0].mxu0
    %408 = vmatprep.mubr.f32.mxu0 0.0
    %409 = vmatmul.mubr.f32.gmra.mrb[0].mxu0 %v155
    %v410 = vpop.f32.mrb[0].mxu0
    %v411 = vadd.f32 %v82, %v410
    %v412 = vpop.f32.mrb[0].mxu0
    %413 = vmatprep.mubr.f32.mxu0 0.0
    %414 = vmatmul.mubr.f32.gmra.mrb[0].mxu0 %v158
    %v415 = vpop.f32.mrb[0].mxu0
    %v416 = vadd.f32 %v82, %v415
    %v417 = vpop.f32.mrb[0].mxu0
    %418 = vmatprep.mubr.f32.mxu0 0.0
    %419 = vmatmul.mubr.f32.gmra.mrb[0].mxu0 %v161
    %v420 = vpop.f32.mrb[0].mxu0
    %v421 = vadd.f32 %v82, %v420
    %v422 = vpop.f32.mrb[0].mxu0
    %423 = vmatprep.mubr.f32.mxu0 0.0
    %424 = vmatmul.mubr.f32.gmra.mrb[0].mxu0 %v164
    %v425 = vpop.f32.mrb[0].mxu0
    %v426 = vadd.f32 %v82, %v425
    %v427 = vpop.f32.mrb[0].mxu0
    %428 = vmatprep.mubr.f32.mxu0 0.0
    %429 = vmatmul.mubr.f32.gmra.mrb[0].mxu0 %v167
    %v430 = vpop.f32.mrb[0].mxu0
    %v431 = vadd.f32 %v82, %v430
    %v432 = vpop.f32.mrb[0].mxu0
    %433 = vmatprep.mubr.f32.mxu0 0.0
    %434 = vmatmul.mubr.f32.gmra.mrb[0].mxu0 %v170
    %v435 = vpop.f32.mrb[0].mxu0
    %v436 = vadd.f32 %v82, %v435
    %v437 = vpop.f32.mrb[0].mxu0
    %438 = vmatprep.mubr.f32.mxu0 0.0
    %439 = vmatmul.mubr.f32.gmra.mrb[0].mxu0 %v173
    %v440 = vpop.f32.mrb[0].mxu0
    %v441 = vadd.f32 %v82, %v440
    %v442 = vpop.f32.mrb[0].mxu0
    %443 = vmatprep.mubr.f32.mxu0 0.0
    %444 = vmatmul.mubr.f32.gmra.mrb[0].mxu0 %v176
    %v445 = vpop.f32.mrb[0].mxu0
    %v446 = vadd.f32 %v82, %v445
    %v447 = vpop.f32.mrb[0].mxu0
    %448 = vmatprep.mubr.f32.mxu0 0.0
    %449 = vmatmul.mubr.f32.gmra.mrb[0].mxu0 %v179
    %v450 = vpop.f32.mrb[0].mxu0
    %v451 = vadd.f32 %v82, %v450
    %v452 = vpop.f32.mrb[0].mxu0
    %453 = vmatprep.mubr.f32.mxu0 0.0
    %454 = vmatmul.mubr.f32.gmra.mrb[0].mxu0 %v182
    %v455 = vpop.f32.mrb[0].mxu0
    %v456 = vadd.f32 %v82, %v455
    %v457 = vpop.f32.mrb[0].mxu0
    %458 = vmatprep.mubr.f32.mxu0 0.0
    %459 = vmatmul.mubr.f32.gmra.mrb[0].mxu0 %v185
    %v460 = vpop.f32.mrb[0].mxu0
    %v461 = vadd.f32 %v82, %v460
    %v462 = vpop.f32.mrb[0].mxu0
    %463 = vmatprep.mubr.f32.mxu0 0.0
    %464 = vmatmul.mubr.f32.gmra.mrb[0].mxu0 %v188
    %v465 = vpop.f32.mrb[0].mxu0
    %v466 = vadd.f32 %v82, %v465
    %v467 = vpop.f32.mrb[0].mxu0
    %468 = vmatprep.mubr.f32.mxu0 0.0
    %469 = vmatmul.mubr.f32.gmra.mrb[0].mxu0 %v191
    %v470 = vpop.f32.mrb[0].mxu0
    %v471 = vadd.f32 %v82, %v470
    %v472 = vpop.f32.mrb[0].mxu0
    %473 = vmatprep.mubr.f32.mxu0 0.0
    %474 = vmatmul.mubr.f32.gmra.mrb[0].mxu0 %v194
    %v475 = vpop.f32.mrb[0].mxu0
    %v476 = vadd.f32 %v82, %v475
    %v477 = vpop.f32.mrb[0].mxu0
    %478 = vmatprep.mubr.f32.mxu0 0.0
    %479 = vmatmul.mubr.f32.gmra.mrb[0].mxu0 %v197
    %v480 = vpop.f32.mrb[0].mxu0
    %v481 = vadd.f32 %v82, %v480
    %v482 = vpop.f32.mrb[0].mxu0
    %483 = vmatprep.mubr.f32.mxu0 0.0
    %484 = vmatmul.mubr.f32.gmra.mrb[0].mxu0 %v200
    %v485 = vpop.f32.mrb[0].mxu0
    %v486 = vadd.f32 %v82, %v485
    %v487 = vpop.f32.mrb[0].mxu0
    %488 = vmatprep.mubr.f32.mxu0 0.0
    %489 = vmatmul.mubr.f32.gmra.mrb[0].mxu0 %v203
    %v490 = vpop.f32.mrb[0].mxu0
    %v491 = vadd.f32 %v82, %v490
    %v492 = vpop.f32.mrb[0].mxu0
    %493 = vmatprep.mubr.f32.mxu0 0.0
    %494 = vmatmul.mubr.f32.gmra.mrb[0].mxu0 %v206
    %v495 = vpop.f32.mrb[0].mxu0
    %v496 = vadd.f32 %v82, %v495
    %v497 = vpop.f32.mrb[0].mxu0
    %498 = vmatprep.mubr.f32.mxu0 0.0
    %499 = vmatmul.mubr.f32.gmra.mrb[0].mxu0 %v209
    %v500 = vpop.f32.mrb[0].mxu0
    %v501 = vadd.f32 %v82, %v500
    %v502 = vpop.f32.mrb[0].mxu0
    %503 = vmatprep.mubr.f32.mxu0 0.0
    %504 = vmatmul.mubr.f32.gmra.mrb[0].mxu0 %v212
    %v505 = vpop.f32.mrb[0].mxu0
    %v506 = vadd.f32 %v82, %v505
    %v507 = vpop.f32.mrb[0].mxu0
    %508 = vmatprep.mubr.f32.mxu0 0.0
    %509 = vmatmul.mubr.f32.gmra.mrb[0].mxu0 %v215
    %v510 = vpop.f32.mrb[0].mxu0
    %v511 = vadd.f32 %v82, %v510
    %v512 = vpop.f32.mrb[0].mxu0
    %513 = vmatprep.mubr.f32.mxu0 0.0
    %514 = vmatmul.mubr.f32.gmra.mrb[0].mxu0 %v218
    %v515 = vpop.f32.mrb[0].mxu0
    %v516 = vadd.f32 %v82, %v515
    %v517 = vpop.f32.mrb[0].mxu0
    %518 = vmatprep.mubr.f32.mxu0 0.0
    %519 = vmatmul.mubr.f32.gmra.mrb[0].mxu0 %v221
    %v520 = vpop.f32.mrb[0].mxu0
    %v521 = vadd.f32 %v82, %v520
    %v522 = vpop.f32.mrb[0].mxu0
    %523 = vmatprep.mubr.f32.mxu0 0.0
    %524 = vmatmul.mubr.f32.gmra.mrb[0].mxu0 %v224
    %v525 = vpop.f32.mrb[0].mxu0
    %v526 = vadd.f32 %v82, %v525
    %v527 = vpop.f32.mrb[0].mxu0
    %528 = vmatprep.mubr.f32.mxu0 0.0
    %529 = vmatmul.mubr.f32.gmra.mrb[0].mxu0 %v227
    %v530 = vpop.f32.mrb[0].mxu0
    %v531 = vadd.f32 %v82, %v530
    %v532 = vpop.f32.mrb[0].mxu0
    %533 = vdwg.mxu0
    %v534 = vmax.f32 %v296, 0.0
    %v535 = vmax.f32 %v301, 0.0
    %v536 = vmax.f32 %v306, 0.0
    %v537 = vmax.f32 %v311, 0.0
    %v538 = vmax.f32 %v316, 0.0
    %v539 = vmax.f32 %v321, 0.0
    %v540 = vmax.f32 %v326, 0.0
    %v541 = vmax.f32 %v331, 0.0
    %v542 = vmax.f32 %v336, 0.0
    %v543 = vmax.f32 %v341, 0.0
    %v544 = vmax.f32 %v346, 0.0
    %v545 = vmax.f32 %v351, 0.0
    %v546 = vmax.f32 %v356, 0.0
    %v547 = vmax.f32 %v361, 0.0
    %v548 = vmax.f32 %v366, 0.0
    %v549 = vmax.f32 %v371, 0.0
    %v550 = vmax.f32 %v376, 0.0
    %v551 = vmax.f32 %v381, 0.0
    %v552 = vmax.f32 %v386, 0.0
    %v553 = vmax.f32 %v391, 0.0
    %v554 = vmax.f32 %v396, 0.0
    %v555 = vmax.f32 %v401, 0.0
    %v556 = vmax.f32 %v406, 0.0
    %v557 = vmax.f32 %v411, 0.0
    %v558 = vmax.f32 %v416, 0.0
    %v559 = vmax.f32 %v421, 0.0
    %v560 = vmax.f32 %v426, 0.0
    %v561 = vmax.f32 %v431, 0.0
    %v562 = vmax.f32 %v436, 0.0
    %v563 = vmax.f32 %v441, 0.0
    %v564 = vmax.f32 %v446, 0.0
    %v565 = vmax.f32 %v451, 0.0
    %v566 = vmax.f32 %v456, 0.0
    %v567 = vmax.f32 %v461, 0.0
    %v568 = vmax.f32 %v466, 0.0
    %v569 = vmax.f32 %v471, 0.0
    %v570 = vmax.f32 %v476, 0.0
    %v571 = vmax.f32 %v481, 0.0
    %v572 = vmax.f32 %v486, 0.0
    %v573 = vmax.f32 %v491, 0.0
    %v574 = vmax.f32 %v496, 0.0
    %v575 = vmax.f32 %v501, 0.0
    %v576 = vmax.f32 %v506, 0.0
    %v577 = vmax.f32 %v511, 0.0
    %v578 = vmax.f32 %v516, 0.0
    %v579 = vmax.f32 %v521, 0.0
    %v580 = vmax.f32 %v526, 0.0
    %v581 = vmax.f32 %v531, 0.0
    %v582 = vld [vmem:[%s3] sm:$0xff]
    %v583 = vld [vmem:[%s3 + $0x8] sm:$0xff]
    %v584 = vld [vmem:[%s3 + $0x10] sm:$0xff]
    %v585 = vld [vmem:[%s3 + $0x18] sm:$0xff]
    %v586 = vld [vmem:[%s4] sm:$0x1]
    %v588 = vlaneseq
    %v589 = vshrl.u32 %v588, 7
    %v590 = vsub.s32 0, %v589
    %v591 = vrot.slane %v586, %v590
    %vm593 = vcmask 261120
    %v595 = vsel %vm593, %v534, 0
    %v598 = vsel %vm593, %v535, 0
    %v601 = vsel %vm593, %v536, 0
    %v604 = vsel %vm593, %v537, 0
    %v607 = vsel %vm593, %v538, 0
    %v610 = vsel %vm593, %v539, 0
    %v613 = vsel %vm593, %v540, 0
    %v616 = vsel %vm593, %v541, 0
    %v619 = vsel %vm593, %v542, 0
    %v622 = vsel %vm593, %v543, 0
    %v625 = vsel %vm593, %v544, 0
    %v628 = vsel %vm593, %v545, 0
    %v631 = vsel %vm593, %v546, 0
    %v634 = vsel %vm593, %v547, 0
    %v637 = vsel %vm593, %v548, 0
    %v640 = vsel %vm593, %v549, 0
    %v643 = vsel %vm593, %v550, 0
    %v646 = vsel %vm593, %v551, 0
    %v649 = vsel %vm593, %v552, 0
    %v652 = vsel %vm593, %v553, 0
    %v655 = vsel %vm593, %v554, 0
    %v658 = vsel %vm593, %v555, 0
    %v661 = vsel %vm593, %v556, 0
    %v664 = vsel %vm593, %v557, 0
    %v667 = vsel %vm593, %v558, 0
    %v670 = vsel %vm593, %v559, 0
    %v673 = vsel %vm593, %v560, 0
    %v676 = vsel %vm593, %v561, 0
    %v679 = vsel %vm593, %v562, 0
    %v682 = vsel %vm593, %v563, 0
    %v685 = vsel %vm593, %v564, 0
    %v688 = vsel %vm593, %v565, 0
    %v691 = vsel %vm593, %v566, 0
    %v694 = vsel %vm593, %v567, 0
    %v697 = vsel %vm593, %v568, 0
    %v700 = vsel %vm593, %v569, 0
    %v703 = vsel %vm593, %v570, 0
    %v706 = vsel %vm593, %v571, 0
    %v709 = vsel %vm593, %v572, 0
    %v712 = vsel %vm593, %v573, 0
    %v715 = vsel %vm593, %v574, 0
    %v718 = vsel %vm593, %v575, 0
    %v721 = vsel %vm593, %v576, 0
    %v724 = vsel %vm593, %v577, 0
    %v727 = vsel %vm593, %v578, 0
    %v730 = vsel %vm593, %v579, 0
    %v733 = vsel %vm593, %v580, 0
    %v736 = vsel %vm593, %v581, 0
    %738 = vmatprep.subr.mxu0 0.0
    %739 = vmatpush1.msra.mxu0 %v582
    %740 = vmatprep.subr.mxu0 0.0
    %741 = vmatpush1.msra.mxu0 %v583
    %742 = vmatprep.subr.mxu0 0.0
    %743 = vmatpush1.msra.mxu0 %v584
    %744 = vmatprep.subr.mxu0 0.0
    %745 = vmatpush1.msra.mxu0 %v585
    %746 = vmatprep.subr.mxu0 0.0
    %747 = vmatpush1.msra.mxu0 0.0
    %748 = vmatprep.subr.mxu0 0.0
    %749 = vmatpush1.msra.mxu0 0.0
    %750 = vmatprep.subr.mxu0 0.0
    %751 = vmatpush1.msra.mxu0 0.0
    %752 = vmatprep.subr.mxu0 0.0
    %753 = vmatpush1.msra.mxu0 0.0
    %754 = vmatprep.subr.mxu0 0.0
    %755 = vmatpush1.msra.mxu0 0.0
    %756 = vmatprep.subr.mxu0 0.0
    %757 = vmatpush1.msra.mxu0 0.0
    %758 = vmatprep.subr.mxu0 0.0
    %759 = vmatpush1.msra.mxu0 0.0
    %760 = vmatprep.subr.mxu0 0.0
    %761 = vmatpush1.msra.mxu0 0.0
    %762 = vmatprep.subr.mxu0 0.0
    %763 = vmatpush1.msra.mxu0 0.0
    %764 = vmatprep.subr.mxu0 0.0
    %765 = vmatpush1.msra.mxu0 0.0
    %766 = vmatprep.subr.mxu0 0.0
    %767 = vmatpush1.msra.mxu0 0.0
    %768 = vmatprep.subr.mxu0 0.0
    %769 = vmatpush1.msra.mxu0 0.0
    %770 = vmatprep.subr.mxu0 0.0
    %771 = vmatpush1.msra.mxu0 0.0
    %772 = vmatprep.subr.mxu0 0.0
    %773 = vmatpush1.msra.mxu0 0.0
    %774 = vmatprep.subr.mxu0 0.0
    %775 = vmatpush1.msra.mxu0 0.0
    %776 = vmatprep.subr.mxu0 0.0
    %777 = vmatpush1.msra.mxu0 0.0
    %778 = vmatprep.subr.mxu0 0.0
    %779 = vmatpush1.msra.mxu0 0.0
    %780 = vmatprep.subr.mxu0 0.0
    %781 = vmatpush1.msra.mxu0 0.0
    %782 = vmatprep.subr.mxu0 0.0
    %783 = vmatpush1.msra.mxu0 0.0
    %784 = vmatprep.subr.mxu0 0.0
    %785 = vmatpush1.msra.mxu0 0.0
    %786 = vmatprep.subr.mxu0 0.0
    %787 = vmatpush1.msra.mxu0 0.0
    %788 = vmatprep.subr.mxu0 0.0
    %789 = vmatpush1.msra.mxu0 0.0
    %790 = vmatprep.subr.mxu0 0.0
    %791 = vmatpush1.msra.mxu0 0.0
    %792 = vmatprep.subr.mxu0 0.0
    %793 = vmatpush1.msra.mxu0 0.0
    %794 = vmatprep.subr.mxu0 0.0
    %795 = vmatpush1.msra.mxu0 0.0
    %796 = vmatprep.subr.mxu0 0.0
    %797 = vmatpush1.msra.mxu0 0.0
    %798 = vmatprep.subr.mxu0 0.0
    %799 = vmatpush1.msra.mxu0 0.0
    %800 = vmatprep.subr.mxu0 0.0
    %801 = vmatpush1.msra.mxu0 0.0
    %802 = vmatprep.mubr.f32.mxu0 0.0
    %803 = vmatmul.mubr.f32.gmra.mrb[0].mxu0 %v595
    %v804 = vpop.f32.mrb[0].mxu0
    %v805 = vadd.f32 %v591, %v804
    %v806 = vpop.f32.mrb[0].mxu0
    %807 = vmatprep.mubr.f32.mxu0 0.0
    %808 = vmatmul.mubr.f32.gmra.mrb[0].mxu0 %v598
    %v809 = vpop.f32.mrb[0].mxu0
    %v810 = vadd.f32 %v591, %v809
    %v811 = vpop.f32.mrb[0].mxu0
    %812 = vmatprep.mubr.f32.mxu0 0.0
    %813 = vmatmul.mubr.f32.gmra.mrb[0].mxu0 %v601
    %v814 = vpop.f32.mrb[0].mxu0
    %v815 = vadd.f32 %v591, %v814
    %v816 = vpop.f32.mrb[0].mxu0
    %817 = vmatprep.mubr.f32.mxu0 0.0
    %818 = vmatmul.mubr.f32.gmra.mrb[0].mxu0 %v604
    %v819 = vpop.f32.mrb[0].mxu0
    %v820 = vadd.f32 %v591, %v819
    %v821 = vpop.f32.mrb[0].mxu0
    %822 = vmatprep.mubr.f32.mxu0 0.0
    %823 = vmatmul.mubr.f32.gmra.mrb[0].mxu0 %v607
    %v824 = vpop.f32.mrb[0].mxu0
    %v825 = vadd.f32 %v591, %v824
    %v826 = vpop.f32.mrb[0].mxu0
    %827 = vmatprep.mubr.f32.mxu0 0.0
    %828 = vmatmul.mubr.f32.gmra.mrb[0].mxu0 %v610
    %v829 = vpop.f32.mrb[0].mxu0
    %v830 = vadd.f32 %v591, %v829
    %v831 = vpop.f32.mrb[0].mxu0
    %832 = vmatprep.mubr.f32.mxu0 0.0
    %833 = vmatmul.mubr.f32.gmra.mrb[0].mxu0 %v613
    %v834 = vpop.f32.mrb[0].mxu0
    %v835 = vadd.f32 %v591, %v834
    %v836 = vpop.f32.mrb[0].mxu0
    %837 = vmatprep.mubr.f32.mxu0 0.0
    %838 = vmatmul.mubr.f32.gmra.mrb[0].mxu0 %v616
    %v839 = vpop.f32.mrb[0].mxu0
    %v840 = vadd.f32 %v591, %v839
    %v841 = vpop.f32.mrb[0].mxu0
    %842 = vmatprep.mubr.f32.mxu0 0.0
    %843 = vmatmul.mubr.f32.gmra.mrb[0].mxu0 %v619
    %v844 = vpop.f32.mrb[0].mxu0
    %v845 = vadd.f32 %v591, %v844
    %v846 = vpop.f32.mrb[0].mxu0
    %847 = vmatprep.mubr.f32.mxu0 0.0
    %848 = vmatmul.mubr.f32.gmra.mrb[0].mxu0 %v622
    %v849 = vpop.f32.mrb[0].mxu0
    %v850 = vadd.f32 %v591, %v849
    %v851 = vpop.f32.mrb[0].mxu0
    %852 = vmatprep.mubr.f32.mxu0 0.0
    %853 = vmatmul.mubr.f32.gmra.mrb[0].mxu0 %v625
    %v854 = vpop.f32.mrb[0].mxu0
    %v855 = vadd.f32 %v591, %v854
    %v856 = vpop.f32.mrb[0].mxu0
    %857 = vmatprep.mubr.f32.mxu0 0.0
    %858 = vmatmul.mubr.f32.gmra.mrb[0].mxu0 %v628
    %v859 = vpop.f32.mrb[0].mxu0
    %v860 = vadd.f32 %v591, %v859
    %v861 = vpop.f32.mrb[0].mxu0
    %862 = vmatprep.mubr.f32.mxu0 0.0
    %863 = vmatmul.mubr.f32.gmra.mrb[0].mxu0 %v631
    %v864 = vpop.f32.mrb[0].mxu0
    %v865 = vadd.f32 %v591, %v864
    %v866 = vpop.f32.mrb[0].mxu0
    %867 = vmatprep.mubr.f32.mxu0 0.0
    %868 = vmatmul.mubr.f32.gmra.mrb[0].mxu0 %v634
    %v869 = vpop.f32.mrb[0].mxu0
    %v870 = vadd.f32 %v591, %v869
    %v871 = vpop.f32.mrb[0].mxu0
    %872 = vmatprep.mubr.f32.mxu0 0.0
    %873 = vmatmul.mubr.f32.gmra.mrb[0].mxu0 %v637
    %v874 = vpop.f32.mrb[0].mxu0
    %v875 = vadd.f32 %v591, %v874
    %v876 = vpop.f32.mrb[0].mxu0
    %877 = vmatprep.mubr.f32.mxu0 0.0
    %878 = vmatmul.mubr.f32.gmra.mrb[0].mxu0 %v640
    %v879 = vpop.f32.mrb[0].mxu0
    %v880 = vadd.f32 %v591, %v879
    %v881 = vpop.f32.mrb[0].mxu0
    %882 = vmatprep.mubr.f32.mxu0 0.0
    %883 = vmatmul.mubr.f32.gmra.mrb[0].mxu0 %v643
    %v884 = vpop.f32.mrb[0].mxu0
    %v885 = vadd.f32 %v591, %v884
    %v886 = vpop.f32.mrb[0].mxu0
    %887 = vmatprep.mubr.f32.mxu0 0.0
    %888 = vmatmul.mubr.f32.gmra.mrb[0].mxu0 %v646
    %v889 = vpop.f32.mrb[0].mxu0
    %v890 = vadd.f32 %v591, %v889
    %v891 = vpop.f32.mrb[0].mxu0
    %892 = vmatprep.mubr.f32.mxu0 0.0
    %893 = vmatmul.mubr.f32.gmra.mrb[0].mxu0 %v649
    %v894 = vpop.f32.mrb[0].mxu0
    %v895 = vadd.f32 %v591, %v894
    %v896 = vpop.f32.mrb[0].mxu0
    %897 = vmatprep.mubr.f32.mxu0 0.0
    %898 = vmatmul.mubr.f32.gmra.mrb[0].mxu0 %v652
    %v899 = vpop.f32.mrb[0].mxu0
    %v900 = vadd.f32 %v591, %v899
    %v901 = vpop.f32.mrb[0].mxu0
    %902 = vmatprep.mubr.f32.mxu0 0.0
    %903 = vmatmul.mubr.f32.gmra.mrb[0].mxu0 %v655
    %v904 = vpop.f32.mrb[0].mxu0
    %v905 = vadd.f32 %v591, %v904
    %v906 = vpop.f32.mrb[0].mxu0
    %907 = vmatprep.mubr.f32.mxu0 0.0
    %908 = vmatmul.mubr.f32.gmra.mrb[0].mxu0 %v658
    %v909 = vpop.f32.mrb[0].mxu0
    %v910 = vadd.f32 %v591, %v909
    %v911 = vpop.f32.mrb[0].mxu0
    %912 = vmatprep.mubr.f32.mxu0 0.0
    %913 = vmatmul.mubr.f32.gmra.mrb[0].mxu0 %v661
    %v914 = vpop.f32.mrb[0].mxu0
    %v915 = vadd.f32 %v591, %v914
    %v916 = vpop.f32.mrb[0].mxu0
    %917 = vmatprep.mubr.f32.mxu0 0.0
    %918 = vmatmul.mubr.f32.gmra.mrb[0].mxu0 %v664
    %v919 = vpop.f32.mrb[0].mxu0
    %v920 = vadd.f32 %v591, %v919
    %v921 = vpop.f32.mrb[0].mxu0
    %922 = vmatprep.mubr.f32.mxu0 0.0
    %923 = vmatmul.mubr.f32.gmra.mrb[0].mxu0 %v667
    %v924 = vpop.f32.mrb[0].mxu0
    %v925 = vadd.f32 %v591, %v924
    %v926 = vpop.f32.mrb[0].mxu0
    %927 = vmatprep.mubr.f32.mxu0 0.0
    %928 = vmatmul.mubr.f32.gmra.mrb[0].mxu0 %v670
    %v929 = vpop.f32.mrb[0].mxu0
    %v930 = vadd.f32 %v591, %v929
    %v931 = vpop.f32.mrb[0].mxu0
    %932 = vmatprep.mubr.f32.mxu0 0.0
    %933 = vmatmul.mubr.f32.gmra.mrb[0].mxu0 %v673
    %v934 = vpop.f32.mrb[0].mxu0
    %v935 = vadd.f32 %v591, %v934
    %v936 = vpop.f32.mrb[0].mxu0
    %937 = vmatprep.mubr.f32.mxu0 0.0
    %938 = vmatmul.mubr.f32.gmra.mrb[0].mxu0 %v676
    %v939 = vpop.f32.mrb[0].mxu0
    %v940 = vadd.f32 %v591, %v939
    %v941 = vpop.f32.mrb[0].mxu0
    %942 = vmatprep.mubr.f32.mxu0 0.0
    %943 = vmatmul.mubr.f32.gmra.mrb[0].mxu0 %v679
    %v944 = vpop.f32.mrb[0].mxu0
    %v945 = vadd.f32 %v591, %v944
    %v946 = vpop.f32.mrb[0].mxu0
    %947 = vmatprep.mubr.f32.mxu0 0.0
    %948 = vmatmul.mubr.f32.gmra.mrb[0].mxu0 %v682
    %v949 = vpop.f32.mrb[0].mxu0
    %v950 = vadd.f32 %v591, %v949
    %v951 = vpop.f32.mrb[0].mxu0
    %952 = vmatprep.mubr.f32.mxu0 0.0
    %953 = vmatmul.mubr.f32.gmra.mrb[0].mxu0 %v685
    %v954 = vpop.f32.mrb[0].mxu0
    %v955 = vadd.f32 %v591, %v954
    %v956 = vpop.f32.mrb[0].mxu0
    %957 = vmatprep.mubr.f32.mxu0 0.0
    %958 = vmatmul.mubr.f32.gmra.mrb[0].mxu0 %v688
    %v959 = vpop.f32.mrb[0].mxu0
    %v960 = vadd.f32 %v591, %v959
    %v961 = vpop.f32.mrb[0].mxu0
    %962 = vmatprep.mubr.f32.mxu0 0.0
    %963 = vmatmul.mubr.f32.gmra.mrb[0].mxu0 %v691
    %v964 = vpop.f32.mrb[0].mxu0
    %v965 = vadd.f32 %v591, %v964
    %v966 = vpop.f32.mrb[0].mxu0
    %967 = vmatprep.mubr.f32.mxu0 0.0
    %968 = vmatmul.mubr.f32.gmra.mrb[0].mxu0 %v694
    %v969 = vpop.f32.mrb[0].mxu0
    %v970 = vadd.f32 %v591, %v969
    %v971 = vpop.f32.mrb[0].mxu0
    %972 = vmatprep.mubr.f32.mxu0 0.0
    %973 = vmatmul.mubr.f32.gmra.mrb[0].mxu0 %v697
    %v974 = vpop.f32.mrb[0].mxu0
    %v975 = vadd.f32 %v591, %v974
    %v976 = vpop.f32.mrb[0].mxu0
    %977 = vmatprep.mubr.f32.mxu0 0.0
    %978 = vmatmul.mubr.f32.gmra.mrb[0].mxu0 %v700
    %v979 = vpop.f32.mrb[0].mxu0
    %v980 = vadd.f32 %v591, %v979
    %v981 = vpop.f32.mrb[0].mxu0
    %982 = vmatprep.mubr.f32.mxu0 0.0
    %983 = vmatmul.mubr.f32.gmra.mrb[0].mxu0 %v703
    %v984 = vpop.f32.mrb[0].mxu0
    %v985 = vadd.f32 %v591, %v984
    %v986 = vpop.f32.mrb[0].mxu0
    %987 = vmatprep.mubr.f32.mxu0 0.0
    %988 = vmatmul.mubr.f32.gmra.mrb[0].mxu0 %v706
    %v989 = vpop.f32.mrb[0].mxu0
    %v990 = vadd.f32 %v591, %v989
    %v991 = vpop.f32.mrb[0].mxu0
    %992 = vmatprep.mubr.f32.mxu0 0.0
    %993 = vmatmul.mubr.f32.gmra.mrb[0].mxu0 %v709
    %v994 = vpop.f32.mrb[0].mxu0
    %v995 = vadd.f32 %v591, %v994
    %v996 = vpop.f32.mrb[0].mxu0
    %997 = vmatprep.mubr.f32.mxu0 0.0
    %998 = vmatmul.mubr.f32.gmra.mrb[0].mxu0 %v712
    %v999 = vpop.f32.mrb[0].mxu0
    %v1000 = vadd.f32 %v591, %v999
    %v1001 = vpop.f32.mrb[0].mxu0
    %1002 = vmatprep.mubr.f32.mxu0 0.0
    %1003 = vmatmul.mubr.f32.gmra.mrb[0].mxu0 %v715
    %v1004 = vpop.f32.mrb[0].mxu0
    %v1005 = vadd.f32 %v591, %v1004
    %v1006 = vpop.f32.mrb[0].mxu0
    %1007 = vmatprep.mubr.f32.mxu0 0.0
    %1008 = vmatmul.mubr.f32.gmra.mrb[0].mxu0 %v718
    %v1009 = vpop.f32.mrb[0].mxu0
    %v1010 = vadd.f32 %v591, %v1009
    %v1011 = vpop.f32.mrb[0].mxu0
    %1012 = vmatprep.mubr.f32.mxu0 0.0
    %1013 = vmatmul.mubr.f32.gmra.mrb[0].mxu0 %v721
    %v1014 = vpop.f32.mrb[0].mxu0
    %v1015 = vadd.f32 %v591, %v1014
    %v1016 = vpop.f32.mrb[0].mxu0
    %1017 = vmatprep.mubr.f32.mxu0 0.0
    %1018 = vmatmul.mubr.f32.gmra.mrb[0].mxu0 %v724
    %v1019 = vpop.f32.mrb[0].mxu0
    %v1020 = vadd.f32 %v591, %v1019
    %v1021 = vpop.f32.mrb[0].mxu0
    %1022 = vmatprep.mubr.f32.mxu0 0.0
    %1023 = vmatmul.mubr.f32.gmra.mrb[0].mxu0 %v727
    %v1024 = vpop.f32.mrb[0].mxu0
    %v1025 = vadd.f32 %v591, %v1024
    %v1026 = vpop.f32.mrb[0].mxu0
    %1027 = vmatprep.mubr.f32.mxu0 0.0
    %1028 = vmatmul.mubr.f32.gmra.mrb[0].mxu0 %v730
    %v1029 = vpop.f32.mrb[0].mxu0
    %v1030 = vadd.f32 %v591, %v1029
    %v1031 = vpop.f32.mrb[0].mxu0
    %1032 = vmatprep.mubr.f32.mxu0 0.0
    %1033 = vmatmul.mubr.f32.gmra.mrb[0].mxu0 %v733
    %v1034 = vpop.f32.mrb[0].mxu0
    %v1035 = vadd.f32 %v591, %v1034
    %v1036 = vpop.f32.mrb[0].mxu0
    %1037 = vmatprep.mubr.f32.mxu0 0.0
    %1038 = vmatmul.mubr.f32.gmra.mrb[0].mxu0 %v736
    %v1039 = vpop.f32.mrb[0].mxu0
    %v1040 = vadd.f32 %v591, %v1039
    %v1041 = vpop.f32.mrb[0].mxu0
    %1042 = vdwg.mxu0
    %v1043 = vmax.f32 %v805, 0.0
    %v1044 = vmax.f32 %v810, 0.0
    %v1045 = vmax.f32 %v815, 0.0
    %v1046 = vmax.f32 %v820, 0.0
    %v1047 = vmax.f32 %v825, 0.0
    %v1048 = vmax.f32 %v830, 0.0
    %v1049 = vmax.f32 %v835, 0.0
    %v1050 = vmax.f32 %v840, 0.0
    %v1051 = vmax.f32 %v845, 0.0
    %v1052 = vmax.f32 %v850, 0.0
    %v1053 = vmax.f32 %v855, 0.0
    %v1054 = vmax.f32 %v860, 0.0
    %v1055 = vmax.f32 %v865, 0.0
    %v1056 = vmax.f32 %v870, 0.0
    %v1057 = vmax.f32 %v875, 0.0
    %v1058 = vmax.f32 %v880, 0.0
    %v1059 = vmax.f32 %v885, 0.0
    %v1060 = vmax.f32 %v890, 0.0
    %v1061 = vmax.f32 %v895, 0.0
    %v1062 = vmax.f32 %v900, 0.0
    %v1063 = vmax.f32 %v905, 0.0
    %v1064 = vmax.f32 %v910, 0.0
    %v1065 = vmax.f32 %v915, 0.0
    %v1066 = vmax.f32 %v920, 0.0
    %v1067 = vmax.f32 %v925, 0.0
    %v1068 = vmax.f32 %v930, 0.0
    %v1069 = vmax.f32 %v935, 0.0
    %v1070 = vmax.f32 %v940, 0.0
    %v1071 = vmax.f32 %v945, 0.0
    %v1072 = vmax.f32 %v950, 0.0
    %v1073 = vmax.f32 %v955, 0.0
    %v1074 = vmax.f32 %v960, 0.0
    %v1075 = vmax.f32 %v965, 0.0
    %v1076 = vmax.f32 %v970, 0.0
    %v1077 = vmax.f32 %v975, 0.0
    %v1078 = vmax.f32 %v980, 0.0
    %v1079 = vmax.f32 %v985, 0.0
    %v1080 = vmax.f32 %v990, 0.0
    %v1081 = vmax.f32 %v995, 0.0
    %v1082 = vmax.f32 %v1000, 0.0
    %v1083 = vmax.f32 %v1005, 0.0
    %v1084 = vmax.f32 %v1010, 0.0
    %v1085 = vmax.f32 %v1015, 0.0
    %v1086 = vmax.f32 %v1020, 0.0
    %v1087 = vmax.f32 %v1025, 0.0
    %v1088 = vmax.f32 %v1030, 0.0
    %v1089 = vmax.f32 %v1035, 0.0
    %v1090 = vmax.f32 %v1040, 0.0
    %v1091 = vld [vmem:[%s5] sm:$0xff]
    %v1092 = vld [vmem:[%s5 + $0x8] sm:$0xff]
    %v1093 = vld [vmem:[%s5 + $0x10] sm:$0xff]
    %v1094 = vld [vmem:[%s5 + $0x18] sm:$0xff]
    %v1095 = vld [vmem:[%s6] sm:$0x1]
    %v1097 = vlaneseq
    %v1098 = vshrl.u32 %v1097, 7
    %v1099 = vsub.s32 0, %v1098
    %v1100 = vrot.slane %v1095, %v1099
    %v1103 = vsel %vm593, %v1043, 0
    %v1106 = vsel %vm593, %v1044, 0
    %v1109 = vsel %vm593, %v1045, 0
    %v1112 = vsel %vm593, %v1046, 0
    %v1115 = vsel %vm593, %v1047, 0
    %v1118 = vsel %vm593, %v1048, 0
    %v1121 = vsel %vm593, %v1049, 0
    %v1124 = vsel %vm593, %v1050, 0
    %v1127 = vsel %vm593, %v1051, 0
    %v1130 = vsel %vm593, %v1052, 0
    %v1133 = vsel %vm593, %v1053, 0
    %v1136 = vsel %vm593, %v1054, 0
    %v1139 = vsel %vm593, %v1055, 0
    %v1142 = vsel %vm593, %v1056, 0
    %v1145 = vsel %vm593, %v1057, 0
    %v1148 = vsel %vm593, %v1058, 0
    %v1151 = vsel %vm593, %v1059, 0
    %v1154 = vsel %vm593, %v1060, 0
    %v1157 = vsel %vm593, %v1061, 0
    %v1160 = vsel %vm593, %v1062, 0
    %v1163 = vsel %vm593, %v1063, 0
    %v1166 = vsel %vm593, %v1064, 0
    %v1169 = vsel %vm593, %v1065, 0
    %v1172 = vsel %vm593, %v1066, 0
    %v1175 = vsel %vm593, %v1067, 0
    %v1178 = vsel %vm593, %v1068, 0
    %v1181 = vsel %vm593, %v1069, 0
    %v1184 = vsel %vm593, %v1070, 0
    %v1187 = vsel %vm593, %v1071, 0
    %v1190 = vsel %vm593, %v1072, 0
    %v1193 = vsel %vm593, %v1073, 0
    %v1196 = vsel %vm593, %v1074, 0
    %v1199 = vsel %vm593, %v1075, 0
    %v1202 = vsel %vm593, %v1076, 0
    %v1205 = vsel %vm593, %v1077, 0
    %v1208 = vsel %vm593, %v1078, 0
    %v1211 = vsel %vm593, %v1079, 0
    %v1214 = vsel %vm593, %v1080, 0
    %v1217 = vsel %vm593, %v1081, 0
    %v1220 = vsel %vm593, %v1082, 0
    %v1223 = vsel %vm593, %v1083, 0
    %v1226 = vsel %vm593, %v1084, 0
    %v1229 = vsel %vm593, %v1085, 0
    %v1232 = vsel %vm593, %v1086, 0
    %v1235 = vsel %vm593, %v1087, 0
    %v1238 = vsel %vm593, %v1088, 0
    %v1241 = vsel %vm593, %v1089, 0
    %v1244 = vsel %vm593, %v1090, 0
    %1246 = vmatprep.subr.mxu0 0.0
    %1247 = vmatpush1.msra.mxu0 %v1091
    %1248 = vmatprep.subr.mxu0 0.0
    %1249 = vmatpush1.msra.mxu0 %v1092
    %1250 = vmatprep.subr.mxu0 0.0
    %1251 = vmatpush1.msra.mxu0 %v1093
    %1252 = vmatprep.subr.mxu0 0.0
    %1253 = vmatpush1.msra.mxu0 %v1094
    %1254 = vmatprep.subr.mxu0 0.0
    %1255 = vmatpush1.msra.mxu0 0.0
    %1256 = vmatprep.subr.mxu0 0.0
    %1257 = vmatpush1.msra.mxu0 0.0
    %1258 = vmatprep.subr.mxu0 0.0
    %1259 = vmatpush1.msra.mxu0 0.0
    %1260 = vmatprep.subr.mxu0 0.0
    %1261 = vmatpush1.msra.mxu0 0.0
    %1262 = vmatprep.subr.mxu0 0.0
    %1263 = vmatpush1.msra.mxu0 0.0
    %1264 = vmatprep.subr.mxu0 0.0
    %1265 = vmatpush1.msra.mxu0 0.0
    %1266 = vmatprep.subr.mxu0 0.0
    %1267 = vmatpush1.msra.mxu0 0.0
    %1268 = vmatprep.subr.mxu0 0.0
    %1269 = vmatpush1.msra.mxu0 0.0
    %1270 = vmatprep.subr.mxu0 0.0
    %1271 = vmatpush1.msra.mxu0 0.0
    %1272 = vmatprep.subr.mxu0 0.0
    %1273 = vmatpush1.msra.mxu0 0.0
    %1274 = vmatprep.subr.mxu0 0.0
    %1275 = vmatpush1.msra.mxu0 0.0
    %1276 = vmatprep.subr.mxu0 0.0
    %1277 = vmatpush1.msra.mxu0 0.0
    %1278 = vmatprep.subr.mxu0 0.0
    %1279 = vmatpush1.msra.mxu0 0.0
    %1280 = vmatprep.subr.mxu0 0.0
    %1281 = vmatpush1.msra.mxu0 0.0
    %1282 = vmatprep.subr.mxu0 0.0
    %1283 = vmatpush1.msra.mxu0 0.0
    %1284 = vmatprep.subr.mxu0 0.0
    %1285 = vmatpush1.msra.mxu0 0.0
    %1286 = vmatprep.subr.mxu0 0.0
    %1287 = vmatpush1.msra.mxu0 0.0
    %1288 = vmatprep.subr.mxu0 0.0
    %1289 = vmatpush1.msra.mxu0 0.0
    %1290 = vmatprep.subr.mxu0 0.0
    %1291 = vmatpush1.msra.mxu0 0.0
    %1292 = vmatprep.subr.mxu0 0.0
    %1293 = vmatpush1.msra.mxu0 0.0
    %1294 = vmatprep.subr.mxu0 0.0
    %1295 = vmatpush1.msra.mxu0 0.0
    %1296 = vmatprep.subr.mxu0 0.0
    %1297 = vmatpush1.msra.mxu0 0.0
    %1298 = vmatprep.subr.mxu0 0.0
    %1299 = vmatpush1.msra.mxu0 0.0
    %1300 = vmatprep.subr.mxu0 0.0
    %1301 = vmatpush1.msra.mxu0 0.0
    %1302 = vmatprep.subr.mxu0 0.0
    %1303 = vmatpush1.msra.mxu0 0.0
    %1304 = vmatprep.subr.mxu0 0.0
    %1305 = vmatpush1.msra.mxu0 0.0
    %1306 = vmatprep.subr.mxu0 0.0
    %1307 = vmatpush1.msra.mxu0 0.0
    %1308 = vmatprep.subr.mxu0 0.0
    %1309 = vmatpush1.msra.mxu0 0.0
    %1310 = vmatprep.mubr.f32.mxu0 0.0
    %1311 = vmatmul.mubr.f32.gmra.mrb[0].mxu0 %v1103
    %v1312 = vpop.f32.mrb[0].mxu0
    %v1313 = vadd.f32 %v1100, %v1312
    %v1314 = vpop.f32.mrb[0].mxu0
    %1315 = vmatprep.mubr.f32.mxu0 0.0
    %1316 = vmatmul.mubr.f32.gmra.mrb[0].mxu0 %v1106
    %v1317 = vpop.f32.mrb[0].mxu0
    %v1318 = vadd.f32 %v1100, %v1317
    %v1319 = vpop.f32.mrb[0].mxu0
    %1320 = vmatprep.mubr.f32.mxu0 0.0
    %1321 = vmatmul.mubr.f32.gmra.mrb[0].mxu0 %v1109
    %v1322 = vpop.f32.mrb[0].mxu0
    %v1323 = vadd.f32 %v1100, %v1322
    %v1324 = vpop.f32.mrb[0].mxu0
    %1325 = vmatprep.mubr.f32.mxu0 0.0
    %1326 = vmatmul.mubr.f32.gmra.mrb[0].mxu0 %v1112
    %v1327 = vpop.f32.mrb[0].mxu0
    %v1328 = vadd.f32 %v1100, %v1327
    %v1329 = vpop.f32.mrb[0].mxu0
    %1330 = vmatprep.mubr.f32.mxu0 0.0
    %1331 = vmatmul.mubr.f32.gmra.mrb[0].mxu0 %v1115
    %v1332 = vpop.f32.mrb[0].mxu0
    %v1333 = vadd.f32 %v1100, %v1332
    %v1334 = vpop.f32.mrb[0].mxu0
    %1335 = vmatprep.mubr.f32.mxu0 0.0
    %1336 = vmatmul.mubr.f32.gmra.mrb[0].mxu0 %v1118
    %v1337 = vpop.f32.mrb[0].mxu0
    %v1338 = vadd.f32 %v1100, %v1337
    %v1339 = vpop.f32.mrb[0].mxu0
    %1340 = vmatprep.mubr.f32.mxu0 0.0
    %1341 = vmatmul.mubr.f32.gmra.mrb[0].mxu0 %v1121
    %v1342 = vpop.f32.mrb[0].mxu0
    %v1343 = vadd.f32 %v1100, %v1342
    %v1344 = vpop.f32.mrb[0].mxu0
    %1345 = vmatprep.mubr.f32.mxu0 0.0
    %1346 = vmatmul.mubr.f32.gmra.mrb[0].mxu0 %v1124
    %v1347 = vpop.f32.mrb[0].mxu0
    %v1348 = vadd.f32 %v1100, %v1347
    %v1349 = vpop.f32.mrb[0].mxu0
    %1350 = vmatprep.mubr.f32.mxu0 0.0
    %1351 = vmatmul.mubr.f32.gmra.mrb[0].mxu0 %v1127
    %v1352 = vpop.f32.mrb[0].mxu0
    %v1353 = vadd.f32 %v1100, %v1352
    %v1354 = vpop.f32.mrb[0].mxu0
    %1355 = vmatprep.mubr.f32.mxu0 0.0
    %1356 = vmatmul.mubr.f32.gmra.mrb[0].mxu0 %v1130
    %v1357 = vpop.f32.mrb[0].mxu0
    %v1358 = vadd.f32 %v1100, %v1357
    %v1359 = vpop.f32.mrb[0].mxu0
    %1360 = vmatprep.mubr.f32.mxu0 0.0
    %1361 = vmatmul.mubr.f32.gmra.mrb[0].mxu0 %v1133
    %v1362 = vpop.f32.mrb[0].mxu0
    %v1363 = vadd.f32 %v1100, %v1362
    %v1364 = vpop.f32.mrb[0].mxu0
    %1365 = vmatprep.mubr.f32.mxu0 0.0
    %1366 = vmatmul.mubr.f32.gmra.mrb[0].mxu0 %v1136
    %v1367 = vpop.f32.mrb[0].mxu0
    %v1368 = vadd.f32 %v1100, %v1367
    %v1369 = vpop.f32.mrb[0].mxu0
    %1370 = vmatprep.mubr.f32.mxu0 0.0
    %1371 = vmatmul.mubr.f32.gmra.mrb[0].mxu0 %v1139
    %v1372 = vpop.f32.mrb[0].mxu0
    %v1373 = vadd.f32 %v1100, %v1372
    %v1374 = vpop.f32.mrb[0].mxu0
    %1375 = vmatprep.mubr.f32.mxu0 0.0
    %1376 = vmatmul.mubr.f32.gmra.mrb[0].mxu0 %v1142
    %v1377 = vpop.f32.mrb[0].mxu0
    %v1378 = vadd.f32 %v1100, %v1377
    %v1379 = vpop.f32.mrb[0].mxu0
    %1380 = vmatprep.mubr.f32.mxu0 0.0
    %1381 = vmatmul.mubr.f32.gmra.mrb[0].mxu0 %v1145
    %v1382 = vpop.f32.mrb[0].mxu0
    %v1383 = vadd.f32 %v1100, %v1382
    %v1384 = vpop.f32.mrb[0].mxu0
    %1385 = vmatprep.mubr.f32.mxu0 0.0
    %1386 = vmatmul.mubr.f32.gmra.mrb[0].mxu0 %v1148
    %v1387 = vpop.f32.mrb[0].mxu0
    %v1388 = vadd.f32 %v1100, %v1387
    %v1389 = vpop.f32.mrb[0].mxu0
    %1390 = vmatprep.mubr.f32.mxu0 0.0
    %1391 = vmatmul.mubr.f32.gmra.mrb[0].mxu0 %v1151
    %v1392 = vpop.f32.mrb[0].mxu0
    %v1393 = vadd.f32 %v1100, %v1392
    %v1394 = vpop.f32.mrb[0].mxu0
    %1395 = vmatprep.mubr.f32.mxu0 0.0
    %1396 = vmatmul.mubr.f32.gmra.mrb[0].mxu0 %v1154
    %v1397 = vpop.f32.mrb[0].mxu0
    %v1398 = vadd.f32 %v1100, %v1397
    %v1399 = vpop.f32.mrb[0].mxu0
    %1400 = vmatprep.mubr.f32.mxu0 0.0
    %1401 = vmatmul.mubr.f32.gmra.mrb[0].mxu0 %v1157
    %v1402 = vpop.f32.mrb[0].mxu0
    %v1403 = vadd.f32 %v1100, %v1402
    %v1404 = vpop.f32.mrb[0].mxu0
    %1405 = vmatprep.mubr.f32.mxu0 0.0
    %1406 = vmatmul.mubr.f32.gmra.mrb[0].mxu0 %v1160
    %v1407 = vpop.f32.mrb[0].mxu0
    %v1408 = vadd.f32 %v1100, %v1407
    %v1409 = vpop.f32.mrb[0].mxu0
    %1410 = vmatprep.mubr.f32.mxu0 0.0
    %1411 = vmatmul.mubr.f32.gmra.mrb[0].mxu0 %v1163
    %v1412 = vpop.f32.mrb[0].mxu0
    %v1413 = vadd.f32 %v1100, %v1412
    %v1414 = vpop.f32.mrb[0].mxu0
    %1415 = vmatprep.mubr.f32.mxu0 0.0
    %1416 = vmatmul.mubr.f32.gmra.mrb[0].mxu0 %v1166
    %v1417 = vpop.f32.mrb[0].mxu0
    %v1418 = vadd.f32 %v1100, %v1417
    %v1419 = vpop.f32.mrb[0].mxu0
    %1420 = vmatprep.mubr.f32.mxu0 0.0
    %1421 = vmatmul.mubr.f32.gmra.mrb[0].mxu0 %v1169
    %v1422 = vpop.f32.mrb[0].mxu0
    %v1423 = vadd.f32 %v1100, %v1422
    %v1424 = vpop.f32.mrb[0].mxu0
    %1425 = vmatprep.mubr.f32.mxu0 0.0
    %1426 = vmatmul.mubr.f32.gmra.mrb[0].mxu0 %v1172
    %v1427 = vpop.f32.mrb[0].mxu0
    %v1428 = vadd.f32 %v1100, %v1427
    %v1429 = vpop.f32.mrb[0].mxu0
    %1430 = vmatprep.mubr.f32.mxu0 0.0
    %1431 = vmatmul.mubr.f32.gmra.mrb[0].mxu0 %v1175
    %v1432 = vpop.f32.mrb[0].mxu0
    %v1433 = vadd.f32 %v1100, %v1432
    %v1434 = vpop.f32.mrb[0].mxu0
    %1435 = vmatprep.mubr.f32.mxu0 0.0
    %1436 = vmatmul.mubr.f32.gmra.mrb[0].mxu0 %v1178
    %v1437 = vpop.f32.mrb[0].mxu0
    %v1438 = vadd.f32 %v1100, %v1437
    %v1439 = vpop.f32.mrb[0].mxu0
    %1440 = vmatprep.mubr.f32.mxu0 0.0
    %1441 = vmatmul.mubr.f32.gmra.mrb[0].mxu0 %v1181
    %v1442 = vpop.f32.mrb[0].mxu0
    %v1443 = vadd.f32 %v1100, %v1442
    %v1444 = vpop.f32.mrb[0].mxu0
    %1445 = vmatprep.mubr.f32.mxu0 0.0
    %1446 = vmatmul.mubr.f32.gmra.mrb[0].mxu0 %v1184
    %v1447 = vpop.f32.mrb[0].mxu0
    %v1448 = vadd.f32 %v1100, %v1447
    %v1449 = vpop.f32.mrb[0].mxu0
    %1450 = vmatprep.mubr.f32.mxu0 0.0
    %1451 = vmatmul.mubr.f32.gmra.mrb[0].mxu0 %v1187
    %v1452 = vpop.f32.mrb[0].mxu0
    %v1453 = vadd.f32 %v1100, %v1452
    %v1454 = vpop.f32.mrb[0].mxu0
    %1455 = vmatprep.mubr.f32.mxu0 0.0
    %1456 = vmatmul.mubr.f32.gmra.mrb[0].mxu0 %v1190
    %v1457 = vpop.f32.mrb[0].mxu0
    %v1458 = vadd.f32 %v1100, %v1457
    %v1459 = vpop.f32.mrb[0].mxu0
    %1460 = vmatprep.mubr.f32.mxu0 0.0
    %1461 = vmatmul.mubr.f32.gmra.mrb[0].mxu0 %v1193
    %v1462 = vpop.f32.mrb[0].mxu0
    %v1463 = vadd.f32 %v1100, %v1462
    %v1464 = vpop.f32.mrb[0].mxu0
    %1465 = vmatprep.mubr.f32.mxu0 0.0
    %1466 = vmatmul.mubr.f32.gmra.mrb[0].mxu0 %v1196
    %v1467 = vpop.f32.mrb[0].mxu0
    %v1468 = vadd.f32 %v1100, %v1467
    %v1469 = vpop.f32.mrb[0].mxu0
    %1470 = vmatprep.mubr.f32.mxu0 0.0
    %1471 = vmatmul.mubr.f32.gmra.mrb[0].mxu0 %v1199
    %v1472 = vpop.f32.mrb[0].mxu0
    %v1473 = vadd.f32 %v1100, %v1472
    %v1474 = vpop.f32.mrb[0].mxu0
    %1475 = vmatprep.mubr.f32.mxu0 0.0
    %1476 = vmatmul.mubr.f32.gmra.mrb[0].mxu0 %v1202
    %v1477 = vpop.f32.mrb[0].mxu0
    %v1478 = vadd.f32 %v1100, %v1477
    %v1479 = vpop.f32.mrb[0].mxu0
    %1480 = vmatprep.mubr.f32.mxu0 0.0
    %1481 = vmatmul.mubr.f32.gmra.mrb[0].mxu0 %v1205
    %v1482 = vpop.f32.mrb[0].mxu0
    %v1483 = vadd.f32 %v1100, %v1482
    %v1484 = vpop.f32.mrb[0].mxu0
    %1485 = vmatprep.mubr.f32.mxu0 0.0
    %1486 = vmatmul.mubr.f32.gmra.mrb[0].mxu0 %v1208
    %v1487 = vpop.f32.mrb[0].mxu0
    %v1488 = vadd.f32 %v1100, %v1487
    %v1489 = vpop.f32.mrb[0].mxu0
    %1490 = vmatprep.mubr.f32.mxu0 0.0
    %1491 = vmatmul.mubr.f32.gmra.mrb[0].mxu0 %v1211
    %v1492 = vpop.f32.mrb[0].mxu0
    %v1493 = vadd.f32 %v1100, %v1492
    %v1494 = vpop.f32.mrb[0].mxu0
    %1495 = vmatprep.mubr.f32.mxu0 0.0
    %1496 = vmatmul.mubr.f32.gmra.mrb[0].mxu0 %v1214
    %v1497 = vpop.f32.mrb[0].mxu0
    %v1498 = vadd.f32 %v1100, %v1497
    %v1499 = vpop.f32.mrb[0].mxu0
    %1500 = vmatprep.mubr.f32.mxu0 0.0
    %1501 = vmatmul.mubr.f32.gmra.mrb[0].mxu0 %v1217
    %v1502 = vpop.f32.mrb[0].mxu0
    %v1503 = vadd.f32 %v1100, %v1502
    %v1504 = vpop.f32.mrb[0].mxu0
    %1505 = vmatprep.mubr.f32.mxu0 0.0
    %1506 = vmatmul.mubr.f32.gmra.mrb[0].mxu0 %v1220
    %v1507 = vpop.f32.mrb[0].mxu0
    %v1508 = vadd.f32 %v1100, %v1507
    %v1509 = vpop.f32.mrb[0].mxu0
    %1510 = vmatprep.mubr.f32.mxu0 0.0
    %1511 = vmatmul.mubr.f32.gmra.mrb[0].mxu0 %v1223
    %v1512 = vpop.f32.mrb[0].mxu0
    %v1513 = vadd.f32 %v1100, %v1512
    %v1514 = vpop.f32.mrb[0].mxu0
    %1515 = vmatprep.mubr.f32.mxu0 0.0
    %1516 = vmatmul.mubr.f32.gmra.mrb[0].mxu0 %v1226
    %v1517 = vpop.f32.mrb[0].mxu0
    %v1518 = vadd.f32 %v1100, %v1517
    %v1519 = vpop.f32.mrb[0].mxu0
    %1520 = vmatprep.mubr.f32.mxu0 0.0
    %1521 = vmatmul.mubr.f32.gmra.mrb[0].mxu0 %v1229
    %v1522 = vpop.f32.mrb[0].mxu0
    %v1523 = vadd.f32 %v1100, %v1522
    %v1524 = vpop.f32.mrb[0].mxu0
    %1525 = vmatprep.mubr.f32.mxu0 0.0
    %1526 = vmatmul.mubr.f32.gmra.mrb[0].mxu0 %v1232
    %v1527 = vpop.f32.mrb[0].mxu0
    %v1528 = vadd.f32 %v1100, %v1527
    %v1529 = vpop.f32.mrb[0].mxu0
    %1530 = vmatprep.mubr.f32.mxu0 0.0
    %1531 = vmatmul.mubr.f32.gmra.mrb[0].mxu0 %v1235
    %v1532 = vpop.f32.mrb[0].mxu0
    %v1533 = vadd.f32 %v1100, %v1532
    %v1534 = vpop.f32.mrb[0].mxu0
    %1535 = vmatprep.mubr.f32.mxu0 0.0
    %1536 = vmatmul.mubr.f32.gmra.mrb[0].mxu0 %v1238
    %v1537 = vpop.f32.mrb[0].mxu0
    %v1538 = vadd.f32 %v1100, %v1537
    %v1539 = vpop.f32.mrb[0].mxu0
    %1540 = vmatprep.mubr.f32.mxu0 0.0
    %1541 = vmatmul.mubr.f32.gmra.mrb[0].mxu0 %v1241
    %v1542 = vpop.f32.mrb[0].mxu0
    %v1543 = vadd.f32 %v1100, %v1542
    %v1544 = vpop.f32.mrb[0].mxu0
    %1545 = vmatprep.mubr.f32.mxu0 0.0
    %1546 = vmatmul.mubr.f32.gmra.mrb[0].mxu0 %v1244
    %v1547 = vpop.f32.mrb[0].mxu0
    %v1548 = vadd.f32 %v1100, %v1547
    %v1549 = vpop.f32.mrb[0].mxu0
    %1550 = vdwg.mxu0
    %v1551 = vmax.f32 %v1313, 0.0
    %v1552 = vmax.f32 %v1318, 0.0
    %v1553 = vmax.f32 %v1323, 0.0
    %v1554 = vmax.f32 %v1328, 0.0
    %v1555 = vmax.f32 %v1333, 0.0
    %v1556 = vmax.f32 %v1338, 0.0
    %v1557 = vmax.f32 %v1343, 0.0
    %v1558 = vmax.f32 %v1348, 0.0
    %v1559 = vmax.f32 %v1353, 0.0
    %v1560 = vmax.f32 %v1358, 0.0
    %v1561 = vmax.f32 %v1363, 0.0
    %v1562 = vmax.f32 %v1368, 0.0
    %v1563 = vmax.f32 %v1373, 0.0
    %v1564 = vmax.f32 %v1378, 0.0
    %v1565 = vmax.f32 %v1383, 0.0
    %v1566 = vmax.f32 %v1388, 0.0
    %v1567 = vmax.f32 %v1393, 0.0
    %v1568 = vmax.f32 %v1398, 0.0
    %v1569 = vmax.f32 %v1403, 0.0
    %v1570 = vmax.f32 %v1408, 0.0
    %v1571 = vmax.f32 %v1413, 0.0
    %v1572 = vmax.f32 %v1418, 0.0
    %v1573 = vmax.f32 %v1423, 0.0
    %v1574 = vmax.f32 %v1428, 0.0
    %v1575 = vmax.f32 %v1433, 0.0
    %v1576 = vmax.f32 %v1438, 0.0
    %v1577 = vmax.f32 %v1443, 0.0
    %v1578 = vmax.f32 %v1448, 0.0
    %v1579 = vmax.f32 %v1453, 0.0
    %v1580 = vmax.f32 %v1458, 0.0
    %v1581 = vmax.f32 %v1463, 0.0
    %v1582 = vmax.f32 %v1468, 0.0
    %v1583 = vmax.f32 %v1473, 0.0
    %v1584 = vmax.f32 %v1478, 0.0
    %v1585 = vmax.f32 %v1483, 0.0
    %v1586 = vmax.f32 %v1488, 0.0
    %v1587 = vmax.f32 %v1493, 0.0
    %v1588 = vmax.f32 %v1498, 0.0
    %v1589 = vmax.f32 %v1503, 0.0
    %v1590 = vmax.f32 %v1508, 0.0
    %v1591 = vmax.f32 %v1513, 0.0
    %v1592 = vmax.f32 %v1518, 0.0
    %v1593 = vmax.f32 %v1523, 0.0
    %v1594 = vmax.f32 %v1528, 0.0
    %v1595 = vmax.f32 %v1533, 0.0
    %v1596 = vmax.f32 %v1538, 0.0
    %v1597 = vmax.f32 %v1543, 0.0
    %v1598 = vmax.f32 %v1548, 0.0
    %v1599 = vlaneseq
    %v1600 = vand.u32 %v1599, 127
    %vm1601 = vcmp.lt.s32.totalorder %v1600, 10
    %v1602 = vsel %vm1601, %v1551, -1e+30
    %v1603 = vsel %vm1601, %v1552, -1e+30
    %v1604 = vsel %vm1601, %v1553, -1e+30
    %v1605 = vsel %vm1601, %v1554, -1e+30
    %v1606 = vsel %vm1601, %v1555, -1e+30
    %v1607 = vsel %vm1601, %v1556, -1e+30
    %v1608 = vsel %vm1601, %v1557, -1e+30
    %v1609 = vsel %vm1601, %v1558, -1e+30
    %v1610 = vsel %vm1601, %v1559, -1e+30
    %v1611 = vsel %vm1601, %v1560, -1e+30
    %v1612 = vsel %vm1601, %v1561, -1e+30
    %v1613 = vsel %vm1601, %v1562, -1e+30
    %v1614 = vsel %vm1601, %v1563, -1e+30
    %v1615 = vsel %vm1601, %v1564, -1e+30
    %v1616 = vsel %vm1601, %v1565, -1e+30
    %v1617 = vsel %vm1601, %v1566, -1e+30
    %v1618 = vsel %vm1601, %v1567, -1e+30
    %v1619 = vsel %vm1601, %v1568, -1e+30
    %v1620 = vsel %vm1601, %v1569, -1e+30
    %v1621 = vsel %vm1601, %v1570, -1e+30
    %v1622 = vsel %vm1601, %v1571, -1e+30
    %v1623 = vsel %vm1601, %v1572, -1e+30
    %v1624 = vsel %vm1601, %v1573, -1e+30
    %v1625 = vsel %vm1601, %v1574, -1e+30
    %v1626 = vsel %vm1601, %v1575, -1e+30
    %v1627 = vsel %vm1601, %v1576, -1e+30
    %v1628 = vsel %vm1601, %v1577, -1e+30
    %v1629 = vsel %vm1601, %v1578, -1e+30
    %v1630 = vsel %vm1601, %v1579, -1e+30
    %v1631 = vsel %vm1601, %v1580, -1e+30
    %v1632 = vsel %vm1601, %v1581, -1e+30
    %v1633 = vsel %vm1601, %v1582, -1e+30
    %v1634 = vsel %vm1601, %v1583, -1e+30
    %v1635 = vsel %vm1601, %v1584, -1e+30
    %v1636 = vsel %vm1601, %v1585, -1e+30
    %v1637 = vsel %vm1601, %v1586, -1e+30
    %v1638 = vsel %vm1601, %v1587, -1e+30
    %v1639 = vsel %vm1601, %v1588, -1e+30
    %v1640 = vsel %vm1601, %v1589, -1e+30
    %v1641 = vsel %vm1601, %v1590, -1e+30
    %v1642 = vsel %vm1601, %v1591, -1e+30
    %v1643 = vsel %vm1601, %v1592, -1e+30
    %v1644 = vsel %vm1601, %v1593, -1e+30
    %v1645 = vsel %vm1601, %v1594, -1e+30
    %v1646 = vsel %vm1601, %v1595, -1e+30
    %v1647 = vsel %vm1601, %v1596, -1e+30
    %v1648 = vsel %vm1601, %v1597, -1e+30
    %v1649 = vsel %vm1601, %v1598, -1e+30
    %1650 = vmax.xlane.f32.xlu0 %v1602
    %v1651 = vpop.xlane.xlu0 %1650
    %1652 = vmax.xlane.f32.xlu0 %v1603
    %v1653 = vpop.xlane.xlu0 %1652
    %1654 = vmax.xlane.f32.xlu0 %v1604
    %v1655 = vpop.xlane.xlu0 %1654
    %1656 = vmax.xlane.f32.xlu0 %v1605
    %v1657 = vpop.xlane.xlu0 %1656
    %1658 = vmax.xlane.f32.xlu0 %v1606
    %v1659 = vpop.xlane.xlu0 %1658
    %1660 = vmax.xlane.f32.xlu0 %v1607
    %v1661 = vpop.xlane.xlu0 %1660
    %1662 = vmax.xlane.f32.xlu0 %v1608
    %v1663 = vpop.xlane.xlu0 %1662
    %1664 = vmax.xlane.f32.xlu0 %v1609
    %v1665 = vpop.xlane.xlu0 %1664
    %1666 = vmax.xlane.f32.xlu0 %v1610
    %v1667 = vpop.xlane.xlu0 %1666
    %1668 = vmax.xlane.f32.xlu0 %v1611
    %v1669 = vpop.xlane.xlu0 %1668
    %1670 = vmax.xlane.f32.xlu0 %v1612
    %v1671 = vpop.xlane.xlu0 %1670
    %1672 = vmax.xlane.f32.xlu0 %v1613
    %v1673 = vpop.xlane.xlu0 %1672
    %1674 = vmax.xlane.f32.xlu0 %v1614
    %v1675 = vpop.xlane.xlu0 %1674
    %1676 = vmax.xlane.f32.xlu0 %v1615
    %v1677 = vpop.xlane.xlu0 %1676
    %1678 = vmax.xlane.f32.xlu0 %v1616
    %v1679 = vpop.xlane.xlu0 %1678
    %1680 = vmax.xlane.f32.xlu0 %v1617
    %v1681 = vpop.xlane.xlu0 %1680
    %1682 = vmax.xlane.f32.xlu0 %v1618
    %v1683 = vpop.xlane.xlu0 %1682
    %1684 = vmax.xlane.f32.xlu0 %v1619
    %v1685 = vpop.xlane.xlu0 %1684
    %1686 = vmax.xlane.f32.xlu0 %v1620
    %v1687 = vpop.xlane.xlu0 %1686
    %1688 = vmax.xlane.f32.xlu0 %v1621
    %v1689 = vpop.xlane.xlu0 %1688
    %1690 = vmax.xlane.f32.xlu0 %v1622
    %v1691 = vpop.xlane.xlu0 %1690
    %1692 = vmax.xlane.f32.xlu0 %v1623
    %v1693 = vpop.xlane.xlu0 %1692
    %1694 = vmax.xlane.f32.xlu0 %v1624
    %v1695 = vpop.xlane.xlu0 %1694
    %1696 = vmax.xlane.f32.xlu0 %v1625
    %v1697 = vpop.xlane.xlu0 %1696
    %1698 = vmax.xlane.f32.xlu0 %v1626
    %v1699 = vpop.xlane.xlu0 %1698
    %1700 = vmax.xlane.f32.xlu0 %v1627
    %v1701 = vpop.xlane.xlu0 %1700
    %1702 = vmax.xlane.f32.xlu0 %v1628
    %v1703 = vpop.xlane.xlu0 %1702
    %1704 = vmax.xlane.f32.xlu0 %v1629
    %v1705 = vpop.xlane.xlu0 %1704
    %1706 = vmax.xlane.f32.xlu0 %v1630
    %v1707 = vpop.xlane.xlu0 %1706
    %1708 = vmax.xlane.f32.xlu0 %v1631
    %v1709 = vpop.xlane.xlu0 %1708
    %1710 = vmax.xlane.f32.xlu0 %v1632
    %v1711 = vpop.xlane.xlu0 %1710
    %1712 = vmax.xlane.f32.xlu0 %v1633
    %v1713 = vpop.xlane.xlu0 %1712
    %1714 = vmax.xlane.f32.xlu0 %v1634
    %v1715 = vpop.xlane.xlu0 %1714
    %1716 = vmax.xlane.f32.xlu0 %v1635
    %v1717 = vpop.xlane.xlu0 %1716
    %1718 = vmax.xlane.f32.xlu0 %v1636
    %v1719 = vpop.xlane.xlu0 %1718
    %1720 = vmax.xlane.f32.xlu0 %v1637
    %v1721 = vpop.xlane.xlu0 %1720
    %1722 = vmax.xlane.f32.xlu0 %v1638
    %v1723 = vpop.xlane.xlu0 %1722
    %1724 = vmax.xlane.f32.xlu0 %v1639
    %v1725 = vpop.xlane.xlu0 %1724
    %1726 = vmax.xlane.f32.xlu0 %v1640
    %v1727 = vpop.xlane.xlu0 %1726
    %1728 = vmax.xlane.f32.xlu0 %v1641
    %v1729 = vpop.xlane.xlu0 %1728
    %1730 = vmax.xlane.f32.xlu0 %v1642
    %v1731 = vpop.xlane.xlu0 %1730
    %1732 = vmax.xlane.f32.xlu0 %v1643
    %v1733 = vpop.xlane.xlu0 %1732
    %1734 = vmax.xlane.f32.xlu0 %v1644
    %v1735 = vpop.xlane.xlu0 %1734
    %1736 = vmax.xlane.f32.xlu0 %v1645
    %v1737 = vpop.xlane.xlu0 %1736
    %1738 = vmax.xlane.f32.xlu0 %v1646
    %v1739 = vpop.xlane.xlu0 %1738
    %1740 = vmax.xlane.f32.xlu0 %v1647
    %v1741 = vpop.xlane.xlu0 %1740
    %1742 = vmax.xlane.f32.xlu0 %v1648
    %v1743 = vpop.xlane.xlu0 %1742
    %1744 = vmax.xlane.f32.xlu0 %v1649
    %v1745 = vpop.xlane.xlu0 %1744
    %v1746 = vsub.f32 %v1602, %v1651
    %v1747 = vsub.f32 %v1603, %v1653
    %v1748 = vsub.f32 %v1604, %v1655
    %v1749 = vsub.f32 %v1605, %v1657
    %v1750 = vsub.f32 %v1606, %v1659
    %v1751 = vsub.f32 %v1607, %v1661
    %v1752 = vsub.f32 %v1608, %v1663
    %v1753 = vsub.f32 %v1609, %v1665
    %v1754 = vsub.f32 %v1610, %v1667
    %v1755 = vsub.f32 %v1611, %v1669
    %v1756 = vsub.f32 %v1612, %v1671
    %v1757 = vsub.f32 %v1613, %v1673
    %v1758 = vsub.f32 %v1614, %v1675
    %v1759 = vsub.f32 %v1615, %v1677
    %v1760 = vsub.f32 %v1616, %v1679
    %v1761 = vsub.f32 %v1617, %v1681
    %v1762 = vsub.f32 %v1618, %v1683
    %v1763 = vsub.f32 %v1619, %v1685
    %v1764 = vsub.f32 %v1620, %v1687
    %v1765 = vsub.f32 %v1621, %v1689
    %v1766 = vsub.f32 %v1622, %v1691
    %v1767 = vsub.f32 %v1623, %v1693
    %v1768 = vsub.f32 %v1624, %v1695
    %v1769 = vsub.f32 %v1625, %v1697
    %v1770 = vsub.f32 %v1626, %v1699
    %v1771 = vsub.f32 %v1627, %v1701
    %v1772 = vsub.f32 %v1628, %v1703
    %v1773 = vsub.f32 %v1629, %v1705
    %v1774 = vsub.f32 %v1630, %v1707
    %v1775 = vsub.f32 %v1631, %v1709
    %v1776 = vsub.f32 %v1632, %v1711
    %v1777 = vsub.f32 %v1633, %v1713
    %v1778 = vsub.f32 %v1634, %v1715
    %v1779 = vsub.f32 %v1635, %v1717
    %v1780 = vsub.f32 %v1636, %v1719
    %v1781 = vsub.f32 %v1637, %v1721
    %v1782 = vsub.f32 %v1638, %v1723
    %v1783 = vsub.f32 %v1639, %v1725
    %v1784 = vsub.f32 %v1640, %v1727
    %v1785 = vsub.f32 %v1641, %v1729
    %v1786 = vsub.f32 %v1642, %v1731
    %v1787 = vsub.f32 %v1643, %v1733
    %v1788 = vsub.f32 %v1644, %v1735
    %v1789 = vsub.f32 %v1645, %v1737
    %v1790 = vsub.f32 %v1646, %v1739
    %v1791 = vsub.f32 %v1647, %v1741
    %v1792 = vsub.f32 %v1648, %v1743
    %v1793 = vsub.f32 %v1649, %v1745
    %v1794 = vmul.f32 %v1746, 1.442695
    %v1795 = vpow.pop %v1794
    %v1796 = vmul.f32 %v1747, 1.442695
    %v1797 = vpow.pop %v1796
    %v1798 = vmul.f32 %v1748, 1.442695
    %v1799 = vpow.pop %v1798
    %v1800 = vmul.f32 %v1749, 1.442695
    %v1801 = vpow.pop %v1800
    %v1802 = vmul.f32 %v1750, 1.442695
    %v1803 = vpow.pop %v1802
    %v1804 = vmul.f32 %v1751, 1.442695
    %v1805 = vpow.pop %v1804
    %v1806 = vmul.f32 %v1752, 1.442695
    %v1807 = vpow.pop %v1806
    %v1808 = vmul.f32 %v1753, 1.442695
    %v1809 = vpow.pop %v1808
    %v1810 = vmul.f32 %v1754, 1.442695
    %v1811 = vpow.pop %v1810
    %v1812 = vmul.f32 %v1755, 1.442695
    %v1813 = vpow.pop %v1812
    %v1814 = vmul.f32 %v1756, 1.442695
    %v1815 = vpow.pop %v1814
    %v1816 = vmul.f32 %v1757, 1.442695
    %v1817 = vpow.pop %v1816
    %v1818 = vmul.f32 %v1758, 1.442695
    %v1819 = vpow.pop %v1818
    %v1820 = vmul.f32 %v1759, 1.442695
    %v1821 = vpow.pop %v1820
    %v1822 = vmul.f32 %v1760, 1.442695
    %v1823 = vpow.pop %v1822
    %v1824 = vmul.f32 %v1761, 1.442695
    %v1825 = vpow.pop %v1824
    %v1826 = vmul.f32 %v1762, 1.442695
    %v1827 = vpow.pop %v1826
    %v1828 = vmul.f32 %v1763, 1.442695
    %v1829 = vpow.pop %v1828
    %v1830 = vmul.f32 %v1764, 1.442695
    %v1831 = vpow.pop %v1830
    %v1832 = vmul.f32 %v1765, 1.442695
    %v1833 = vpow.pop %v1832
    %v1834 = vmul.f32 %v1766, 1.442695
    %v1835 = vpow.pop %v1834
    %v1836 = vmul.f32 %v1767, 1.442695
    %v1837 = vpow.pop %v1836
    %v1838 = vmul.f32 %v1768, 1.442695
    %v1839 = vpow.pop %v1838
    %v1840 = vmul.f32 %v1769, 1.442695
    %v1841 = vpow.pop %v1840
    %v1842 = vmul.f32 %v1770, 1.442695
    %v1843 = vpow.pop %v1842
    %v1844 = vmul.f32 %v1771, 1.442695
    %v1845 = vpow.pop %v1844
    %v1846 = vmul.f32 %v1772, 1.442695
    %v1847 = vpow.pop %v1846
    %v1848 = vmul.f32 %v1773, 1.442695
    %v1849 = vpow.pop %v1848
    %v1850 = vmul.f32 %v1774, 1.442695
    %v1851 = vpow.pop %v1850
    %v1852 = vmul.f32 %v1775, 1.442695
    %v1853 = vpow.pop %v1852
    %v1854 = vmul.f32 %v1776, 1.442695
    %v1855 = vpow.pop %v1854
    %v1856 = vmul.f32 %v1777, 1.442695
    %v1857 = vpow.pop %v1856
    %v1858 = vmul.f32 %v1778, 1.442695
    %v1859 = vpow.pop %v1858
    %v1860 = vmul.f32 %v1779, 1.442695
    %v1861 = vpow.pop %v1860
    %v1862 = vmul.f32 %v1780, 1.442695
    %v1863 = vpow.pop %v1862
    %v1864 = vmul.f32 %v1781, 1.442695
    %v1865 = vpow.pop %v1864
    %v1866 = vmul.f32 %v1782, 1.442695
    %v1867 = vpow.pop %v1866
    %v1868 = vmul.f32 %v1783, 1.442695
    %v1869 = vpow.pop %v1868
    %v1870 = vmul.f32 %v1784, 1.442695
    %v1871 = vpow.pop %v1870
    %v1872 = vmul.f32 %v1785, 1.442695
    %v1873 = vpow.pop %v1872
    %v1874 = vmul.f32 %v1786, 1.442695
    %v1875 = vpow.pop %v1874
    %v1876 = vmul.f32 %v1787, 1.442695
    %v1877 = vpow.pop %v1876
    %v1878 = vmul.f32 %v1788, 1.442695
    %v1879 = vpow.pop %v1878
    %v1880 = vmul.f32 %v1789, 1.442695
    %v1881 = vpow.pop %v1880
    %v1882 = vmul.f32 %v1790, 1.442695
    %v1883 = vpow.pop %v1882
    %v1884 = vmul.f32 %v1791, 1.442695
    %v1885 = vpow.pop %v1884
    %v1886 = vmul.f32 %v1792, 1.442695
    %v1887 = vpow.pop %v1886
    %v1888 = vmul.f32 %v1793, 1.442695
    %v1889 = vpow.pop %v1888
    %1890 = vadd.xlane.f32.xlu0 %v1795
    %v1891 = vpop.xlane.xlu0 %1890
    %1892 = vadd.xlane.f32.xlu0 %v1797
    %v1893 = vpop.xlane.xlu0 %1892
    %1894 = vadd.xlane.f32.xlu0 %v1799
    %v1895 = vpop.xlane.xlu0 %1894
    %1896 = vadd.xlane.f32.xlu0 %v1801
    %v1897 = vpop.xlane.xlu0 %1896
    %1898 = vadd.xlane.f32.xlu0 %v1803
    %v1899 = vpop.xlane.xlu0 %1898
    %1900 = vadd.xlane.f32.xlu0 %v1805
    %v1901 = vpop.xlane.xlu0 %1900
    %1902 = vadd.xlane.f32.xlu0 %v1807
    %v1903 = vpop.xlane.xlu0 %1902
    %1904 = vadd.xlane.f32.xlu0 %v1809
    %v1905 = vpop.xlane.xlu0 %1904
    %1906 = vadd.xlane.f32.xlu0 %v1811
    %v1907 = vpop.xlane.xlu0 %1906
    %1908 = vadd.xlane.f32.xlu0 %v1813
    %v1909 = vpop.xlane.xlu0 %1908
    %1910 = vadd.xlane.f32.xlu0 %v1815
    %v1911 = vpop.xlane.xlu0 %1910
    %1912 = vadd.xlane.f32.xlu0 %v1817
    %v1913 = vpop.xlane.xlu0 %1912
    %1914 = vadd.xlane.f32.xlu0 %v1819
    %v1915 = vpop.xlane.xlu0 %1914
    %1916 = vadd.xlane.f32.xlu0 %v1821
    %v1917 = vpop.xlane.xlu0 %1916
    %1918 = vadd.xlane.f32.xlu0 %v1823
    %v1919 = vpop.xlane.xlu0 %1918
    %1920 = vadd.xlane.f32.xlu0 %v1825
    %v1921 = vpop.xlane.xlu0 %1920
    %1922 = vadd.xlane.f32.xlu0 %v1827
    %v1923 = vpop.xlane.xlu0 %1922
    %1924 = vadd.xlane.f32.xlu0 %v1829
    %v1925 = vpop.xlane.xlu0 %1924
    %1926 = vadd.xlane.f32.xlu0 %v1831
    %v1927 = vpop.xlane.xlu0 %1926
    %1928 = vadd.xlane.f32.xlu0 %v1833
    %v1929 = vpop.xlane.xlu0 %1928
    %1930 = vadd.xlane.f32.xlu0 %v1835
    %v1931 = vpop.xlane.xlu0 %1930
    %1932 = vadd.xlane.f32.xlu0 %v1837
    %v1933 = vpop.xlane.xlu0 %1932
    %1934 = vadd.xlane.f32.xlu0 %v1839
    %v1935 = vpop.xlane.xlu0 %1934
    %1936 = vadd.xlane.f32.xlu0 %v1841
    %v1937 = vpop.xlane.xlu0 %1936
    %1938 = vadd.xlane.f32.xlu0 %v1843
    %v1939 = vpop.xlane.xlu0 %1938
    %1940 = vadd.xlane.f32.xlu0 %v1845
    %v1941 = vpop.xlane.xlu0 %1940
    %1942 = vadd.xlane.f32.xlu0 %v1847
    %v1943 = vpop.xlane.xlu0 %1942
    %1944 = vadd.xlane.f32.xlu0 %v1849
    %v1945 = vpop.xlane.xlu0 %1944
    %1946 = vadd.xlane.f32.xlu0 %v1851
    %v1947 = vpop.xlane.xlu0 %1946
    %1948 = vadd.xlane.f32.xlu0 %v1853
    %v1949 = vpop.xlane.xlu0 %1948
    %1950 = vadd.xlane.f32.xlu0 %v1855
    %v1951 = vpop.xlane.xlu0 %1950
    %1952 = vadd.xlane.f32.xlu0 %v1857
    %v1953 = vpop.xlane.xlu0 %1952
    %1954 = vadd.xlane.f32.xlu0 %v1859
    %v1955 = vpop.xlane.xlu0 %1954
    %1956 = vadd.xlane.f32.xlu0 %v1861
    %v1957 = vpop.xlane.xlu0 %1956
    %1958 = vadd.xlane.f32.xlu0 %v1863
    %v1959 = vpop.xlane.xlu0 %1958
    %1960 = vadd.xlane.f32.xlu0 %v1865
    %v1961 = vpop.xlane.xlu0 %1960
    %1962 = vadd.xlane.f32.xlu0 %v1867
    %v1963 = vpop.xlane.xlu0 %1962
    %1964 = vadd.xlane.f32.xlu0 %v1869
    %v1965 = vpop.xlane.xlu0 %1964
    %1966 = vadd.xlane.f32.xlu0 %v1871
    %v1967 = vpop.xlane.xlu0 %1966
    %1968 = vadd.xlane.f32.xlu0 %v1873
    %v1969 = vpop.xlane.xlu0 %1968
    %1970 = vadd.xlane.f32.xlu0 %v1875
    %v1971 = vpop.xlane.xlu0 %1970
    %1972 = vadd.xlane.f32.xlu0 %v1877
    %v1973 = vpop.xlane.xlu0 %1972
    %1974 = vadd.xlane.f32.xlu0 %v1879
    %v1975 = vpop.xlane.xlu0 %1974
    %1976 = vadd.xlane.f32.xlu0 %v1881
    %v1977 = vpop.xlane.xlu0 %1976
    %1978 = vadd.xlane.f32.xlu0 %v1883
    %v1979 = vpop.xlane.xlu0 %1978
    %1980 = vadd.xlane.f32.xlu0 %v1885
    %v1981 = vpop.xlane.xlu0 %1980
    %1982 = vadd.xlane.f32.xlu0 %v1887
    %v1983 = vpop.xlane.xlu0 %1982
    %1984 = vadd.xlane.f32.xlu0 %v1889
    %v1985 = vpop.xlane.xlu0 %1984
    %v1986 = vrcp.pop %v1891
    %v1987 = vrcp.pop %v1893
    %v1988 = vrcp.pop %v1895
    %v1989 = vrcp.pop %v1897
    %v1990 = vrcp.pop %v1899
    %v1991 = vrcp.pop %v1901
    %v1992 = vrcp.pop %v1903
    %v1993 = vrcp.pop %v1905
    %v1994 = vrcp.pop %v1907
    %v1995 = vrcp.pop %v1909
    %v1996 = vrcp.pop %v1911
    %v1997 = vrcp.pop %v1913
    %v1998 = vrcp.pop %v1915
    %v1999 = vrcp.pop %v1917
    %v2000 = vrcp.pop %v1919
    %v2001 = vrcp.pop %v1921
    %v2002 = vrcp.pop %v1923
    %v2003 = vrcp.pop %v1925
    %v2004 = vrcp.pop %v1927
    %v2005 = vrcp.pop %v1929
    %v2006 = vrcp.pop %v1931
    %v2007 = vrcp.pop %v1933
    %v2008 = vrcp.pop %v1935
    %v2009 = vrcp.pop %v1937
    %v2010 = vrcp.pop %v1939
    %v2011 = vrcp.pop %v1941
    %v2012 = vrcp.pop %v1943
    %v2013 = vrcp.pop %v1945
    %v2014 = vrcp.pop %v1947
    %v2015 = vrcp.pop %v1949
    %v2016 = vrcp.pop %v1951
    %v2017 = vrcp.pop %v1953
    %v2018 = vrcp.pop %v1955
    %v2019 = vrcp.pop %v1957
    %v2020 = vrcp.pop %v1959
    %v2021 = vrcp.pop %v1961
    %v2022 = vrcp.pop %v1963
    %v2023 = vrcp.pop %v1965
    %v2024 = vrcp.pop %v1967
    %v2025 = vrcp.pop %v1969
    %v2026 = vrcp.pop %v1971
    %v2027 = vrcp.pop %v1973
    %v2028 = vrcp.pop %v1975
    %v2029 = vrcp.pop %v1977
    %v2030 = vrcp.pop %v1979
    %v2031 = vrcp.pop %v1981
    %v2032 = vrcp.pop %v1983
    %v2033 = vrcp.pop %v1985
    %v2034 = vmul.f32 %v1891, %v1986
    %v2035 = vmul.f32 %v1893, %v1987
    %v2036 = vmul.f32 %v1895, %v1988
    %v2037 = vmul.f32 %v1897, %v1989
    %v2038 = vmul.f32 %v1899, %v1990
    %v2039 = vmul.f32 %v1901, %v1991
    %v2040 = vmul.f32 %v1903, %v1992
    %v2041 = vmul.f32 %v1905, %v1993
    %v2042 = vmul.f32 %v1907, %v1994
    %v2043 = vmul.f32 %v1909, %v1995
    %v2044 = vmul.f32 %v1911, %v1996
    %v2045 = vmul.f32 %v1913, %v1997
    %v2046 = vmul.f32 %v1915, %v1998
    %v2047 = vmul.f32 %v1917, %v1999
    %v2048 = vmul.f32 %v1919, %v2000
    %v2049 = vmul.f32 %v1921, %v2001
    %v2050 = vmul.f32 %v1923, %v2002
    %v2051 = vmul.f32 %v1925, %v2003
    %v2052 = vmul.f32 %v1927, %v2004
    %v2053 = vmul.f32 %v1929, %v2005
    %v2054 = vmul.f32 %v1931, %v2006
    %v2055 = vmul.f32 %v1933, %v2007
    %v2056 = vmul.f32 %v1935, %v2008
    %v2057 = vmul.f32 %v1937, %v2009
    %v2058 = vmul.f32 %v1939, %v2010
    %v2059 = vmul.f32 %v1941, %v2011
    %v2060 = vmul.f32 %v1943, %v2012
    %v2061 = vmul.f32 %v1945, %v2013
    %v2062 = vmul.f32 %v1947, %v2014
    %v2063 = vmul.f32 %v1949, %v2015
    %v2064 = vmul.f32 %v1951, %v2016
    %v2065 = vmul.f32 %v1953, %v2017
    %v2066 = vmul.f32 %v1955, %v2018
    %v2067 = vmul.f32 %v1957, %v2019
    %v2068 = vmul.f32 %v1959, %v2020
    %v2069 = vmul.f32 %v1961, %v2021
    %v2070 = vmul.f32 %v1963, %v2022
    %v2071 = vmul.f32 %v1965, %v2023
    %v2072 = vmul.f32 %v1967, %v2024
    %v2073 = vmul.f32 %v1969, %v2025
    %v2074 = vmul.f32 %v1971, %v2026
    %v2075 = vmul.f32 %v1973, %v2027
    %v2076 = vmul.f32 %v1975, %v2028
    %v2077 = vmul.f32 %v1977, %v2029
    %v2078 = vmul.f32 %v1979, %v2030
    %v2079 = vmul.f32 %v1981, %v2031
    %v2080 = vmul.f32 %v1983, %v2032
    %v2081 = vmul.f32 %v1985, %v2033
    %v2082 = vsub.f32 2.0, %v2034
    %v2083 = vsub.f32 2.0, %v2035
    %v2084 = vsub.f32 2.0, %v2036
    %v2085 = vsub.f32 2.0, %v2037
    %v2086 = vsub.f32 2.0, %v2038
    %v2087 = vsub.f32 2.0, %v2039
    %v2088 = vsub.f32 2.0, %v2040
    %v2089 = vsub.f32 2.0, %v2041
    %v2090 = vsub.f32 2.0, %v2042
    %v2091 = vsub.f32 2.0, %v2043
    %v2092 = vsub.f32 2.0, %v2044
    %v2093 = vsub.f32 2.0, %v2045
    %v2094 = vsub.f32 2.0, %v2046
    %v2095 = vsub.f32 2.0, %v2047
    %v2096 = vsub.f32 2.0, %v2048
    %v2097 = vsub.f32 2.0, %v2049
    %v2098 = vsub.f32 2.0, %v2050
    %v2099 = vsub.f32 2.0, %v2051
    %v2100 = vsub.f32 2.0, %v2052
    %v2101 = vsub.f32 2.0, %v2053
    %v2102 = vsub.f32 2.0, %v2054
    %v2103 = vsub.f32 2.0, %v2055
    %v2104 = vsub.f32 2.0, %v2056
    %v2105 = vsub.f32 2.0, %v2057
    %v2106 = vsub.f32 2.0, %v2058
    %v2107 = vsub.f32 2.0, %v2059
    %v2108 = vsub.f32 2.0, %v2060
    %v2109 = vsub.f32 2.0, %v2061
    %v2110 = vsub.f32 2.0, %v2062
    %v2111 = vsub.f32 2.0, %v2063
    %v2112 = vsub.f32 2.0, %v2064
    %v2113 = vsub.f32 2.0, %v2065
    %v2114 = vsub.f32 2.0, %v2066
    %v2115 = vsub.f32 2.0, %v2067
    %v2116 = vsub.f32 2.0, %v2068
    %v2117 = vsub.f32 2.0, %v2069
    %v2118 = vsub.f32 2.0, %v2070
    %v2119 = vsub.f32 2.0, %v2071
    %v2120 = vsub.f32 2.0, %v2072
    %v2121 = vsub.f32 2.0, %v2073
    %v2122 = vsub.f32 2.0, %v2074
    %v2123 = vsub.f32 2.0, %v2075
    %v2124 = vsub.f32 2.0, %v2076
    %v2125 = vsub.f32 2.0, %v2077
    %v2126 = vsub.f32 2.0, %v2078
    %v2127 = vsub.f32 2.0, %v2079
    %v2128 = vsub.f32 2.0, %v2080
    %v2129 = vsub.f32 2.0, %v2081
    %v2130 = vmul.f32 %v1986, %v2082
    %v2131 = vmul.f32 %v1987, %v2083
    %v2132 = vmul.f32 %v1988, %v2084
    %v2133 = vmul.f32 %v1989, %v2085
    %v2134 = vmul.f32 %v1990, %v2086
    %v2135 = vmul.f32 %v1991, %v2087
    %v2136 = vmul.f32 %v1992, %v2088
    %v2137 = vmul.f32 %v1993, %v2089
    %v2138 = vmul.f32 %v1994, %v2090
    %v2139 = vmul.f32 %v1995, %v2091
    %v2140 = vmul.f32 %v1996, %v2092
    %v2141 = vmul.f32 %v1997, %v2093
    %v2142 = vmul.f32 %v1998, %v2094
    %v2143 = vmul.f32 %v1999, %v2095
    %v2144 = vmul.f32 %v2000, %v2096
    %v2145 = vmul.f32 %v2001, %v2097
    %v2146 = vmul.f32 %v2002, %v2098
    %v2147 = vmul.f32 %v2003, %v2099
    %v2148 = vmul.f32 %v2004, %v2100
    %v2149 = vmul.f32 %v2005, %v2101
    %v2150 = vmul.f32 %v2006, %v2102
    %v2151 = vmul.f32 %v2007, %v2103
    %v2152 = vmul.f32 %v2008, %v2104
    %v2153 = vmul.f32 %v2009, %v2105
    %v2154 = vmul.f32 %v2010, %v2106
    %v2155 = vmul.f32 %v2011, %v2107
    %v2156 = vmul.f32 %v2012, %v2108
    %v2157 = vmul.f32 %v2013, %v2109
    %v2158 = vmul.f32 %v2014, %v2110
    %v2159 = vmul.f32 %v2015, %v2111
    %v2160 = vmul.f32 %v2016, %v2112
    %v2161 = vmul.f32 %v2017, %v2113
    %v2162 = vmul.f32 %v2018, %v2114
    %v2163 = vmul.f32 %v2019, %v2115
    %v2164 = vmul.f32 %v2020, %v2116
    %v2165 = vmul.f32 %v2021, %v2117
    %v2166 = vmul.f32 %v2022, %v2118
    %v2167 = vmul.f32 %v2023, %v2119
    %v2168 = vmul.f32 %v2024, %v2120
    %v2169 = vmul.f32 %v2025, %v2121
    %v2170 = vmul.f32 %v2026, %v2122
    %v2171 = vmul.f32 %v2027, %v2123
    %v2172 = vmul.f32 %v2028, %v2124
    %v2173 = vmul.f32 %v2029, %v2125
    %v2174 = vmul.f32 %v2030, %v2126
    %v2175 = vmul.f32 %v2031, %v2127
    %v2176 = vmul.f32 %v2032, %v2128
    %v2177 = vmul.f32 %v2033, %v2129
    %v2178 = vmul.f32 %v1795, %v2130
    %v2179 = vmul.f32 %v1797, %v2131
    %v2180 = vmul.f32 %v1799, %v2132
    %v2181 = vmul.f32 %v1801, %v2133
    %v2182 = vmul.f32 %v1803, %v2134
    %v2183 = vmul.f32 %v1805, %v2135
    %v2184 = vmul.f32 %v1807, %v2136
    %v2185 = vmul.f32 %v1809, %v2137
    %v2186 = vmul.f32 %v1811, %v2138
    %v2187 = vmul.f32 %v1813, %v2139
    %v2188 = vmul.f32 %v1815, %v2140
    %v2189 = vmul.f32 %v1817, %v2141
    %v2190 = vmul.f32 %v1819, %v2142
    %v2191 = vmul.f32 %v1821, %v2143
    %v2192 = vmul.f32 %v1823, %v2144
    %v2193 = vmul.f32 %v1825, %v2145
    %v2194 = vmul.f32 %v1827, %v2146
    %v2195 = vmul.f32 %v1829, %v2147
    %v2196 = vmul.f32 %v1831, %v2148
    %v2197 = vmul.f32 %v1833, %v2149
    %v2198 = vmul.f32 %v1835, %v2150
    %v2199 = vmul.f32 %v1837, %v2151
    %v2200 = vmul.f32 %v1839, %v2152
    %v2201 = vmul.f32 %v1841, %v2153
    %v2202 = vmul.f32 %v1843, %v2154
    %v2203 = vmul.f32 %v1845, %v2155
    %v2204 = vmul.f32 %v1847, %v2156
    %v2205 = vmul.f32 %v1849, %v2157
    %v2206 = vmul.f32 %v1851, %v2158
    %v2207 = vmul.f32 %v1853, %v2159
    %v2208 = vmul.f32 %v1855, %v2160
    %v2209 = vmul.f32 %v1857, %v2161
    %v2210 = vmul.f32 %v1859, %v2162
    %v2211 = vmul.f32 %v1861, %v2163
    %v2212 = vmul.f32 %v1863, %v2164
    %v2213 = vmul.f32 %v1865, %v2165
    %v2214 = vmul.f32 %v1867, %v2166
    %v2215 = vmul.f32 %v1869, %v2167
    %v2216 = vmul.f32 %v1871, %v2168
    %v2217 = vmul.f32 %v1873, %v2169
    %v2218 = vmul.f32 %v1875, %v2170
    %v2219 = vmul.f32 %v1877, %v2171
    %v2220 = vmul.f32 %v1879, %v2172
    %v2221 = vmul.f32 %v1881, %v2173
    %v2222 = vmul.f32 %v1883, %v2174
    %v2223 = vmul.f32 %v1885, %v2175
    %v2224 = vmul.f32 %v1887, %v2176
    %v2225 = vmul.f32 %v1889, %v2177
    %2226 = vst [vmem:[#allocation2] sm:$0xff] %v2178
    %2227 = vst [vmem:[#allocation2 + $0x8] sm:$0xff] %v2179
    %2228 = vst [vmem:[#allocation2 + $0x10] sm:$0xff] %v2180
    %2229 = vst [vmem:[#allocation2 + $0x18] sm:$0xff] %v2181
    %2230 = vst [vmem:[#allocation2 + $0x20] sm:$0xff] %v2182
    %2231 = vst [vmem:[#allocation2 + $0x28] sm:$0xff] %v2183
    %2232 = vst [vmem:[#allocation2 + $0x30] sm:$0xff] %v2184
    %2233 = vst [vmem:[#allocation2 + $0x38] sm:$0xff] %v2185
    %2234 = vst [vmem:[#allocation2 + $0x40] sm:$0xff] %v2186
    %2235 = vst [vmem:[#allocation2 + $0x48] sm:$0xff] %v2187
    %2236 = vst [vmem:[#allocation2 + $0x50] sm:$0xff] %v2188
    %2237 = vst [vmem:[#allocation2 + $0x58] sm:$0xff] %v2189
    %2238 = vst [vmem:[#allocation2 + $0x60] sm:$0xff] %v2190
    %2239 = vst [vmem:[#allocation2 + $0x68] sm:$0xff] %v2191
    %2240 = vst [vmem:[#allocation2 + $0x70] sm:$0xff] %v2192
    %2241 = vst [vmem:[#allocation2 + $0x78] sm:$0xff] %v2193
    %2242 = vst [vmem:[#allocation2 + $0x80] sm:$0xff] %v2194
    %2243 = vst [vmem:[#allocation2 + $0x88] sm:$0xff] %v2195
    %2244 = vst [vmem:[#allocation2 + $0x90] sm:$0xff] %v2196
    %2245 = vst [vmem:[#allocation2 + $0x98] sm:$0xff] %v2197
    %2246 = vst [vmem:[#allocation2 + $0xa0] sm:$0xff] %v2198
    %2247 = vst [vmem:[#allocation2 + $0xa8] sm:$0xff] %v2199
    %2248 = vst [vmem:[#allocation2 + $0xb0] sm:$0xff] %v2200
    %2249 = vst [vmem:[#allocation2 + $0xb8] sm:$0xff] %v2201
    %2250 = vst [vmem:[#allocation2 + $0xc0] sm:$0xff] %v2202
    %2251 = vst [vmem:[#allocation2 + $0xc8] sm:$0xff] %v2203
    %2252 = vst [vmem:[#allocation2 + $0xd0] sm:$0xff] %v2204
    %2253 = vst [vmem:[#allocation2 + $0xd8] sm:$0xff] %v2205
    %2254 = vst [vmem:[#allocation2 + $0xe0] sm:$0xff] %v2206
    %2255 = vst [vmem:[#allocation2 + $0xe8] sm:$0xff] %v2207
    %2256 = vst [vmem:[#allocation2 + $0xf0] sm:$0xff] %v2208
    %2257 = vst [vmem:[#allocation2 + $0xf8] sm:$0xff] %v2209
    %2258 = vst [vmem:[#allocation2 + $0x100] sm:$0xff] %v2210
    %2259 = vst [vmem:[#allocation2 + $0x108] sm:$0xff] %v2211
    %2260 = vst [vmem:[#allocation2 + $0x110] sm:$0xff] %v2212
    %2261 = vst [vmem:[#allocation2 + $0x118] sm:$0xff] %v2213
    %2262 = vst [vmem:[#allocation2 + $0x120] sm:$0xff] %v2214
    %2263 = vst [vmem:[#allocation2 + $0x128] sm:$0xff] %v2215
    %2264 = vst [vmem:[#allocation2 + $0x130] sm:$0xff] %v2216
    %2265 = vst [vmem:[#allocation2 + $0x138] sm:$0xff] %v2217
    %2266 = vst [vmem:[#allocation2 + $0x140] sm:$0xff] %v2218
    %2267 = vst [vmem:[#allocation2 + $0x148] sm:$0xff] %v2219
    %2268 = vst [vmem:[#allocation2 + $0x150] sm:$0xff] %v2220
    %2269 = vst [vmem:[#allocation2 + $0x158] sm:$0xff] %v2221
    %2270 = vst [vmem:[#allocation2 + $0x160] sm:$0xff] %v2222
    %2271 = vst [vmem:[#allocation2 + $0x168] sm:$0xff] %v2223
    %2272 = vst [vmem:[#allocation2 + $0x170] sm:$0xff] %v2224
    %2273 = vst [vmem:[#allocation2 + $0x178] sm:$0xff] %v2225
    // Predicated region
    $region30: #{tpu_custom_call.1} parent=1 // pred_check
      _
    $region31: #{tpu_custom_call.1} parent=1 // pred_check_branch
      %2275 = sbr.rel (0) target = $region33
    $region32: #{tpu_custom_call.1} parent=1 // pred_region
      %s2277 = ssub.s32 6144, 4864
      %2278 = vsyncadd [#allocation3], %s2277
      %s2279 = sshll.u32 [#allocation2], 4
      %s2280 = int_to_ptr.vmem [resolvable:$true] %s2279
      %2285 = dma.vmem_to_hbm [thread:$0]  %s2280, 4864, %s7, [#allocation3], 128, 128, 8
    $region33: #{tpu_custom_call.1} parent=1 // pred_fallthru
      _
    // Predicated region
    $region34: #{tpu_custom_call.1} parent=1 // pred_check
      _
    $region35: #{tpu_custom_call.1} parent=1 // pred_check_branch
      %2287 = sbr.rel (0) target = $region37
    $region36: #{tpu_custom_call.1} parent=1 // pred_region
      %2288 = dma.done [#allocation3], 6144
    $region37: #{tpu_custom_call.1} parent=1 // pred_fallthru
      _
    %2289 = vsyncpa [#allocation3], 1

// kernel: tpu_custom_call.1
$region0: #{tpu_custom_call.1}
  #allocation0 [shape = 'u32[]', space=smem, size = 0x4, offset = 0x4, fixed_abs, tag = 'smem constant byte address 0x4 - core index']
  #allocation1 [shape = 'u32[144,128]{1,0:T(1,128)}', space=vmem, size = 0x12000, scoped, tag = 'internal scratch']
  %s0 = inlined_call_operand.vmem [shape: f32[300,16], index: 0, kind: input, shape index: {}]
  %s1 = inlined_call_operand.vmem [shape: f32[16,32], index: 1, kind: input, shape index: {}]
  %s2 = inlined_call_operand.vmem [shape: f32[1,32], index: 2, kind: input, shape index: {}]
  %s3 = inlined_call_operand.vmem [shape: f32[32,32], index: 3, kind: input, shape index: {}]
  %s4 = inlined_call_operand.vmem [shape: f32[1,32], index: 4, kind: input, shape index: {}]
  %s5 = inlined_call_operand.vmem [shape: f32[32,128], index: 5, kind: input, shape index: {}]
  %s6 = inlined_call_operand.vmem [shape: f32[1,128], index: 6, kind: input, shape index: {}]
  %s7 = inlined_call_operand.hbm [shape: f32[300,128], index: 7, kind: output, shape index: {}]
  %s8 = sld [smem:[#allocation0]]
  $region38: #{tpu_custom_call.1} parent=0
    _
  %s10 = ssub.s32 1, %s8
  %s11 = scalar_select 0, %s10, %s8
  $region1: #{tpu_custom_call.1} parent=0
    #allocation2 [shape = 'u8[196608]{0}', space=vmem, size = 0x30000, scoped, tag = 'output window, operand 0, single buffered']
    #allocation3 [shape = 's32[1]{0}', space=sflag, size = 0x4, scoped, tag = 'scoped memory for tpu_custom_call.1']
    %12 = vsyncpa [#allocation3], 0
    // Predicated region
    $region2: #{tpu_custom_call.1} parent=1 // pred_check
      _
    $region3: #{tpu_custom_call.1} parent=1 // pred_check_branch
      %14 = sbr.rel (0) target = $region5
    $region4: #{tpu_custom_call.1} parent=1 // pred_region
      _
    $region5: #{tpu_custom_call.1} parent=1 // pred_fallthru
      _
    // Predicated region
    $region6: #{tpu_custom_call.1} parent=1 // pred_check
      _
    $region7: #{tpu_custom_call.1} parent=1 // pred_check_branch
      %16 = sbr.rel (0) target = $region9
    $region8: #{tpu_custom_call.1} parent=1 // pred_region
      _
    $region9: #{tpu_custom_call.1} parent=1 // pred_fallthru
      _
    // Predicated region
    $region10: #{tpu_custom_call.1} parent=1 // pred_check
      _
    $region11: #{tpu_custom_call.1} parent=1 // pred_check_branch
      %18 = sbr.rel (0) target = $region13
    $region12: #{tpu_custom_call.1} parent=1 // pred_region
      _
    $region13: #{tpu_custom_call.1} parent=1 // pred_fallthru
      _
    // Predicated region
    $region14: #{tpu_custom_call.1} parent=1 // pred_check
      _
    $region15: #{tpu_custom_call.1} parent=1 // pred_check_branch
      %20 = sbr.rel (0) target = $region17
    $region16: #{tpu_custom_call.1} parent=1 // pred_region
      _
    $region17: #{tpu_custom_call.1} parent=1 // pred_fallthru
      _
    // Predicated region
    $region18: #{tpu_custom_call.1} parent=1 // pred_check
      _
    $region19: #{tpu_custom_call.1} parent=1 // pred_check_branch
      %22 = sbr.rel (0) target = $region21
    $region20: #{tpu_custom_call.1} parent=1 // pred_region
      _
    $region21: #{tpu_custom_call.1} parent=1 // pred_fallthru
      _
    // Predicated region
    $region22: #{tpu_custom_call.1} parent=1 // pred_check
      _
    $region23: #{tpu_custom_call.1} parent=1 // pred_check_branch
      %24 = sbr.rel (0) target = $region25
    $region24: #{tpu_custom_call.1} parent=1 // pred_region
      _
    $region25: #{tpu_custom_call.1} parent=1 // pred_fallthru
      _
    // Predicated region
    $region26: #{tpu_custom_call.1} parent=1 // pred_check
      _
    $region27: #{tpu_custom_call.1} parent=1 // pred_check_branch
      %26 = sbr.rel (0) target = $region29
    $region28: #{tpu_custom_call.1} parent=1 // pred_region
      _
    $region29: #{tpu_custom_call.1} parent=1 // pred_fallthru
      _
    %v27 = vld [vmem:[%s0] sm:$0xff]
    %v28 = vld [vmem:[%s0 + $0x8] sm:$0xff]
    %v29 = vld [vmem:[%s0 + $0x10] sm:$0xff]
    %v30 = vld [vmem:[%s0 + $0x18] sm:$0xff]
    %v31 = vld [vmem:[%s0 + $0x20] sm:$0xff]
    %v32 = vld [vmem:[%s0 + $0x28] sm:$0xff]
    %v33 = vld [vmem:[%s0 + $0x30] sm:$0xff]
    %v34 = vld [vmem:[%s0 + $0x38] sm:$0xff]
    %v35 = vld [vmem:[%s0 + $0x40] sm:$0xff]
    %v36 = vld [vmem:[%s0 + $0x48] sm:$0xff]
    %v37 = vld [vmem:[%s0 + $0x50] sm:$0xff]
    %v38 = vld [vmem:[%s0 + $0x58] sm:$0xff]
    %v39 = vld [vmem:[%s0 + $0x60] sm:$0xff]
    %v40 = vld [vmem:[%s0 + $0x68] sm:$0xff]
    %v41 = vld [vmem:[%s0 + $0x70] sm:$0xff]
    %v42 = vld [vmem:[%s0 + $0x78] sm:$0xff]
    %v43 = vld [vmem:[%s0 + $0x80] sm:$0xff]
    %v44 = vld [vmem:[%s0 + $0x88] sm:$0xff]
    %v45 = vld [vmem:[%s0 + $0x90] sm:$0xff]
    %v46 = vld [vmem:[%s0 + $0x98] sm:$0xff]
    %v47 = vld [vmem:[%s0 + $0xa0] sm:$0xff]
    %v48 = vld [vmem:[%s0 + $0xa8] sm:$0xff]
    %v49 = vld [vmem:[%s0 + $0xb0] sm:$0xff]
    %v50 = vld [vmem:[%s0 + $0xb8] sm:$0xff]
    %v51 = vld [vmem:[%s0 + $0xc0] sm:$0xff]
    %v52 = vld [vmem:[%s0 + $0xc8] sm:$0xff]
    %v53 = vld [vmem:[%s0 + $0xd0] sm:$0xff]
    %v54 = vld [vmem:[%s0 + $0xd8] sm:$0xff]
    %v55 = vld [vmem:[%s0 + $0xe0] sm:$0xff]
    %v56 = vld [vmem:[%s0 + $0xe8] sm:$0xff]
    %v57 = vld [vmem:[%s0 + $0xf0] sm:$0xff]
    %v58 = vld [vmem:[%s0 + $0xf8] sm:$0xff]
    %v59 = vld [vmem:[%s0 + $0x100] sm:$0xff]
    %v60 = vld [vmem:[%s0 + $0x108] sm:$0xff]
    %v61 = vld [vmem:[%s0 + $0x110] sm:$0xff]
    %v62 = vld [vmem:[%s0 + $0x118] sm:$0xff]
    %v63 = vld [vmem:[%s0 + $0x120] sm:$0xff]
    %v64 = vld [vmem:[%s0 + $0x128] sm:$0xff]
    %v65 = vld [vmem:[%s0 + $0x130] sm:$0xff]
    %v66 = vld [vmem:[%s0 + $0x138] sm:$0xff]
    %v67 = vld [vmem:[%s0 + $0x140] sm:$0xff]
    %v68 = vld [vmem:[%s0 + $0x148] sm:$0xff]
    %v69 = vld [vmem:[%s0 + $0x150] sm:$0xff]
    %v70 = vld [vmem:[%s0 + $0x158] sm:$0xff]
    %v71 = vld [vmem:[%s0 + $0x160] sm:$0xff]
    %v72 = vld [vmem:[%s0 + $0x168] sm:$0xff]
    %v73 = vld [vmem:[%s0 + $0x170] sm:$0xff]
    %v74 = vld [vmem:[%s0 + $0x178] sm:$0xff]
    %v75 = vld [vmem:[%s1] sm:$0xff]
    %v76 = vld [vmem:[%s1 + $0x8] sm:$0xff]
    %v77 = vld [vmem:[%s2] sm:$0x1]
    %v79 = vlaneseq
    %v80 = vshrl.u32 %v79, 7
    %v81 = vsub.s32 0, %v80
    %v82 = vrot.slane %v77, %v81
    %vm84 = vcmask 130048
    %v86 = vsel %vm84, %v27, 0
    %v89 = vsel %vm84, %v28, 0
    %v92 = vsel %vm84, %v29, 0
    %v95 = vsel %vm84, %v30, 0
    %v98 = vsel %vm84, %v31, 0
    %v101 = vsel %vm84, %v32, 0
    %v104 = vsel %vm84, %v33, 0
    %v107 = vsel %vm84, %v34, 0
    %v110 = vsel %vm84, %v35, 0
    %v113 = vsel %vm84, %v36, 0
    %v116 = vsel %vm84, %v37, 0
    %v119 = vsel %vm84, %v38, 0
    %v122 = vsel %vm84, %v39, 0
    %v125 = vsel %vm84, %v40, 0
    %v128 = vsel %vm84, %v41, 0
    %v131 = vsel %vm84, %v42, 0
    %v134 = vsel %vm84, %v43, 0
    %v137 = vsel %vm84, %v44, 0
    %v140 = vsel %vm84, %v45, 0
    %v143 = vsel %vm84, %v46, 0
    %v146 = vsel %vm84, %v47, 0
    %v149 = vsel %vm84, %v48, 0
    %v152 = vsel %vm84, %v49, 0
    %v155 = vsel %vm84, %v50, 0
    %v158 = vsel %vm84, %v51, 0
    %v161 = vsel %vm84, %v52, 0
    %v164 = vsel %vm84, %v53, 0
    %v167 = vsel %vm84, %v54, 0
    %v170 = vsel %vm84, %v55, 0
    %v173 = vsel %vm84, %v56, 0
    %v176 = vsel %vm84, %v57, 0
    %v179 = vsel %vm84, %v58, 0
    %v182 = vsel %vm84, %v59, 0
    %v185 = vsel %vm84, %v60, 0
    %v188 = vsel %vm84, %v61, 0
    %v191 = vsel %vm84, %v62, 0
    %v194 = vsel %vm84, %v63, 0
    %v197 = vsel %vm84, %v64, 0
    %v200 = vsel %vm84, %v65, 0
    %v203 = vsel %vm84, %v66, 0
    %v206 = vsel %vm84, %v67, 0
    %v209 = vsel %vm84, %v68, 0
    %v212 = vsel %vm84, %v69, 0
    %v215 = vsel %vm84, %v70, 0
    %v218 = vsel %vm84, %v71, 0
    %v221 = vsel %vm84, %v72, 0
    %v224 = vsel %vm84, %v73, 0
    %v227 = vsel %vm84, %v74, 0
    %229 = vmatprep.subr.mxu0 0.0
    %230 = vmatpush1.msra.mxu0 %v75
    %231 = vmatprep.subr.mxu0 0.0
    %232 = vmatpush1.msra.mxu0 %v76
    %233 = vmatprep.subr.mxu0 0.0
    %234 = vmatpush1.msra.mxu0 0.0
    %235 = vmatprep.subr.mxu0 0.0
    %236 = vmatpush1.msra.mxu0 0.0
    %237 = vmatprep.subr.mxu0 0.0
    %238 = vmatpush1.msra.mxu0 0.0
    %239 = vmatprep.subr.mxu0 0.0
    %240 = vmatpush1.msra.mxu0 0.0
    %241 = vmatprep.subr.mxu0 0.0
    %242 = vmatpush1.msra.mxu0 0.0
    %243 = vmatprep.subr.mxu0 0.0
    %244 = vmatpush1.msra.mxu0 0.0
    %245 = vmatprep.subr.mxu0 0.0
    %246 = vmatpush1.msra.mxu0 0.0
    %247 = vmatprep.subr.mxu0 0.0
    %248 = vmatpush1.msra.mxu0 0.0
    %249 = vmatprep.subr.mxu0 0.0
    %250 = vmatpush1.msra.mxu0 0.0
    %251 = vmatprep.subr.mxu0 0.0
    %252 = vmatpush1.msra.mxu0 0.0
    %253 = vmatprep.subr.mxu0 0.0
    %254 = vmatpush1.msra.mxu0 0.0
    %255 = vmatprep.subr.mxu0 0.0
    %256 = vmatpush1.msra.mxu0 0.0
    %257 = vmatprep.subr.mxu0 0.0
    %258 = vmatpush1.msra.mxu0 0.0
    %259 = vmatprep.subr.mxu0 0.0
    %260 = vmatpush1.msra.mxu0 0.0
    %261 = vmatprep.subr.mxu0 0.0
    %262 = vmatpush1.msra.mxu0 0.0
    %263 = vmatprep.subr.mxu0 0.0
    %264 = vmatpush1.msra.mxu0 0.0
    %265 = vmatprep.subr.mxu0 0.0
    %266 = vmatpush1.msra.mxu0 0.0
    %267 = vmatprep.subr.mxu0 0.0
    %268 = vmatpush1.msra.mxu0 0.0
    %269 = vmatprep.subr.mxu0 0.0
    %270 = vmatpush1.msra.mxu0 0.0
    %271 = vmatprep.subr.mxu0 0.0
    %272 = vmatpush1.msra.mxu0 0.0
    %273 = vmatprep.subr.mxu0 0.0
    %274 = vmatpush1.msra.mxu0 0.0
    %275 = vmatprep.subr.mxu0 0.0
    %276 = vmatpush1.msra.mxu0 0.0
    %277 = vmatprep.subr.mxu0 0.0
    %278 = vmatpush1.msra.mxu0 0.0
    %279 = vmatprep.subr.mxu0 0.0
    %280 = vmatpush1.msra.mxu0 0.0
    %281 = vmatprep.subr.mxu0 0.0
    %282 = vmatpush1.msra.mxu0 0.0
    %283 = vmatprep.subr.mxu0 0.0
    %284 = vmatpush1.msra.mxu0 0.0
    %285 = vmatprep.subr.mxu0 0.0
    %286 = vmatpush1.msra.mxu0 0.0
    %287 = vmatprep.subr.mxu0 0.0
    %288 = vmatpush1.msra.mxu0 0.0
    %289 = vmatprep.subr.mxu0 0.0
    %290 = vmatpush1.msra.mxu0 0.0
    %291 = vmatprep.subr.mxu0 0.0
    %292 = vmatpush1.msra.mxu0 0.0
    %293 = vmatprep.mubr.f32.mxu0 0.0
    %294 = vmatmul.mubr.f32.gmra.mrb[0].mxu0 %v86
    %v295 = vpop.f32.mrb[0].mxu0
    %v296 = vadd.f32 %v82, %v295
    %v297 = vpop.f32.mrb[0].mxu0
    %298 = vmatprep.mubr.f32.mxu0 0.0
    %299 = vmatmul.mubr.f32.gmra.mrb[0].mxu0 %v89
    %v300 = vpop.f32.mrb[0].mxu0
    %v301 = vadd.f32 %v82, %v300
    %v302 = vpop.f32.mrb[0].mxu0
    %303 = vmatprep.mubr.f32.mxu0 0.0
    %304 = vmatmul.mubr.f32.gmra.mrb[0].mxu0 %v92
    %v305 = vpop.f32.mrb[0].mxu0
    %v306 = vadd.f32 %v82, %v305
    %v307 = vpop.f32.mrb[0].mxu0
    %308 = vmatprep.mubr.f32.mxu0 0.0
    %309 = vmatmul.mubr.f32.gmra.mrb[0].mxu0 %v95
    %v310 = vpop.f32.mrb[0].mxu0
    %v311 = vadd.f32 %v82, %v310
    %v312 = vpop.f32.mrb[0].mxu0
    %313 = vmatprep.mubr.f32.mxu0 0.0
    %314 = vmatmul.mubr.f32.gmra.mrb[0].mxu0 %v98
    %v315 = vpop.f32.mrb[0].mxu0
    %v316 = vadd.f32 %v82, %v315
    %v317 = vpop.f32.mrb[0].mxu0
    %318 = vmatprep.mubr.f32.mxu0 0.0
    %319 = vmatmul.mubr.f32.gmra.mrb[0].mxu0 %v101
    %v320 = vpop.f32.mrb[0].mxu0
    %v321 = vadd.f32 %v82, %v320
    %v322 = vpop.f32.mrb[0].mxu0
    %323 = vmatprep.mubr.f32.mxu0 0.0
    %324 = vmatmul.mubr.f32.gmra.mrb[0].mxu0 %v104
    %v325 = vpop.f32.mrb[0].mxu0
    %v326 = vadd.f32 %v82, %v325
    %v327 = vpop.f32.mrb[0].mxu0
    %328 = vmatprep.mubr.f32.mxu0 0.0
    %329 = vmatmul.mubr.f32.gmra.mrb[0].mxu0 %v107
    %v330 = vpop.f32.mrb[0].mxu0
    %v331 = vadd.f32 %v82, %v330
    %v332 = vpop.f32.mrb[0].mxu0
    %333 = vmatprep.mubr.f32.mxu0 0.0
    %334 = vmatmul.mubr.f32.gmra.mrb[0].mxu0 %v110
    %v335 = vpop.f32.mrb[0].mxu0
    %v336 = vadd.f32 %v82, %v335
    %v337 = vpop.f32.mrb[0].mxu0
    %338 = vmatprep.mubr.f32.mxu0 0.0
    %339 = vmatmul.mubr.f32.gmra.mrb[0].mxu0 %v113
    %v340 = vpop.f32.mrb[0].mxu0
    %v341 = vadd.f32 %v82, %v340
    %v342 = vpop.f32.mrb[0].mxu0
    %343 = vmatprep.mubr.f32.mxu0 0.0
    %344 = vmatmul.mubr.f32.gmra.mrb[0].mxu0 %v116
    %v345 = vpop.f32.mrb[0].mxu0
    %v346 = vadd.f32 %v82, %v345
    %v347 = vpop.f32.mrb[0].mxu0
    %348 = vmatprep.mubr.f32.mxu0 0.0
    %349 = vmatmul.mubr.f32.gmra.mrb[0].mxu0 %v119
    %v350 = vpop.f32.mrb[0].mxu0
    %v351 = vadd.f32 %v82, %v350
    %v352 = vpop.f32.mrb[0].mxu0
    %353 = vmatprep.mubr.f32.mxu0 0.0
    %354 = vmatmul.mubr.f32.gmra.mrb[0].mxu0 %v122
    %v355 = vpop.f32.mrb[0].mxu0
    %v356 = vadd.f32 %v82, %v355
    %v357 = vpop.f32.mrb[0].mxu0
    %358 = vmatprep.mubr.f32.mxu0 0.0
    %359 = vmatmul.mubr.f32.gmra.mrb[0].mxu0 %v125
    %v360 = vpop.f32.mrb[0].mxu0
    %v361 = vadd.f32 %v82, %v360
    %v362 = vpop.f32.mrb[0].mxu0
    %363 = vmatprep.mubr.f32.mxu0 0.0
    %364 = vmatmul.mubr.f32.gmra.mrb[0].mxu0 %v128
    %v365 = vpop.f32.mrb[0].mxu0
    %v366 = vadd.f32 %v82, %v365
    %v367 = vpop.f32.mrb[0].mxu0
    %368 = vmatprep.mubr.f32.mxu0 0.0
    %369 = vmatmul.mubr.f32.gmra.mrb[0].mxu0 %v131
    %v370 = vpop.f32.mrb[0].mxu0
    %v371 = vadd.f32 %v82, %v370
    %v372 = vpop.f32.mrb[0].mxu0
    %373 = vmatprep.mubr.f32.mxu0 0.0
    %374 = vmatmul.mubr.f32.gmra.mrb[0].mxu0 %v134
    %v375 = vpop.f32.mrb[0].mxu0
    %v376 = vadd.f32 %v82, %v375
    %v377 = vpop.f32.mrb[0].mxu0
    %378 = vmatprep.mubr.f32.mxu0 0.0
    %379 = vmatmul.mubr.f32.gmra.mrb[0].mxu0 %v137
    %v380 = vpop.f32.mrb[0].mxu0
    %v381 = vadd.f32 %v82, %v380
    %v382 = vpop.f32.mrb[0].mxu0
    %383 = vmatprep.mubr.f32.mxu0 0.0
    %384 = vmatmul.mubr.f32.gmra.mrb[0].mxu0 %v140
    %v385 = vpop.f32.mrb[0].mxu0
    %v386 = vadd.f32 %v82, %v385
    %v387 = vpop.f32.mrb[0].mxu0
    %388 = vmatprep.mubr.f32.mxu0 0.0
    %389 = vmatmul.mubr.f32.gmra.mrb[0].mxu0 %v143
    %v390 = vpop.f32.mrb[0].mxu0
    %v391 = vadd.f32 %v82, %v390
    %v392 = vpop.f32.mrb[0].mxu0
    %393 = vmatprep.mubr.f32.mxu0 0.0
    %394 = vmatmul.mubr.f32.gmra.mrb[0].mxu0 %v146
    %v395 = vpop.f32.mrb[0].mxu0
    %v396 = vadd.f32 %v82, %v395
    %v397 = vpop.f32.mrb[0].mxu0
    %398 = vmatprep.mubr.f32.mxu0 0.0
    %399 = vmatmul.mubr.f32.gmra.mrb[0].mxu0 %v149
    %v400 = vpop.f32.mrb[0].mxu0
    %v401 = vadd.f32 %v82, %v400
    %v402 = vpop.f32.mrb[0].mxu0
    %403 = vmatprep.mubr.f32.mxu0 0.0
    %404 = vmatmul.mubr.f32.gmra.mrb[0].mxu0 %v152
    %v405 = vpop.f32.mrb[0].mxu0
    %v406 = vadd.f32 %v82, %v405
    %v407 = vpop.f32.mrb[0].mxu0
    %408 = vmatprep.mubr.f32.mxu0 0.0
    %409 = vmatmul.mubr.f32.gmra.mrb[0].mxu0 %v155
    %v410 = vpop.f32.mrb[0].mxu0
    %v411 = vadd.f32 %v82, %v410
    %v412 = vpop.f32.mrb[0].mxu0
    %413 = vmatprep.mubr.f32.mxu0 0.0
    %414 = vmatmul.mubr.f32.gmra.mrb[0].mxu0 %v158
    %v415 = vpop.f32.mrb[0].mxu0
    %v416 = vadd.f32 %v82, %v415
    %v417 = vpop.f32.mrb[0].mxu0
    %418 = vmatprep.mubr.f32.mxu0 0.0
    %419 = vmatmul.mubr.f32.gmra.mrb[0].mxu0 %v161
    %v420 = vpop.f32.mrb[0].mxu0
    %v421 = vadd.f32 %v82, %v420
    %v422 = vpop.f32.mrb[0].mxu0
    %423 = vmatprep.mubr.f32.mxu0 0.0
    %424 = vmatmul.mubr.f32.gmra.mrb[0].mxu0 %v164
    %v425 = vpop.f32.mrb[0].mxu0
    %v426 = vadd.f32 %v82, %v425
    %v427 = vpop.f32.mrb[0].mxu0
    %428 = vmatprep.mubr.f32.mxu0 0.0
    %429 = vmatmul.mubr.f32.gmra.mrb[0].mxu0 %v167
    %v430 = vpop.f32.mrb[0].mxu0
    %v431 = vadd.f32 %v82, %v430
    %v432 = vpop.f32.mrb[0].mxu0
    %433 = vmatprep.mubr.f32.mxu0 0.0
    %434 = vmatmul.mubr.f32.gmra.mrb[0].mxu0 %v170
    %v435 = vpop.f32.mrb[0].mxu0
    %v436 = vadd.f32 %v82, %v435
    %v437 = vpop.f32.mrb[0].mxu0
    %438 = vmatprep.mubr.f32.mxu0 0.0
    %439 = vmatmul.mubr.f32.gmra.mrb[0].mxu0 %v173
    %v440 = vpop.f32.mrb[0].mxu0
    %v441 = vadd.f32 %v82, %v440
    %v442 = vpop.f32.mrb[0].mxu0
    %443 = vmatprep.mubr.f32.mxu0 0.0
    %444 = vmatmul.mubr.f32.gmra.mrb[0].mxu0 %v176
    %v445 = vpop.f32.mrb[0].mxu0
    %v446 = vadd.f32 %v82, %v445
    %v447 = vpop.f32.mrb[0].mxu0
    %448 = vmatprep.mubr.f32.mxu0 0.0
    %449 = vmatmul.mubr.f32.gmra.mrb[0].mxu0 %v179
    %v450 = vpop.f32.mrb[0].mxu0
    %v451 = vadd.f32 %v82, %v450
    %v452 = vpop.f32.mrb[0].mxu0
    %453 = vmatprep.mubr.f32.mxu0 0.0
    %454 = vmatmul.mubr.f32.gmra.mrb[0].mxu0 %v182
    %v455 = vpop.f32.mrb[0].mxu0
    %v456 = vadd.f32 %v82, %v455
    %v457 = vpop.f32.mrb[0].mxu0
    %458 = vmatprep.mubr.f32.mxu0 0.0
    %459 = vmatmul.mubr.f32.gmra.mrb[0].mxu0 %v185
    %v460 = vpop.f32.mrb[0].mxu0
    %v461 = vadd.f32 %v82, %v460
    %v462 = vpop.f32.mrb[0].mxu0
    %463 = vmatprep.mubr.f32.mxu0 0.0
    %464 = vmatmul.mubr.f32.gmra.mrb[0].mxu0 %v188
    %v465 = vpop.f32.mrb[0].mxu0
    %v466 = vadd.f32 %v82, %v465
    %v467 = vpop.f32.mrb[0].mxu0
    %468 = vmatprep.mubr.f32.mxu0 0.0
    %469 = vmatmul.mubr.f32.gmra.mrb[0].mxu0 %v191
    %v470 = vpop.f32.mrb[0].mxu0
    %v471 = vadd.f32 %v82, %v470
    %v472 = vpop.f32.mrb[0].mxu0
    %473 = vmatprep.mubr.f32.mxu0 0.0
    %474 = vmatmul.mubr.f32.gmra.mrb[0].mxu0 %v194
    %v475 = vpop.f32.mrb[0].mxu0
    %v476 = vadd.f32 %v82, %v475
    %v477 = vpop.f32.mrb[0].mxu0
    %478 = vmatprep.mubr.f32.mxu0 0.0
    %479 = vmatmul.mubr.f32.gmra.mrb[0].mxu0 %v197
    %v480 = vpop.f32.mrb[0].mxu0
    %v481 = vadd.f32 %v82, %v480
    %v482 = vpop.f32.mrb[0].mxu0
    %483 = vmatprep.mubr.f32.mxu0 0.0
    %484 = vmatmul.mubr.f32.gmra.mrb[0].mxu0 %v200
    %v485 = vpop.f32.mrb[0].mxu0
    %v486 = vadd.f32 %v82, %v485
    %v487 = vpop.f32.mrb[0].mxu0
    %488 = vmatprep.mubr.f32.mxu0 0.0
    %489 = vmatmul.mubr.f32.gmra.mrb[0].mxu0 %v203
    %v490 = vpop.f32.mrb[0].mxu0
    %v491 = vadd.f32 %v82, %v490
    %v492 = vpop.f32.mrb[0].mxu0
    %493 = vmatprep.mubr.f32.mxu0 0.0
    %494 = vmatmul.mubr.f32.gmra.mrb[0].mxu0 %v206
    %v495 = vpop.f32.mrb[0].mxu0
    %v496 = vadd.f32 %v82, %v495
    %v497 = vpop.f32.mrb[0].mxu0
    %498 = vmatprep.mubr.f32.mxu0 0.0
    %499 = vmatmul.mubr.f32.gmra.mrb[0].mxu0 %v209
    %v500 = vpop.f32.mrb[0].mxu0
    %v501 = vadd.f32 %v82, %v500
    %v502 = vpop.f32.mrb[0].mxu0
    %503 = vmatprep.mubr.f32.mxu0 0.0
    %504 = vmatmul.mubr.f32.gmra.mrb[0].mxu0 %v212
    %v505 = vpop.f32.mrb[0].mxu0
    %v506 = vadd.f32 %v82, %v505
    %v507 = vpop.f32.mrb[0].mxu0
    %508 = vmatprep.mubr.f32.mxu0 0.0
    %509 = vmatmul.mubr.f32.gmra.mrb[0].mxu0 %v215
    %v510 = vpop.f32.mrb[0].mxu0
    %v511 = vadd.f32 %v82, %v510
    %v512 = vpop.f32.mrb[0].mxu0
    %513 = vmatprep.mubr.f32.mxu0 0.0
    %514 = vmatmul.mubr.f32.gmra.mrb[0].mxu0 %v218
    %v515 = vpop.f32.mrb[0].mxu0
    %v516 = vadd.f32 %v82, %v515
    %v517 = vpop.f32.mrb[0].mxu0
    %518 = vmatprep.mubr.f32.mxu0 0.0
    %519 = vmatmul.mubr.f32.gmra.mrb[0].mxu0 %v221
    %v520 = vpop.f32.mrb[0].mxu0
    %v521 = vadd.f32 %v82, %v520
    %v522 = vpop.f32.mrb[0].mxu0
    %523 = vmatprep.mubr.f32.mxu0 0.0
    %524 = vmatmul.mubr.f32.gmra.mrb[0].mxu0 %v224
    %v525 = vpop.f32.mrb[0].mxu0
    %v526 = vadd.f32 %v82, %v525
    %v527 = vpop.f32.mrb[0].mxu0
    %528 = vmatprep.mubr.f32.mxu0 0.0
    %529 = vmatmul.mubr.f32.gmra.mrb[0].mxu0 %v227
    %v530 = vpop.f32.mrb[0].mxu0
    %v531 = vadd.f32 %v82, %v530
    %v532 = vpop.f32.mrb[0].mxu0
    %533 = vdwg.mxu0
    %v534 = vmax.f32 %v296, 0.0
    %v535 = vmax.f32 %v301, 0.0
    %v536 = vmax.f32 %v306, 0.0
    %v537 = vmax.f32 %v311, 0.0
    %v538 = vmax.f32 %v316, 0.0
    %v539 = vmax.f32 %v321, 0.0
    %v540 = vmax.f32 %v326, 0.0
    %v541 = vmax.f32 %v331, 0.0
    %v542 = vmax.f32 %v336, 0.0
    %v543 = vmax.f32 %v341, 0.0
    %v544 = vmax.f32 %v346, 0.0
    %v545 = vmax.f32 %v351, 0.0
    %v546 = vmax.f32 %v356, 0.0
    %v547 = vmax.f32 %v361, 0.0
    %v548 = vmax.f32 %v366, 0.0
    %v549 = vmax.f32 %v371, 0.0
    %v550 = vmax.f32 %v376, 0.0
    %v551 = vmax.f32 %v381, 0.0
    %v552 = vmax.f32 %v386, 0.0
    %v553 = vmax.f32 %v391, 0.0
    %v554 = vmax.f32 %v396, 0.0
    %v555 = vmax.f32 %v401, 0.0
    %v556 = vmax.f32 %v406, 0.0
    %v557 = vmax.f32 %v411, 0.0
    %v558 = vmax.f32 %v416, 0.0
    %v559 = vmax.f32 %v421, 0.0
    %v560 = vmax.f32 %v426, 0.0
    %v561 = vmax.f32 %v431, 0.0
    %v562 = vmax.f32 %v436, 0.0
    %v563 = vmax.f32 %v441, 0.0
    %v564 = vmax.f32 %v446, 0.0
    %v565 = vmax.f32 %v451, 0.0
    %v566 = vmax.f32 %v456, 0.0
    %v567 = vmax.f32 %v461, 0.0
    %v568 = vmax.f32 %v466, 0.0
    %v569 = vmax.f32 %v471, 0.0
    %v570 = vmax.f32 %v476, 0.0
    %v571 = vmax.f32 %v481, 0.0
    %v572 = vmax.f32 %v486, 0.0
    %v573 = vmax.f32 %v491, 0.0
    %v574 = vmax.f32 %v496, 0.0
    %v575 = vmax.f32 %v501, 0.0
    %v576 = vmax.f32 %v506, 0.0
    %v577 = vmax.f32 %v511, 0.0
    %v578 = vmax.f32 %v516, 0.0
    %v579 = vmax.f32 %v521, 0.0
    %v580 = vmax.f32 %v526, 0.0
    %v581 = vmax.f32 %v531, 0.0
    %v582 = vld [vmem:[%s3] sm:$0xff]
    %v583 = vld [vmem:[%s3 + $0x8] sm:$0xff]
    %v584 = vld [vmem:[%s3 + $0x10] sm:$0xff]
    %v585 = vld [vmem:[%s3 + $0x18] sm:$0xff]
    %v586 = vld [vmem:[%s4] sm:$0x1]
    %v588 = vlaneseq
    %v589 = vshrl.u32 %v588, 7
    %v590 = vsub.s32 0, %v589
    %v591 = vrot.slane %v586, %v590
    %vm593 = vcmask 261120
    %v595 = vsel %vm593, %v534, 0
    %v598 = vsel %vm593, %v535, 0
    %v601 = vsel %vm593, %v536, 0
    %v604 = vsel %vm593, %v537, 0
    %v607 = vsel %vm593, %v538, 0
    %v610 = vsel %vm593, %v539, 0
    %v613 = vsel %vm593, %v540, 0
    %v616 = vsel %vm593, %v541, 0
    %v619 = vsel %vm593, %v542, 0
    %v622 = vsel %vm593, %v543, 0
    %v625 = vsel %vm593, %v544, 0
    %v628 = vsel %vm593, %v545, 0
    %v631 = vsel %vm593, %v546, 0
    %v634 = vsel %vm593, %v547, 0
    %v637 = vsel %vm593, %v548, 0
    %v640 = vsel %vm593, %v549, 0
    %v643 = vsel %vm593, %v550, 0
    %v646 = vsel %vm593, %v551, 0
    %v649 = vsel %vm593, %v552, 0
    %v652 = vsel %vm593, %v553, 0
    %v655 = vsel %vm593, %v554, 0
    %v658 = vsel %vm593, %v555, 0
    %v661 = vsel %vm593, %v556, 0
    %v664 = vsel %vm593, %v557, 0
    %v667 = vsel %vm593, %v558, 0
    %v670 = vsel %vm593, %v559, 0
    %v673 = vsel %vm593, %v560, 0
    %v676 = vsel %vm593, %v561, 0
    %v679 = vsel %vm593, %v562, 0
    %v682 = vsel %vm593, %v563, 0
    %v685 = vsel %vm593, %v564, 0
    %v688 = vsel %vm593, %v565, 0
    %v691 = vsel %vm593, %v566, 0
    %v694 = vsel %vm593, %v567, 0
    %v697 = vsel %vm593, %v568, 0
    %v700 = vsel %vm593, %v569, 0
    %v703 = vsel %vm593, %v570, 0
    %v706 = vsel %vm593, %v571, 0
    %v709 = vsel %vm593, %v572, 0
    %v712 = vsel %vm593, %v573, 0
    %v715 = vsel %vm593, %v574, 0
    %v718 = vsel %vm593, %v575, 0
    %v721 = vsel %vm593, %v576, 0
    %v724 = vsel %vm593, %v577, 0
    %v727 = vsel %vm593, %v578, 0
    %v730 = vsel %vm593, %v579, 0
    %v733 = vsel %vm593, %v580, 0
    %v736 = vsel %vm593, %v581, 0
    %738 = vmatprep.subr.mxu0 0.0
    %739 = vmatpush1.msra.mxu0 %v582
    %740 = vmatprep.subr.mxu0 0.0
    %741 = vmatpush1.msra.mxu0 %v583
    %742 = vmatprep.subr.mxu0 0.0
    %743 = vmatpush1.msra.mxu0 %v584
    %744 = vmatprep.subr.mxu0 0.0
    %745 = vmatpush1.msra.mxu0 %v585
    %746 = vmatprep.subr.mxu0 0.0
    %747 = vmatpush1.msra.mxu0 0.0
    %748 = vmatprep.subr.mxu0 0.0
    %749 = vmatpush1.msra.mxu0 0.0
    %750 = vmatprep.subr.mxu0 0.0
    %751 = vmatpush1.msra.mxu0 0.0
    %752 = vmatprep.subr.mxu0 0.0
    %753 = vmatpush1.msra.mxu0 0.0
    %754 = vmatprep.subr.mxu0 0.0
    %755 = vmatpush1.msra.mxu0 0.0
    %756 = vmatprep.subr.mxu0 0.0
    %757 = vmatpush1.msra.mxu0 0.0
    %758 = vmatprep.subr.mxu0 0.0
    %759 = vmatpush1.msra.mxu0 0.0
    %760 = vmatprep.subr.mxu0 0.0
    %761 = vmatpush1.msra.mxu0 0.0
    %762 = vmatprep.subr.mxu0 0.0
    %763 = vmatpush1.msra.mxu0 0.0
    %764 = vmatprep.subr.mxu0 0.0
    %765 = vmatpush1.msra.mxu0 0.0
    %766 = vmatprep.subr.mxu0 0.0
    %767 = vmatpush1.msra.mxu0 0.0
    %768 = vmatprep.subr.mxu0 0.0
    %769 = vmatpush1.msra.mxu0 0.0
    %770 = vmatprep.subr.mxu0 0.0
    %771 = vmatpush1.msra.mxu0 0.0
    %772 = vmatprep.subr.mxu0 0.0
    %773 = vmatpush1.msra.mxu0 0.0
    %774 = vmatprep.subr.mxu0 0.0
    %775 = vmatpush1.msra.mxu0 0.0
    %776 = vmatprep.subr.mxu0 0.0
    %777 = vmatpush1.msra.mxu0 0.0
    %778 = vmatprep.subr.mxu0 0.0
    %779 = vmatpush1.msra.mxu0 0.0
    %780 = vmatprep.subr.mxu0 0.0
    %781 = vmatpush1.msra.mxu0 0.0
    %782 = vmatprep.subr.mxu0 0.0
    %783 = vmatpush1.msra.mxu0 0.0
    %784 = vmatprep.subr.mxu0 0.0
    %785 = vmatpush1.msra.mxu0 0.0
    %786 = vmatprep.subr.mxu0 0.0
    %787 = vmatpush1.msra.mxu0 0.0
    %788 = vmatprep.subr.mxu0 0.0
    %789 = vmatpush1.msra.mxu0 0.0
    %790 = vmatprep.subr.mxu0 0.0
    %791 = vmatpush1.msra.mxu0 0.0
    %792 = vmatprep.subr.mxu0 0.0
    %793 = vmatpush1.msra.mxu0 0.0
    %794 = vmatprep.subr.mxu0 0.0
    %795 = vmatpush1.msra.mxu0 0.0
    %796 = vmatprep.subr.mxu0 0.0
    %797 = vmatpush1.msra.mxu0 0.0
    %798 = vmatprep.subr.mxu0 0.0
    %799 = vmatpush1.msra.mxu0 0.0
    %800 = vmatprep.subr.mxu0 0.0
    %801 = vmatpush1.msra.mxu0 0.0
    %802 = vmatprep.mubr.f32.mxu0 0.0
    %803 = vmatmul.mubr.f32.gmra.mrb[0].mxu0 %v595
    %v804 = vpop.f32.mrb[0].mxu0
    %v805 = vadd.f32 %v591, %v804
    %v806 = vpop.f32.mrb[0].mxu0
    %807 = vmatprep.mubr.f32.mxu0 0.0
    %808 = vmatmul.mubr.f32.gmra.mrb[0].mxu0 %v598
    %v809 = vpop.f32.mrb[0].mxu0
    %v810 = vadd.f32 %v591, %v809
    %v811 = vpop.f32.mrb[0].mxu0
    %812 = vmatprep.mubr.f32.mxu0 0.0
    %813 = vmatmul.mubr.f32.gmra.mrb[0].mxu0 %v601
    %v814 = vpop.f32.mrb[0].mxu0
    %v815 = vadd.f32 %v591, %v814
    %v816 = vpop.f32.mrb[0].mxu0
    %817 = vmatprep.mubr.f32.mxu0 0.0
    %818 = vmatmul.mubr.f32.gmra.mrb[0].mxu0 %v604
    %v819 = vpop.f32.mrb[0].mxu0
    %v820 = vadd.f32 %v591, %v819
    %v821 = vpop.f32.mrb[0].mxu0
    %822 = vmatprep.mubr.f32.mxu0 0.0
    %823 = vmatmul.mubr.f32.gmra.mrb[0].mxu0 %v607
    %v824 = vpop.f32.mrb[0].mxu0
    %v825 = vadd.f32 %v591, %v824
    %v826 = vpop.f32.mrb[0].mxu0
    %827 = vmatprep.mubr.f32.mxu0 0.0
    %828 = vmatmul.mubr.f32.gmra.mrb[0].mxu0 %v610
    %v829 = vpop.f32.mrb[0].mxu0
    %v830 = vadd.f32 %v591, %v829
    %v831 = vpop.f32.mrb[0].mxu0
    %832 = vmatprep.mubr.f32.mxu0 0.0
    %833 = vmatmul.mubr.f32.gmra.mrb[0].mxu0 %v613
    %v834 = vpop.f32.mrb[0].mxu0
    %v835 = vadd.f32 %v591, %v834
    %v836 = vpop.f32.mrb[0].mxu0
    %837 = vmatprep.mubr.f32.mxu0 0.0
    %838 = vmatmul.mubr.f32.gmra.mrb[0].mxu0 %v616
    %v839 = vpop.f32.mrb[0].mxu0
    %v840 = vadd.f32 %v591, %v839
    %v841 = vpop.f32.mrb[0].mxu0
    %842 = vmatprep.mubr.f32.mxu0 0.0
    %843 = vmatmul.mubr.f32.gmra.mrb[0].mxu0 %v619
    %v844 = vpop.f32.mrb[0].mxu0
    %v845 = vadd.f32 %v591, %v844
    %v846 = vpop.f32.mrb[0].mxu0
    %847 = vmatprep.mubr.f32.mxu0 0.0
    %848 = vmatmul.mubr.f32.gmra.mrb[0].mxu0 %v622
    %v849 = vpop.f32.mrb[0].mxu0
    %v850 = vadd.f32 %v591, %v849
    %v851 = vpop.f32.mrb[0].mxu0
    %852 = vmatprep.mubr.f32.mxu0 0.0
    %853 = vmatmul.mubr.f32.gmra.mrb[0].mxu0 %v625
    %v854 = vpop.f32.mrb[0].mxu0
    %v855 = vadd.f32 %v591, %v854
    %v856 = vpop.f32.mrb[0].mxu0
    %857 = vmatprep.mubr.f32.mxu0 0.0
    %858 = vmatmul.mubr.f32.gmra.mrb[0].mxu0 %v628
    %v859 = vpop.f32.mrb[0].mxu0
    %v860 = vadd.f32 %v591, %v859
    %v861 = vpop.f32.mrb[0].mxu0
    %862 = vmatprep.mubr.f32.mxu0 0.0
    %863 = vmatmul.mubr.f32.gmra.mrb[0].mxu0 %v631
    %v864 = vpop.f32.mrb[0].mxu0
    %v865 = vadd.f32 %v591, %v864
    %v866 = vpop.f32.mrb[0].mxu0
    %867 = vmatprep.mubr.f32.mxu0 0.0
    %868 = vmatmul.mubr.f32.gmra.mrb[0].mxu0 %v634
    %v869 = vpop.f32.mrb[0].mxu0
    %v870 = vadd.f32 %v591, %v869
    %v871 = vpop.f32.mrb[0].mxu0
    %872 = vmatprep.mubr.f32.mxu0 0.0
    %873 = vmatmul.mubr.f32.gmra.mrb[0].mxu0 %v637
    %v874 = vpop.f32.mrb[0].mxu0
    %v875 = vadd.f32 %v591, %v874
    %v876 = vpop.f32.mrb[0].mxu0
    %877 = vmatprep.mubr.f32.mxu0 0.0
    %878 = vmatmul.mubr.f32.gmra.mrb[0].mxu0 %v640
    %v879 = vpop.f32.mrb[0].mxu0
    %v880 = vadd.f32 %v591, %v879
    %v881 = vpop.f32.mrb[0].mxu0
    %882 = vmatprep.mubr.f32.mxu0 0.0
    %883 = vmatmul.mubr.f32.gmra.mrb[0].mxu0 %v643
    %v884 = vpop.f32.mrb[0].mxu0
    %v885 = vadd.f32 %v591, %v884
    %v886 = vpop.f32.mrb[0].mxu0
    %887 = vmatprep.mubr.f32.mxu0 0.0
    %888 = vmatmul.mubr.f32.gmra.mrb[0].mxu0 %v646
    %v889 = vpop.f32.mrb[0].mxu0
    %v890 = vadd.f32 %v591, %v889
    %v891 = vpop.f32.mrb[0].mxu0
    %892 = vmatprep.mubr.f32.mxu0 0.0
    %893 = vmatmul.mubr.f32.gmra.mrb[0].mxu0 %v649
    %v894 = vpop.f32.mrb[0].mxu0
    %v895 = vadd.f32 %v591, %v894
    %v896 = vpop.f32.mrb[0].mxu0
    %897 = vmatprep.mubr.f32.mxu0 0.0
    %898 = vmatmul.mubr.f32.gmra.mrb[0].mxu0 %v652
    %v899 = vpop.f32.mrb[0].mxu0
    %v900 = vadd.f32 %v591, %v899
    %v901 = vpop.f32.mrb[0].mxu0
    %902 = vmatprep.mubr.f32.mxu0 0.0
    %903 = vmatmul.mubr.f32.gmra.mrb[0].mxu0 %v655
    %v904 = vpop.f32.mrb[0].mxu0
    %v905 = vadd.f32 %v591, %v904
    %v906 = vpop.f32.mrb[0].mxu0
    %907 = vmatprep.mubr.f32.mxu0 0.0
    %908 = vmatmul.mubr.f32.gmra.mrb[0].mxu0 %v658
    %v909 = vpop.f32.mrb[0].mxu0
    %v910 = vadd.f32 %v591, %v909
    %v911 = vpop.f32.mrb[0].mxu0
    %912 = vmatprep.mubr.f32.mxu0 0.0
    %913 = vmatmul.mubr.f32.gmra.mrb[0].mxu0 %v661
    %v914 = vpop.f32.mrb[0].mxu0
    %v915 = vadd.f32 %v591, %v914
    %v916 = vpop.f32.mrb[0].mxu0
    %917 = vmatprep.mubr.f32.mxu0 0.0
    %918 = vmatmul.mubr.f32.gmra.mrb[0].mxu0 %v664
    %v919 = vpop.f32.mrb[0].mxu0
    %v920 = vadd.f32 %v591, %v919
    %v921 = vpop.f32.mrb[0].mxu0
    %922 = vmatprep.mubr.f32.mxu0 0.0
    %923 = vmatmul.mubr.f32.gmra.mrb[0].mxu0 %v667
    %v924 = vpop.f32.mrb[0].mxu0
    %v925 = vadd.f32 %v591, %v924
    %v926 = vpop.f32.mrb[0].mxu0
    %927 = vmatprep.mubr.f32.mxu0 0.0
    %928 = vmatmul.mubr.f32.gmra.mrb[0].mxu0 %v670
    %v929 = vpop.f32.mrb[0].mxu0
    %v930 = vadd.f32 %v591, %v929
    %v931 = vpop.f32.mrb[0].mxu0
    %932 = vmatprep.mubr.f32.mxu0 0.0
    %933 = vmatmul.mubr.f32.gmra.mrb[0].mxu0 %v673
    %v934 = vpop.f32.mrb[0].mxu0
    %v935 = vadd.f32 %v591, %v934
    %v936 = vpop.f32.mrb[0].mxu0
    %937 = vmatprep.mubr.f32.mxu0 0.0
    %938 = vmatmul.mubr.f32.gmra.mrb[0].mxu0 %v676
    %v939 = vpop.f32.mrb[0].mxu0
    %v940 = vadd.f32 %v591, %v939
    %v941 = vpop.f32.mrb[0].mxu0
    %942 = vmatprep.mubr.f32.mxu0 0.0
    %943 = vmatmul.mubr.f32.gmra.mrb[0].mxu0 %v679
    %v944 = vpop.f32.mrb[0].mxu0
    %v945 = vadd.f32 %v591, %v944
    %v946 = vpop.f32.mrb[0].mxu0
    %947 = vmatprep.mubr.f32.mxu0 0.0
    %948 = vmatmul.mubr.f32.gmra.mrb[0].mxu0 %v682
    %v949 = vpop.f32.mrb[0].mxu0
    %v950 = vadd.f32 %v591, %v949
    %v951 = vpop.f32.mrb[0].mxu0
    %952 = vmatprep.mubr.f32.mxu0 0.0
    %953 = vmatmul.mubr.f32.gmra.mrb[0].mxu0 %v685
    %v954 = vpop.f32.mrb[0].mxu0
    %v955 = vadd.f32 %v591, %v954
    %v956 = vpop.f32.mrb[0].mxu0
    %957 = vmatprep.mubr.f32.mxu0 0.0
    %958 = vmatmul.mubr.f32.gmra.mrb[0].mxu0 %v688
    %v959 = vpop.f32.mrb[0].mxu0
    %v960 = vadd.f32 %v591, %v959
    %v961 = vpop.f32.mrb[0].mxu0
    %962 = vmatprep.mubr.f32.mxu0 0.0
    %963 = vmatmul.mubr.f32.gmra.mrb[0].mxu0 %v691
    %v964 = vpop.f32.mrb[0].mxu0
    %v965 = vadd.f32 %v591, %v964
    %v966 = vpop.f32.mrb[0].mxu0
    %967 = vmatprep.mubr.f32.mxu0 0.0
    %968 = vmatmul.mubr.f32.gmra.mrb[0].mxu0 %v694
    %v969 = vpop.f32.mrb[0].mxu0
    %v970 = vadd.f32 %v591, %v969
    %v971 = vpop.f32.mrb[0].mxu0
    %972 = vmatprep.mubr.f32.mxu0 0.0
    %973 = vmatmul.mubr.f32.gmra.mrb[0].mxu0 %v697
    %v974 = vpop.f32.mrb[0].mxu0
    %v975 = vadd.f32 %v591, %v974
    %v976 = vpop.f32.mrb[0].mxu0
    %977 = vmatprep.mubr.f32.mxu0 0.0
    %978 = vmatmul.mubr.f32.gmra.mrb[0].mxu0 %v700
    %v979 = vpop.f32.mrb[0].mxu0
    %v980 = vadd.f32 %v591, %v979
    %v981 = vpop.f32.mrb[0].mxu0
    %982 = vmatprep.mubr.f32.mxu0 0.0
    %983 = vmatmul.mubr.f32.gmra.mrb[0].mxu0 %v703
    %v984 = vpop.f32.mrb[0].mxu0
    %v985 = vadd.f32 %v591, %v984
    %v986 = vpop.f32.mrb[0].mxu0
    %987 = vmatprep.mubr.f32.mxu0 0.0
    %988 = vmatmul.mubr.f32.gmra.mrb[0].mxu0 %v706
    %v989 = vpop.f32.mrb[0].mxu0
    %v990 = vadd.f32 %v591, %v989
    %v991 = vpop.f32.mrb[0].mxu0
    %992 = vmatprep.mubr.f32.mxu0 0.0
    %993 = vmatmul.mubr.f32.gmra.mrb[0].mxu0 %v709
    %v994 = vpop.f32.mrb[0].mxu0
    %v995 = vadd.f32 %v591, %v994
    %v996 = vpop.f32.mrb[0].mxu0
    %997 = vmatprep.mubr.f32.mxu0 0.0
    %998 = vmatmul.mubr.f32.gmra.mrb[0].mxu0 %v712
    %v999 = vpop.f32.mrb[0].mxu0
    %v1000 = vadd.f32 %v591, %v999
    %v1001 = vpop.f32.mrb[0].mxu0
    %1002 = vmatprep.mubr.f32.mxu0 0.0
    %1003 = vmatmul.mubr.f32.gmra.mrb[0].mxu0 %v715
    %v1004 = vpop.f32.mrb[0].mxu0
    %v1005 = vadd.f32 %v591, %v1004
    %v1006 = vpop.f32.mrb[0].mxu0
    %1007 = vmatprep.mubr.f32.mxu0 0.0
    %1008 = vmatmul.mubr.f32.gmra.mrb[0].mxu0 %v718
    %v1009 = vpop.f32.mrb[0].mxu0
    %v1010 = vadd.f32 %v591, %v1009
    %v1011 = vpop.f32.mrb[0].mxu0
    %1012 = vmatprep.mubr.f32.mxu0 0.0
    %1013 = vmatmul.mubr.f32.gmra.mrb[0].mxu0 %v721
    %v1014 = vpop.f32.mrb[0].mxu0
    %v1015 = vadd.f32 %v591, %v1014
    %v1016 = vpop.f32.mrb[0].mxu0
    %1017 = vmatprep.mubr.f32.mxu0 0.0
    %1018 = vmatmul.mubr.f32.gmra.mrb[0].mxu0 %v724
    %v1019 = vpop.f32.mrb[0].mxu0
    %v1020 = vadd.f32 %v591, %v1019
    %v1021 = vpop.f32.mrb[0].mxu0
    %1022 = vmatprep.mubr.f32.mxu0 0.0
    %1023 = vmatmul.mubr.f32.gmra.mrb[0].mxu0 %v727
    %v1024 = vpop.f32.mrb[0].mxu0
    %v1025 = vadd.f32 %v591, %v1024
    %v1026 = vpop.f32.mrb[0].mxu0
    %1027 = vmatprep.mubr.f32.mxu0 0.0
    %1028 = vmatmul.mubr.f32.gmra.mrb[0].mxu0 %v730
    %v1029 = vpop.f32.mrb[0].mxu0
    %v1030 = vadd.f32 %v591, %v1029
    %v1031 = vpop.f32.mrb[0].mxu0
    %1032 = vmatprep.mubr.f32.mxu0 0.0
    %1033 = vmatmul.mubr.f32.gmra.mrb[0].mxu0 %v733
    %v1034 = vpop.f32.mrb[0].mxu0
    %v1035 = vadd.f32 %v591, %v1034
    %v1036 = vpop.f32.mrb[0].mxu0
    %1037 = vmatprep.mubr.f32.mxu0 0.0
    %1038 = vmatmul.mubr.f32.gmra.mrb[0].mxu0 %v736
    %v1039 = vpop.f32.mrb[0].mxu0
    %v1040 = vadd.f32 %v591, %v1039
    %v1041 = vpop.f32.mrb[0].mxu0
    %1042 = vdwg.mxu0
    %v1043 = vmax.f32 %v805, 0.0
    %v1044 = vmax.f32 %v810, 0.0
    %v1045 = vmax.f32 %v815, 0.0
    %v1046 = vmax.f32 %v820, 0.0
    %v1047 = vmax.f32 %v825, 0.0
    %v1048 = vmax.f32 %v830, 0.0
    %v1049 = vmax.f32 %v835, 0.0
    %v1050 = vmax.f32 %v840, 0.0
    %v1051 = vmax.f32 %v845, 0.0
    %v1052 = vmax.f32 %v850, 0.0
    %v1053 = vmax.f32 %v855, 0.0
    %v1054 = vmax.f32 %v860, 0.0
    %v1055 = vmax.f32 %v865, 0.0
    %v1056 = vmax.f32 %v870, 0.0
    %v1057 = vmax.f32 %v875, 0.0
    %v1058 = vmax.f32 %v880, 0.0
    %v1059 = vmax.f32 %v885, 0.0
    %v1060 = vmax.f32 %v890, 0.0
    %v1061 = vmax.f32 %v895, 0.0
    %v1062 = vmax.f32 %v900, 0.0
    %v1063 = vmax.f32 %v905, 0.0
    %v1064 = vmax.f32 %v910, 0.0
    %v1065 = vmax.f32 %v915, 0.0
    %v1066 = vmax.f32 %v920, 0.0
    %v1067 = vmax.f32 %v925, 0.0
    %v1068 = vmax.f32 %v930, 0.0
    %v1069 = vmax.f32 %v935, 0.0
    %v1070 = vmax.f32 %v940, 0.0
    %v1071 = vmax.f32 %v945, 0.0
    %v1072 = vmax.f32 %v950, 0.0
    %v1073 = vmax.f32 %v955, 0.0
    %v1074 = vmax.f32 %v960, 0.0
    %v1075 = vmax.f32 %v965, 0.0
    %v1076 = vmax.f32 %v970, 0.0
    %v1077 = vmax.f32 %v975, 0.0
    %v1078 = vmax.f32 %v980, 0.0
    %v1079 = vmax.f32 %v985, 0.0
    %v1080 = vmax.f32 %v990, 0.0
    %v1081 = vmax.f32 %v995, 0.0
    %v1082 = vmax.f32 %v1000, 0.0
    %v1083 = vmax.f32 %v1005, 0.0
    %v1084 = vmax.f32 %v1010, 0.0
    %v1085 = vmax.f32 %v1015, 0.0
    %v1086 = vmax.f32 %v1020, 0.0
    %v1087 = vmax.f32 %v1025, 0.0
    %v1088 = vmax.f32 %v1030, 0.0
    %v1089 = vmax.f32 %v1035, 0.0
    %v1090 = vmax.f32 %v1040, 0.0
    %v1091 = vld [vmem:[%s5] sm:$0xff]
    %v1092 = vld [vmem:[%s5 + $0x8] sm:$0xff]
    %v1093 = vld [vmem:[%s5 + $0x10] sm:$0xff]
    %v1094 = vld [vmem:[%s5 + $0x18] sm:$0xff]
    %v1095 = vld [vmem:[%s6] sm:$0x1]
    %v1097 = vlaneseq
    %v1098 = vshrl.u32 %v1097, 7
    %v1099 = vsub.s32 0, %v1098
    %v1100 = vrot.slane %v1095, %v1099
    %v1103 = vsel %vm593, %v1043, 0
    %v1106 = vsel %vm593, %v1044, 0
    %v1109 = vsel %vm593, %v1045, 0
    %v1112 = vsel %vm593, %v1046, 0
    %v1115 = vsel %vm593, %v1047, 0
    %v1118 = vsel %vm593, %v1048, 0
    %v1121 = vsel %vm593, %v1049, 0
    %v1124 = vsel %vm593, %v1050, 0
    %v1127 = vsel %vm593, %v1051, 0
    %v1130 = vsel %vm593, %v1052, 0
    %v1133 = vsel %vm593, %v1053, 0
    %v1136 = vsel %vm593, %v1054, 0
    %v1139 = vsel %vm593, %v1055, 0
    %v1142 = vsel %vm593, %v1056, 0
    %v1145 = vsel %vm593, %v1057, 0
    %v1148 = vsel %vm593, %v1058, 0
    %v1151 = vsel %vm593, %v1059, 0
    %v1154 = vsel %vm593, %v1060, 0
    %v1157 = vsel %vm593, %v1061, 0
    %v1160 = vsel %vm593, %v1062, 0
    %v1163 = vsel %vm593, %v1063, 0
    %v1166 = vsel %vm593, %v1064, 0
    %v1169 = vsel %vm593, %v1065, 0
    %v1172 = vsel %vm593, %v1066, 0
    %v1175 = vsel %vm593, %v1067, 0
    %v1178 = vsel %vm593, %v1068, 0
    %v1181 = vsel %vm593, %v1069, 0
    %v1184 = vsel %vm593, %v1070, 0
    %v1187 = vsel %vm593, %v1071, 0
    %v1190 = vsel %vm593, %v1072, 0
    %v1193 = vsel %vm593, %v1073, 0
    %v1196 = vsel %vm593, %v1074, 0
    %v1199 = vsel %vm593, %v1075, 0
    %v1202 = vsel %vm593, %v1076, 0
    %v1205 = vsel %vm593, %v1077, 0
    %v1208 = vsel %vm593, %v1078, 0
    %v1211 = vsel %vm593, %v1079, 0
    %v1214 = vsel %vm593, %v1080, 0
    %v1217 = vsel %vm593, %v1081, 0
    %v1220 = vsel %vm593, %v1082, 0
    %v1223 = vsel %vm593, %v1083, 0
    %v1226 = vsel %vm593, %v1084, 0
    %v1229 = vsel %vm593, %v1085, 0
    %v1232 = vsel %vm593, %v1086, 0
    %v1235 = vsel %vm593, %v1087, 0
    %v1238 = vsel %vm593, %v1088, 0
    %v1241 = vsel %vm593, %v1089, 0
    %v1244 = vsel %vm593, %v1090, 0
    %1246 = vmatprep.subr.mxu0 0.0
    %1247 = vmatpush1.msra.mxu0 %v1091
    %1248 = vmatprep.subr.mxu0 0.0
    %1249 = vmatpush1.msra.mxu0 %v1092
    %1250 = vmatprep.subr.mxu0 0.0
    %1251 = vmatpush1.msra.mxu0 %v1093
    %1252 = vmatprep.subr.mxu0 0.0
    %1253 = vmatpush1.msra.mxu0 %v1094
    %1254 = vmatprep.subr.mxu0 0.0
    %1255 = vmatpush1.msra.mxu0 0.0
    %1256 = vmatprep.subr.mxu0 0.0
    %1257 = vmatpush1.msra.mxu0 0.0
    %1258 = vmatprep.subr.mxu0 0.0
    %1259 = vmatpush1.msra.mxu0 0.0
    %1260 = vmatprep.subr.mxu0 0.0
    %1261 = vmatpush1.msra.mxu0 0.0
    %1262 = vmatprep.subr.mxu0 0.0
    %1263 = vmatpush1.msra.mxu0 0.0
    %1264 = vmatprep.subr.mxu0 0.0
    %1265 = vmatpush1.msra.mxu0 0.0
    %1266 = vmatprep.subr.mxu0 0.0
    %1267 = vmatpush1.msra.mxu0 0.0
    %1268 = vmatprep.subr.mxu0 0.0
    %1269 = vmatpush1.msra.mxu0 0.0
    %1270 = vmatprep.subr.mxu0 0.0
    %1271 = vmatpush1.msra.mxu0 0.0
    %1272 = vmatprep.subr.mxu0 0.0
    %1273 = vmatpush1.msra.mxu0 0.0
    %1274 = vmatprep.subr.mxu0 0.0
    %1275 = vmatpush1.msra.mxu0 0.0
    %1276 = vmatprep.subr.mxu0 0.0
    %1277 = vmatpush1.msra.mxu0 0.0
    %1278 = vmatprep.subr.mxu0 0.0
    %1279 = vmatpush1.msra.mxu0 0.0
    %1280 = vmatprep.subr.mxu0 0.0
    %1281 = vmatpush1.msra.mxu0 0.0
    %1282 = vmatprep.subr.mxu0 0.0
    %1283 = vmatpush1.msra.mxu0 0.0
    %1284 = vmatprep.subr.mxu0 0.0
    %1285 = vmatpush1.msra.mxu0 0.0
    %1286 = vmatprep.subr.mxu0 0.0
    %1287 = vmatpush1.msra.mxu0 0.0
    %1288 = vmatprep.subr.mxu0 0.0
    %1289 = vmatpush1.msra.mxu0 0.0
    %1290 = vmatprep.subr.mxu0 0.0
    %1291 = vmatpush1.msra.mxu0 0.0
    %1292 = vmatprep.subr.mxu0 0.0
    %1293 = vmatpush1.msra.mxu0 0.0
    %1294 = vmatprep.subr.mxu0 0.0
    %1295 = vmatpush1.msra.mxu0 0.0
    %1296 = vmatprep.subr.mxu0 0.0
    %1297 = vmatpush1.msra.mxu0 0.0
    %1298 = vmatprep.subr.mxu0 0.0
    %1299 = vmatpush1.msra.mxu0 0.0
    %1300 = vmatprep.subr.mxu0 0.0
    %1301 = vmatpush1.msra.mxu0 0.0
    %1302 = vmatprep.subr.mxu0 0.0
    %1303 = vmatpush1.msra.mxu0 0.0
    %1304 = vmatprep.subr.mxu0 0.0
    %1305 = vmatpush1.msra.mxu0 0.0
    %1306 = vmatprep.subr.mxu0 0.0
    %1307 = vmatpush1.msra.mxu0 0.0
    %1308 = vmatprep.subr.mxu0 0.0
    %1309 = vmatpush1.msra.mxu0 0.0
    %1310 = vmatprep.mubr.f32.mxu0 0.0
    %1311 = vmatmul.mubr.f32.gmra.mrb[0].mxu0 %v1103
    %v1312 = vpop.f32.mrb[0].mxu0
    %v1313 = vadd.f32 %v1100, %v1312
    %v1314 = vpop.f32.mrb[0].mxu0
    %1315 = vmatprep.mubr.f32.mxu0 0.0
    %1316 = vmatmul.mubr.f32.gmra.mrb[0].mxu0 %v1106
    %v1317 = vpop.f32.mrb[0].mxu0
    %v1318 = vadd.f32 %v1100, %v1317
    %v1319 = vpop.f32.mrb[0].mxu0
    %1320 = vmatprep.mubr.f32.mxu0 0.0
    %1321 = vmatmul.mubr.f32.gmra.mrb[0].mxu0 %v1109
    %v1322 = vpop.f32.mrb[0].mxu0
    %v1323 = vadd.f32 %v1100, %v1322
    %v1324 = vpop.f32.mrb[0].mxu0
    %1325 = vmatprep.mubr.f32.mxu0 0.0
    %1326 = vmatmul.mubr.f32.gmra.mrb[0].mxu0 %v1112
    %v1327 = vpop.f32.mrb[0].mxu0
    %v1328 = vadd.f32 %v1100, %v1327
    %v1329 = vpop.f32.mrb[0].mxu0
    %1330 = vmatprep.mubr.f32.mxu0 0.0
    %1331 = vmatmul.mubr.f32.gmra.mrb[0].mxu0 %v1115
    %v1332 = vpop.f32.mrb[0].mxu0
    %v1333 = vadd.f32 %v1100, %v1332
    %v1334 = vpop.f32.mrb[0].mxu0
    %1335 = vmatprep.mubr.f32.mxu0 0.0
    %1336 = vmatmul.mubr.f32.gmra.mrb[0].mxu0 %v1118
    %v1337 = vpop.f32.mrb[0].mxu0
    %v1338 = vadd.f32 %v1100, %v1337
    %v1339 = vpop.f32.mrb[0].mxu0
    %1340 = vmatprep.mubr.f32.mxu0 0.0
    %1341 = vmatmul.mubr.f32.gmra.mrb[0].mxu0 %v1121
    %v1342 = vpop.f32.mrb[0].mxu0
    %v1343 = vadd.f32 %v1100, %v1342
    %v1344 = vpop.f32.mrb[0].mxu0
    %1345 = vmatprep.mubr.f32.mxu0 0.0
    %1346 = vmatmul.mubr.f32.gmra.mrb[0].mxu0 %v1124
    %v1347 = vpop.f32.mrb[0].mxu0
    %v1348 = vadd.f32 %v1100, %v1347
    %v1349 = vpop.f32.mrb[0].mxu0
    %1350 = vmatprep.mubr.f32.mxu0 0.0
    %1351 = vmatmul.mubr.f32.gmra.mrb[0].mxu0 %v1127
    %v1352 = vpop.f32.mrb[0].mxu0
    %v1353 = vadd.f32 %v1100, %v1352
    %v1354 = vpop.f32.mrb[0].mxu0
    %1355 = vmatprep.mubr.f32.mxu0 0.0
    %1356 = vmatmul.mubr.f32.gmra.mrb[0].mxu0 %v1130
    %v1357 = vpop.f32.mrb[0].mxu0
    %v1358 = vadd.f32 %v1100, %v1357
    %v1359 = vpop.f32.mrb[0].mxu0
    %1360 = vmatprep.mubr.f32.mxu0 0.0
    %1361 = vmatmul.mubr.f32.gmra.mrb[0].mxu0 %v1133
    %v1362 = vpop.f32.mrb[0].mxu0
    %v1363 = vadd.f32 %v1100, %v1362
    %v1364 = vpop.f32.mrb[0].mxu0
    %1365 = vmatprep.mubr.f32.mxu0 0.0
    %1366 = vmatmul.mubr.f32.gmra.mrb[0].mxu0 %v1136
    %v1367 = vpop.f32.mrb[0].mxu0
    %v1368 = vadd.f32 %v1100, %v1367
    %v1369 = vpop.f32.mrb[0].mxu0
    %1370 = vmatprep.mubr.f32.mxu0 0.0
    %1371 = vmatmul.mubr.f32.gmra.mrb[0].mxu0 %v1139
    %v1372 = vpop.f32.mrb[0].mxu0
    %v1373 = vadd.f32 %v1100, %v1372
    %v1374 = vpop.f32.mrb[0].mxu0
    %1375 = vmatprep.mubr.f32.mxu0 0.0
    %1376 = vmatmul.mubr.f32.gmra.mrb[0].mxu0 %v1142
    %v1377 = vpop.f32.mrb[0].mxu0
    %v1378 = vadd.f32 %v1100, %v1377
    %v1379 = vpop.f32.mrb[0].mxu0
    %1380 = vmatprep.mubr.f32.mxu0 0.0
    %1381 = vmatmul.mubr.f32.gmra.mrb[0].mxu0 %v1145
    %v1382 = vpop.f32.mrb[0].mxu0
    %v1383 = vadd.f32 %v1100, %v1382
    %v1384 = vpop.f32.mrb[0].mxu0
    %1385 = vmatprep.mubr.f32.mxu0 0.0
    %1386 = vmatmul.mubr.f32.gmra.mrb[0].mxu0 %v1148
    %v1387 = vpop.f32.mrb[0].mxu0
    %v1388 = vadd.f32 %v1100, %v1387
    %v1389 = vpop.f32.mrb[0].mxu0
    %1390 = vmatprep.mubr.f32.mxu0 0.0
    %1391 = vmatmul.mubr.f32.gmra.mrb[0].mxu0 %v1151
    %v1392 = vpop.f32.mrb[0].mxu0
    %v1393 = vadd.f32 %v1100, %v1392
    %v1394 = vpop.f32.mrb[0].mxu0
    %1395 = vmatprep.mubr.f32.mxu0 0.0
    %1396 = vmatmul.mubr.f32.gmra.mrb[0].mxu0 %v1154
    %v1397 = vpop.f32.mrb[0].mxu0
    %v1398 = vadd.f32 %v1100, %v1397
    %v1399 = vpop.f32.mrb[0].mxu0
    %1400 = vmatprep.mubr.f32.mxu0 0.0
    %1401 = vmatmul.mubr.f32.gmra.mrb[0].mxu0 %v1157
    %v1402 = vpop.f32.mrb[0].mxu0
    %v1403 = vadd.f32 %v1100, %v1402
    %v1404 = vpop.f32.mrb[0].mxu0
    %1405 = vmatprep.mubr.f32.mxu0 0.0
    %1406 = vmatmul.mubr.f32.gmra.mrb[0].mxu0 %v1160
    %v1407 = vpop.f32.mrb[0].mxu0
    %v1408 = vadd.f32 %v1100, %v1407
    %v1409 = vpop.f32.mrb[0].mxu0
    %1410 = vmatprep.mubr.f32.mxu0 0.0
    %1411 = vmatmul.mubr.f32.gmra.mrb[0].mxu0 %v1163
    %v1412 = vpop.f32.mrb[0].mxu0
    %v1413 = vadd.f32 %v1100, %v1412
    %v1414 = vpop.f32.mrb[0].mxu0
    %1415 = vmatprep.mubr.f32.mxu0 0.0
    %1416 = vmatmul.mubr.f32.gmra.mrb[0].mxu0 %v1166
    %v1417 = vpop.f32.mrb[0].mxu0
    %v1418 = vadd.f32 %v1100, %v1417
    %v1419 = vpop.f32.mrb[0].mxu0
    %1420 = vmatprep.mubr.f32.mxu0 0.0
    %1421 = vmatmul.mubr.f32.gmra.mrb[0].mxu0 %v1169
    %v1422 = vpop.f32.mrb[0].mxu0
    %v1423 = vadd.f32 %v1100, %v1422
    %v1424 = vpop.f32.mrb[0].mxu0
    %1425 = vmatprep.mubr.f32.mxu0 0.0
    %1426 = vmatmul.mubr.f32.gmra.mrb[0].mxu0 %v1172
    %v1427 = vpop.f32.mrb[0].mxu0
    %v1428 = vadd.f32 %v1100, %v1427
    %v1429 = vpop.f32.mrb[0].mxu0
    %1430 = vmatprep.mubr.f32.mxu0 0.0
    %1431 = vmatmul.mubr.f32.gmra.mrb[0].mxu0 %v1175
    %v1432 = vpop.f32.mrb[0].mxu0
    %v1433 = vadd.f32 %v1100, %v1432
    %v1434 = vpop.f32.mrb[0].mxu0
    %1435 = vmatprep.mubr.f32.mxu0 0.0
    %1436 = vmatmul.mubr.f32.gmra.mrb[0].mxu0 %v1178
    %v1437 = vpop.f32.mrb[0].mxu0
    %v1438 = vadd.f32 %v1100, %v1437
    %v1439 = vpop.f32.mrb[0].mxu0
    %1440 = vmatprep.mubr.f32.mxu0 0.0
    %1441 = vmatmul.mubr.f32.gmra.mrb[0].mxu0 %v1181
    %v1442 = vpop.f32.mrb[0].mxu0
    %v1443 = vadd.f32 %v1100, %v1442
    %v1444 = vpop.f32.mrb[0].mxu0
    %1445 = vmatprep.mubr.f32.mxu0 0.0
    %1446 = vmatmul.mubr.f32.gmra.mrb[0].mxu0 %v1184
    %v1447 = vpop.f32.mrb[0].mxu0
    %v1448 = vadd.f32 %v1100, %v1447
    %v1449 = vpop.f32.mrb[0].mxu0
    %1450 = vmatprep.mubr.f32.mxu0 0.0
    %1451 = vmatmul.mubr.f32.gmra.mrb[0].mxu0 %v1187
    %v1452 = vpop.f32.mrb[0].mxu0
    %v1453 = vadd.f32 %v1100, %v1452
    %v1454 = vpop.f32.mrb[0].mxu0
    %1455 = vmatprep.mubr.f32.mxu0 0.0
    %1456 = vmatmul.mubr.f32.gmra.mrb[0].mxu0 %v1190
    %v1457 = vpop.f32.mrb[0].mxu0
    %v1458 = vadd.f32 %v1100, %v1457
    %v1459 = vpop.f32.mrb[0].mxu0
    %1460 = vmatprep.mubr.f32.mxu0 0.0
    %1461 = vmatmul.mubr.f32.gmra.mrb[0].mxu0 %v1193
    %v1462 = vpop.f32.mrb[0].mxu0
    %v1463 = vadd.f32 %v1100, %v1462
    %v1464 = vpop.f32.mrb[0].mxu0
    %1465 = vmatprep.mubr.f32.mxu0 0.0
    %1466 = vmatmul.mubr.f32.gmra.mrb[0].mxu0 %v1196
    %v1467 = vpop.f32.mrb[0].mxu0
    %v1468 = vadd.f32 %v1100, %v1467
    %v1469 = vpop.f32.mrb[0].mxu0
    %1470 = vmatprep.mubr.f32.mxu0 0.0
    %1471 = vmatmul.mubr.f32.gmra.mrb[0].mxu0 %v1199
    %v1472 = vpop.f32.mrb[0].mxu0
    %v1473 = vadd.f32 %v1100, %v1472
    %v1474 = vpop.f32.mrb[0].mxu0
    %1475 = vmatprep.mubr.f32.mxu0 0.0
    %1476 = vmatmul.mubr.f32.gmra.mrb[0].mxu0 %v1202
    %v1477 = vpop.f32.mrb[0].mxu0
    %v1478 = vadd.f32 %v1100, %v1477
    %v1479 = vpop.f32.mrb[0].mxu0
    %1480 = vmatprep.mubr.f32.mxu0 0.0
    %1481 = vmatmul.mubr.f32.gmra.mrb[0].mxu0 %v1205
    %v1482 = vpop.f32.mrb[0].mxu0
    %v1483 = vadd.f32 %v1100, %v1482
    %v1484 = vpop.f32.mrb[0].mxu0
    %1485 = vmatprep.mubr.f32.mxu0 0.0
    %1486 = vmatmul.mubr.f32.gmra.mrb[0].mxu0 %v1208
    %v1487 = vpop.f32.mrb[0].mxu0
    %v1488 = vadd.f32 %v1100, %v1487
    %v1489 = vpop.f32.mrb[0].mxu0
    %1490 = vmatprep.mubr.f32.mxu0 0.0
    %1491 = vmatmul.mubr.f32.gmra.mrb[0].mxu0 %v1211
    %v1492 = vpop.f32.mrb[0].mxu0
    %v1493 = vadd.f32 %v1100, %v1492
    %v1494 = vpop.f32.mrb[0].mxu0
    %1495 = vmatprep.mubr.f32.mxu0 0.0
    %1496 = vmatmul.mubr.f32.gmra.mrb[0].mxu0 %v1214
    %v1497 = vpop.f32.mrb[0].mxu0
    %v1498 = vadd.f32 %v1100, %v1497
    %v1499 = vpop.f32.mrb[0].mxu0
    %1500 = vmatprep.mubr.f32.mxu0 0.0
    %1501 = vmatmul.mubr.f32.gmra.mrb[0].mxu0 %v1217
    %v1502 = vpop.f32.mrb[0].mxu0
    %v1503 = vadd.f32 %v1100, %v1502
    %v1504 = vpop.f32.mrb[0].mxu0
    %1505 = vmatprep.mubr.f32.mxu0 0.0
    %1506 = vmatmul.mubr.f32.gmra.mrb[0].mxu0 %v1220
    %v1507 = vpop.f32.mrb[0].mxu0
    %v1508 = vadd.f32 %v1100, %v1507
    %v1509 = vpop.f32.mrb[0].mxu0
    %1510 = vmatprep.mubr.f32.mxu0 0.0
    %1511 = vmatmul.mubr.f32.gmra.mrb[0].mxu0 %v1223
    %v1512 = vpop.f32.mrb[0].mxu0
    %v1513 = vadd.f32 %v1100, %v1512
    %v1514 = vpop.f32.mrb[0].mxu0
    %1515 = vmatprep.mubr.f32.mxu0 0.0
    %1516 = vmatmul.mubr.f32.gmra.mrb[0].mxu0 %v1226
    %v1517 = vpop.f32.mrb[0].mxu0
    %v1518 = vadd.f32 %v1100, %v1517
    %v1519 = vpop.f32.mrb[0].mxu0
    %1520 = vmatprep.mubr.f32.mxu0 0.0
    %1521 = vmatmul.mubr.f32.gmra.mrb[0].mxu0 %v1229
    %v1522 = vpop.f32.mrb[0].mxu0
    %v1523 = vadd.f32 %v1100, %v1522
    %v1524 = vpop.f32.mrb[0].mxu0
    %1525 = vmatprep.mubr.f32.mxu0 0.0
    %1526 = vmatmul.mubr.f32.gmra.mrb[0].mxu0 %v1232
    %v1527 = vpop.f32.mrb[0].mxu0
    %v1528 = vadd.f32 %v1100, %v1527
    %v1529 = vpop.f32.mrb[0].mxu0
    %1530 = vmatprep.mubr.f32.mxu0 0.0
    %1531 = vmatmul.mubr.f32.gmra.mrb[0].mxu0 %v1235
    %v1532 = vpop.f32.mrb[0].mxu0
    %v1533 = vadd.f32 %v1100, %v1532
    %v1534 = vpop.f32.mrb[0].mxu0
    %1535 = vmatprep.mubr.f32.mxu0 0.0
    %1536 = vmatmul.mubr.f32.gmra.mrb[0].mxu0 %v1238
    %v1537 = vpop.f32.mrb[0].mxu0
    %v1538 = vadd.f32 %v1100, %v1537
    %v1539 = vpop.f32.mrb[0].mxu0
    %1540 = vmatprep.mubr.f32.mxu0 0.0
    %1541 = vmatmul.mubr.f32.gmra.mrb[0].mxu0 %v1241
    %v1542 = vpop.f32.mrb[0].mxu0
    %v1543 = vadd.f32 %v1100, %v1542
    %v1544 = vpop.f32.mrb[0].mxu0
    %1545 = vmatprep.mubr.f32.mxu0 0.0
    %1546 = vmatmul.mubr.f32.gmra.mrb[0].mxu0 %v1244
    %v1547 = vpop.f32.mrb[0].mxu0
    %v1548 = vadd.f32 %v1100, %v1547
    %v1549 = vpop.f32.mrb[0].mxu0
    %1550 = vdwg.mxu0
    %v1551 = vmax.f32 %v1313, 0.0
    %v1552 = vmax.f32 %v1318, 0.0
    %v1553 = vmax.f32 %v1323, 0.0
    %v1554 = vmax.f32 %v1328, 0.0
    %v1555 = vmax.f32 %v1333, 0.0
    %v1556 = vmax.f32 %v1338, 0.0
    %v1557 = vmax.f32 %v1343, 0.0
    %v1558 = vmax.f32 %v1348, 0.0
    %v1559 = vmax.f32 %v1353, 0.0
    %v1560 = vmax.f32 %v1358, 0.0
    %v1561 = vmax.f32 %v1363, 0.0
    %v1562 = vmax.f32 %v1368, 0.0
    %v1563 = vmax.f32 %v1373, 0.0
    %v1564 = vmax.f32 %v1378, 0.0
    %v1565 = vmax.f32 %v1383, 0.0
    %v1566 = vmax.f32 %v1388, 0.0
    %v1567 = vmax.f32 %v1393, 0.0
    %v1568 = vmax.f32 %v1398, 0.0
    %v1569 = vmax.f32 %v1403, 0.0
    %v1570 = vmax.f32 %v1408, 0.0
    %v1571 = vmax.f32 %v1413, 0.0
    %v1572 = vmax.f32 %v1418, 0.0
    %v1573 = vmax.f32 %v1423, 0.0
    %v1574 = vmax.f32 %v1428, 0.0
    %v1575 = vmax.f32 %v1433, 0.0
    %v1576 = vmax.f32 %v1438, 0.0
    %v1577 = vmax.f32 %v1443, 0.0
    %v1578 = vmax.f32 %v1448, 0.0
    %v1579 = vmax.f32 %v1453, 0.0
    %v1580 = vmax.f32 %v1458, 0.0
    %v1581 = vmax.f32 %v1463, 0.0
    %v1582 = vmax.f32 %v1468, 0.0
    %v1583 = vmax.f32 %v1473, 0.0
    %v1584 = vmax.f32 %v1478, 0.0
    %v1585 = vmax.f32 %v1483, 0.0
    %v1586 = vmax.f32 %v1488, 0.0
    %v1587 = vmax.f32 %v1493, 0.0
    %v1588 = vmax.f32 %v1498, 0.0
    %v1589 = vmax.f32 %v1503, 0.0
    %v1590 = vmax.f32 %v1508, 0.0
    %v1591 = vmax.f32 %v1513, 0.0
    %v1592 = vmax.f32 %v1518, 0.0
    %v1593 = vmax.f32 %v1523, 0.0
    %v1594 = vmax.f32 %v1528, 0.0
    %v1595 = vmax.f32 %v1533, 0.0
    %v1596 = vmax.f32 %v1538, 0.0
    %v1597 = vmax.f32 %v1543, 0.0
    %v1598 = vmax.f32 %v1548, 0.0
    %v1599 = vlaneseq
    %v1600 = vand.u32 %v1599, 127
    %vm1601 = vcmp.lt.s32.totalorder %v1600, 10
    %v1602 = vsel %vm1601, %v1551, -1e+30
    %v1603 = vsel %vm1601, %v1552, -1e+30
    %v1604 = vsel %vm1601, %v1553, -1e+30
    %v1605 = vsel %vm1601, %v1554, -1e+30
    %v1606 = vsel %vm1601, %v1555, -1e+30
    %v1607 = vsel %vm1601, %v1556, -1e+30
    %v1608 = vsel %vm1601, %v1557, -1e+30
    %v1609 = vsel %vm1601, %v1558, -1e+30
    %v1610 = vsel %vm1601, %v1559, -1e+30
    %v1611 = vsel %vm1601, %v1560, -1e+30
    %v1612 = vsel %vm1601, %v1561, -1e+30
    %v1613 = vsel %vm1601, %v1562, -1e+30
    %v1614 = vsel %vm1601, %v1563, -1e+30
    %v1615 = vsel %vm1601, %v1564, -1e+30
    %v1616 = vsel %vm1601, %v1565, -1e+30
    %v1617 = vsel %vm1601, %v1566, -1e+30
    %v1618 = vsel %vm1601, %v1567, -1e+30
    %v1619 = vsel %vm1601, %v1568, -1e+30
    %v1620 = vsel %vm1601, %v1569, -1e+30
    %v1621 = vsel %vm1601, %v1570, -1e+30
    %v1622 = vsel %vm1601, %v1571, -1e+30
    %v1623 = vsel %vm1601, %v1572, -1e+30
    %v1624 = vsel %vm1601, %v1573, -1e+30
    %v1625 = vsel %vm1601, %v1574, -1e+30
    %v1626 = vsel %vm1601, %v1575, -1e+30
    %v1627 = vsel %vm1601, %v1576, -1e+30
    %v1628 = vsel %vm1601, %v1577, -1e+30
    %v1629 = vsel %vm1601, %v1578, -1e+30
    %v1630 = vsel %vm1601, %v1579, -1e+30
    %v1631 = vsel %vm1601, %v1580, -1e+30
    %v1632 = vsel %vm1601, %v1581, -1e+30
    %v1633 = vsel %vm1601, %v1582, -1e+30
    %v1634 = vsel %vm1601, %v1583, -1e+30
    %v1635 = vsel %vm1601, %v1584, -1e+30
    %v1636 = vsel %vm1601, %v1585, -1e+30
    %v1637 = vsel %vm1601, %v1586, -1e+30
    %v1638 = vsel %vm1601, %v1587, -1e+30
    %v1639 = vsel %vm1601, %v1588, -1e+30
    %v1640 = vsel %vm1601, %v1589, -1e+30
    %v1641 = vsel %vm1601, %v1590, -1e+30
    %v1642 = vsel %vm1601, %v1591, -1e+30
    %v1643 = vsel %vm1601, %v1592, -1e+30
    %v1644 = vsel %vm1601, %v1593, -1e+30
    %v1645 = vsel %vm1601, %v1594, -1e+30
    %v1646 = vsel %vm1601, %v1595, -1e+30
    %v1647 = vsel %vm1601, %v1596, -1e+30
    %v1648 = vsel %vm1601, %v1597, -1e+30
    %v1649 = vsel %vm1601, %v1598, -1e+30
    %1650 = vmax.xlane.f32.xlu0 %v1602
    %v1651 = vpop.xlane.xlu0 %1650
    %1652 = vmax.xlane.f32.xlu0 %v1603
    %v1653 = vpop.xlane.xlu0 %1652
    %1654 = vmax.xlane.f32.xlu0 %v1604
    %v1655 = vpop.xlane.xlu0 %1654
    %1656 = vmax.xlane.f32.xlu0 %v1605
    %v1657 = vpop.xlane.xlu0 %1656
    %1658 = vmax.xlane.f32.xlu0 %v1606
    %v1659 = vpop.xlane.xlu0 %1658
    %1660 = vmax.xlane.f32.xlu0 %v1607
    %v1661 = vpop.xlane.xlu0 %1660
    %1662 = vmax.xlane.f32.xlu0 %v1608
    %v1663 = vpop.xlane.xlu0 %1662
    %1664 = vmax.xlane.f32.xlu0 %v1609
    %v1665 = vpop.xlane.xlu0 %1664
    %1666 = vmax.xlane.f32.xlu0 %v1610
    %v1667 = vpop.xlane.xlu0 %1666
    %1668 = vmax.xlane.f32.xlu0 %v1611
    %v1669 = vpop.xlane.xlu0 %1668
    %1670 = vmax.xlane.f32.xlu0 %v1612
    %v1671 = vpop.xlane.xlu0 %1670
    %1672 = vmax.xlane.f32.xlu0 %v1613
    %v1673 = vpop.xlane.xlu0 %1672
    %1674 = vmax.xlane.f32.xlu0 %v1614
    %v1675 = vpop.xlane.xlu0 %1674
    %1676 = vmax.xlane.f32.xlu0 %v1615
    %v1677 = vpop.xlane.xlu0 %1676
    %1678 = vmax.xlane.f32.xlu0 %v1616
    %v1679 = vpop.xlane.xlu0 %1678
    %1680 = vmax.xlane.f32.xlu0 %v1617
    %v1681 = vpop.xlane.xlu0 %1680
    %1682 = vmax.xlane.f32.xlu0 %v1618
    %v1683 = vpop.xlane.xlu0 %1682
    %1684 = vmax.xlane.f32.xlu0 %v1619
    %v1685 = vpop.xlane.xlu0 %1684
    %1686 = vmax.xlane.f32.xlu0 %v1620
    %v1687 = vpop.xlane.xlu0 %1686
    %1688 = vmax.xlane.f32.xlu0 %v1621
    %v1689 = vpop.xlane.xlu0 %1688
    %1690 = vmax.xlane.f32.xlu0 %v1622
    %v1691 = vpop.xlane.xlu0 %1690
    %1692 = vmax.xlane.f32.xlu0 %v1623
    %v1693 = vpop.xlane.xlu0 %1692
    %1694 = vmax.xlane.f32.xlu0 %v1624
    %v1695 = vpop.xlane.xlu0 %1694
    %1696 = vmax.xlane.f32.xlu0 %v1625
    %v1697 = vpop.xlane.xlu0 %1696
    %1698 = vmax.xlane.f32.xlu0 %v1626
    %v1699 = vpop.xlane.xlu0 %1698
    %1700 = vmax.xlane.f32.xlu0 %v1627
    %v1701 = vpop.xlane.xlu0 %1700
    %1702 = vmax.xlane.f32.xlu0 %v1628
    %v1703 = vpop.xlane.xlu0 %1702
    %1704 = vmax.xlane.f32.xlu0 %v1629
    %v1705 = vpop.xlane.xlu0 %1704
    %1706 = vmax.xlane.f32.xlu0 %v1630
    %v1707 = vpop.xlane.xlu0 %1706
    %1708 = vmax.xlane.f32.xlu0 %v1631
    %v1709 = vpop.xlane.xlu0 %1708
    %1710 = vmax.xlane.f32.xlu0 %v1632
    %v1711 = vpop.xlane.xlu0 %1710
    %1712 = vmax.xlane.f32.xlu0 %v1633
    %v1713 = vpop.xlane.xlu0 %1712
    %1714 = vmax.xlane.f32.xlu0 %v1634
    %v1715 = vpop.xlane.xlu0 %1714
    %1716 = vmax.xlane.f32.xlu0 %v1635
    %v1717 = vpop.xlane.xlu0 %1716
    %1718 = vmax.xlane.f32.xlu0 %v1636
    %v1719 = vpop.xlane.xlu0 %1718
    %1720 = vmax.xlane.f32.xlu0 %v1637
    %v1721 = vpop.xlane.xlu0 %1720
    %1722 = vmax.xlane.f32.xlu0 %v1638
    %v1723 = vpop.xlane.xlu0 %1722
    %1724 = vmax.xlane.f32.xlu0 %v1639
    %v1725 = vpop.xlane.xlu0 %1724
    %1726 = vmax.xlane.f32.xlu0 %v1640
    %v1727 = vpop.xlane.xlu0 %1726
    %1728 = vmax.xlane.f32.xlu0 %v1641
    %v1729 = vpop.xlane.xlu0 %1728
    %1730 = vmax.xlane.f32.xlu0 %v1642
    %v1731 = vpop.xlane.xlu0 %1730
    %1732 = vmax.xlane.f32.xlu0 %v1643
    %v1733 = vpop.xlane.xlu0 %1732
    %1734 = vmax.xlane.f32.xlu0 %v1644
    %v1735 = vpop.xlane.xlu0 %1734
    %1736 = vmax.xlane.f32.xlu0 %v1645
    %v1737 = vpop.xlane.xlu0 %1736
    %1738 = vmax.xlane.f32.xlu0 %v1646
    %v1739 = vpop.xlane.xlu0 %1738
    %1740 = vmax.xlane.f32.xlu0 %v1647
    %v1741 = vpop.xlane.xlu0 %1740
    %1742 = vmax.xlane.f32.xlu0 %v1648
    %v1743 = vpop.xlane.xlu0 %1742
    %1744 = vmax.xlane.f32.xlu0 %v1649
    %v1745 = vpop.xlane.xlu0 %1744
    %v1746 = vsub.f32 %v1602, %v1651
    %v1747 = vsub.f32 %v1603, %v1653
    %v1748 = vsub.f32 %v1604, %v1655
    %v1749 = vsub.f32 %v1605, %v1657
    %v1750 = vsub.f32 %v1606, %v1659
    %v1751 = vsub.f32 %v1607, %v1661
    %v1752 = vsub.f32 %v1608, %v1663
    %v1753 = vsub.f32 %v1609, %v1665
    %v1754 = vsub.f32 %v1610, %v1667
    %v1755 = vsub.f32 %v1611, %v1669
    %v1756 = vsub.f32 %v1612, %v1671
    %v1757 = vsub.f32 %v1613, %v1673
    %v1758 = vsub.f32 %v1614, %v1675
    %v1759 = vsub.f32 %v1615, %v1677
    %v1760 = vsub.f32 %v1616, %v1679
    %v1761 = vsub.f32 %v1617, %v1681
    %v1762 = vsub.f32 %v1618, %v1683
    %v1763 = vsub.f32 %v1619, %v1685
    %v1764 = vsub.f32 %v1620, %v1687
    %v1765 = vsub.f32 %v1621, %v1689
    %v1766 = vsub.f32 %v1622, %v1691
    %v1767 = vsub.f32 %v1623, %v1693
    %v1768 = vsub.f32 %v1624, %v1695
    %v1769 = vsub.f32 %v1625, %v1697
    %v1770 = vsub.f32 %v1626, %v1699
    %v1771 = vsub.f32 %v1627, %v1701
    %v1772 = vsub.f32 %v1628, %v1703
    %v1773 = vsub.f32 %v1629, %v1705
    %v1774 = vsub.f32 %v1630, %v1707
    %v1775 = vsub.f32 %v1631, %v1709
    %v1776 = vsub.f32 %v1632, %v1711
    %v1777 = vsub.f32 %v1633, %v1713
    %v1778 = vsub.f32 %v1634, %v1715
    %v1779 = vsub.f32 %v1635, %v1717
    %v1780 = vsub.f32 %v1636, %v1719
    %v1781 = vsub.f32 %v1637, %v1721
    %v1782 = vsub.f32 %v1638, %v1723
    %v1783 = vsub.f32 %v1639, %v1725
    %v1784 = vsub.f32 %v1640, %v1727
    %v1785 = vsub.f32 %v1641, %v1729
    %v1786 = vsub.f32 %v1642, %v1731
    %v1787 = vsub.f32 %v1643, %v1733
    %v1788 = vsub.f32 %v1644, %v1735
    %v1789 = vsub.f32 %v1645, %v1737
    %v1790 = vsub.f32 %v1646, %v1739
    %v1791 = vsub.f32 %v1647, %v1741
    %v1792 = vsub.f32 %v1648, %v1743
    %v1793 = vsub.f32 %v1649, %v1745
    %v1794 = vmul.f32 %v1746, 1.442695
    %v1795 = vpow.pop %v1794
    %v1796 = vmul.f32 %v1747, 1.442695
    %v1797 = vpow.pop %v1796
    %v1798 = vmul.f32 %v1748, 1.442695
    %v1799 = vpow.pop %v1798
    %v1800 = vmul.f32 %v1749, 1.442695
    %v1801 = vpow.pop %v1800
    %v1802 = vmul.f32 %v1750, 1.442695
    %v1803 = vpow.pop %v1802
    %v1804 = vmul.f32 %v1751, 1.442695
    %v1805 = vpow.pop %v1804
    %v1806 = vmul.f32 %v1752, 1.442695
    %v1807 = vpow.pop %v1806
    %v1808 = vmul.f32 %v1753, 1.442695
    %v1809 = vpow.pop %v1808
    %v1810 = vmul.f32 %v1754, 1.442695
    %v1811 = vpow.pop %v1810
    %v1812 = vmul.f32 %v1755, 1.442695
    %v1813 = vpow.pop %v1812
    %v1814 = vmul.f32 %v1756, 1.442695
    %v1815 = vpow.pop %v1814
    %v1816 = vmul.f32 %v1757, 1.442695
    %v1817 = vpow.pop %v1816
    %v1818 = vmul.f32 %v1758, 1.442695
    %v1819 = vpow.pop %v1818
    %v1820 = vmul.f32 %v1759, 1.442695
    %v1821 = vpow.pop %v1820
    %v1822 = vmul.f32 %v1760, 1.442695
    %v1823 = vpow.pop %v1822
    %v1824 = vmul.f32 %v1761, 1.442695
    %v1825 = vpow.pop %v1824
    %v1826 = vmul.f32 %v1762, 1.442695
    %v1827 = vpow.pop %v1826
    %v1828 = vmul.f32 %v1763, 1.442695
    %v1829 = vpow.pop %v1828
    %v1830 = vmul.f32 %v1764, 1.442695
    %v1831 = vpow.pop %v1830
    %v1832 = vmul.f32 %v1765, 1.442695
    %v1833 = vpow.pop %v1832
    %v1834 = vmul.f32 %v1766, 1.442695
    %v1835 = vpow.pop %v1834
    %v1836 = vmul.f32 %v1767, 1.442695
    %v1837 = vpow.pop %v1836
    %v1838 = vmul.f32 %v1768, 1.442695
    %v1839 = vpow.pop %v1838
    %v1840 = vmul.f32 %v1769, 1.442695
    %v1841 = vpow.pop %v1840
    %v1842 = vmul.f32 %v1770, 1.442695
    %v1843 = vpow.pop %v1842
    %v1844 = vmul.f32 %v1771, 1.442695
    %v1845 = vpow.pop %v1844
    %v1846 = vmul.f32 %v1772, 1.442695
    %v1847 = vpow.pop %v1846
    %v1848 = vmul.f32 %v1773, 1.442695
    %v1849 = vpow.pop %v1848
    %v1850 = vmul.f32 %v1774, 1.442695
    %v1851 = vpow.pop %v1850
    %v1852 = vmul.f32 %v1775, 1.442695
    %v1853 = vpow.pop %v1852
    %v1854 = vmul.f32 %v1776, 1.442695
    %v1855 = vpow.pop %v1854
    %v1856 = vmul.f32 %v1777, 1.442695
    %v1857 = vpow.pop %v1856
    %v1858 = vmul.f32 %v1778, 1.442695
    %v1859 = vpow.pop %v1858
    %v1860 = vmul.f32 %v1779, 1.442695
    %v1861 = vpow.pop %v1860
    %v1862 = vmul.f32 %v1780, 1.442695
    %v1863 = vpow.pop %v1862
    %v1864 = vmul.f32 %v1781, 1.442695
    %v1865 = vpow.pop %v1864
    %v1866 = vmul.f32 %v1782, 1.442695
    %v1867 = vpow.pop %v1866
    %v1868 = vmul.f32 %v1783, 1.442695
    %v1869 = vpow.pop %v1868
    %v1870 = vmul.f32 %v1784, 1.442695
    %v1871 = vpow.pop %v1870
    %v1872 = vmul.f32 %v1785, 1.442695
    %v1873 = vpow.pop %v1872
    %v1874 = vmul.f32 %v1786, 1.442695
    %v1875 = vpow.pop %v1874
    %v1876 = vmul.f32 %v1787, 1.442695
    %v1877 = vpow.pop %v1876
    %v1878 = vmul.f32 %v1788, 1.442695
    %v1879 = vpow.pop %v1878
    %v1880 = vmul.f32 %v1789, 1.442695
    %v1881 = vpow.pop %v1880
    %v1882 = vmul.f32 %v1790, 1.442695
    %v1883 = vpow.pop %v1882
    %v1884 = vmul.f32 %v1791, 1.442695
    %v1885 = vpow.pop %v1884
    %v1886 = vmul.f32 %v1792, 1.442695
    %v1887 = vpow.pop %v1886
    %v1888 = vmul.f32 %v1793, 1.442695
    %v1889 = vpow.pop %v1888
    %1890 = vadd.xlane.f32.xlu0 %v1795
    %v1891 = vpop.xlane.xlu0 %1890
    %1892 = vadd.xlane.f32.xlu0 %v1797
    %v1893 = vpop.xlane.xlu0 %1892
    %1894 = vadd.xlane.f32.xlu0 %v1799
    %v1895 = vpop.xlane.xlu0 %1894
    %1896 = vadd.xlane.f32.xlu0 %v1801
    %v1897 = vpop.xlane.xlu0 %1896
    %1898 = vadd.xlane.f32.xlu0 %v1803
    %v1899 = vpop.xlane.xlu0 %1898
    %1900 = vadd.xlane.f32.xlu0 %v1805
    %v1901 = vpop.xlane.xlu0 %1900
    %1902 = vadd.xlane.f32.xlu0 %v1807
    %v1903 = vpop.xlane.xlu0 %1902
    %1904 = vadd.xlane.f32.xlu0 %v1809
    %v1905 = vpop.xlane.xlu0 %1904
    %1906 = vadd.xlane.f32.xlu0 %v1811
    %v1907 = vpop.xlane.xlu0 %1906
    %1908 = vadd.xlane.f32.xlu0 %v1813
    %v1909 = vpop.xlane.xlu0 %1908
    %1910 = vadd.xlane.f32.xlu0 %v1815
    %v1911 = vpop.xlane.xlu0 %1910
    %1912 = vadd.xlane.f32.xlu0 %v1817
    %v1913 = vpop.xlane.xlu0 %1912
    %1914 = vadd.xlane.f32.xlu0 %v1819
    %v1915 = vpop.xlane.xlu0 %1914
    %1916 = vadd.xlane.f32.xlu0 %v1821
    %v1917 = vpop.xlane.xlu0 %1916
    %1918 = vadd.xlane.f32.xlu0 %v1823
    %v1919 = vpop.xlane.xlu0 %1918
    %1920 = vadd.xlane.f32.xlu0 %v1825
    %v1921 = vpop.xlane.xlu0 %1920
    %1922 = vadd.xlane.f32.xlu0 %v1827
    %v1923 = vpop.xlane.xlu0 %1922
    %1924 = vadd.xlane.f32.xlu0 %v1829
    %v1925 = vpop.xlane.xlu0 %1924
    %1926 = vadd.xlane.f32.xlu0 %v1831
    %v1927 = vpop.xlane.xlu0 %1926
    %1928 = vadd.xlane.f32.xlu0 %v1833
    %v1929 = vpop.xlane.xlu0 %1928
    %1930 = vadd.xlane.f32.xlu0 %v1835
    %v1931 = vpop.xlane.xlu0 %1930
    %1932 = vadd.xlane.f32.xlu0 %v1837
    %v1933 = vpop.xlane.xlu0 %1932
    %1934 = vadd.xlane.f32.xlu0 %v1839
    %v1935 = vpop.xlane.xlu0 %1934
    %1936 = vadd.xlane.f32.xlu0 %v1841
    %v1937 = vpop.xlane.xlu0 %1936
    %1938 = vadd.xlane.f32.xlu0 %v1843
    %v1939 = vpop.xlane.xlu0 %1938
    %1940 = vadd.xlane.f32.xlu0 %v1845
    %v1941 = vpop.xlane.xlu0 %1940
    %1942 = vadd.xlane.f32.xlu0 %v1847
    %v1943 = vpop.xlane.xlu0 %1942
    %1944 = vadd.xlane.f32.xlu0 %v1849
    %v1945 = vpop.xlane.xlu0 %1944
    %1946 = vadd.xlane.f32.xlu0 %v1851
    %v1947 = vpop.xlane.xlu0 %1946
    %1948 = vadd.xlane.f32.xlu0 %v1853
    %v1949 = vpop.xlane.xlu0 %1948
    %1950 = vadd.xlane.f32.xlu0 %v1855
    %v1951 = vpop.xlane.xlu0 %1950
    %1952 = vadd.xlane.f32.xlu0 %v1857
    %v1953 = vpop.xlane.xlu0 %1952
    %1954 = vadd.xlane.f32.xlu0 %v1859
    %v1955 = vpop.xlane.xlu0 %1954
    %1956 = vadd.xlane.f32.xlu0 %v1861
    %v1957 = vpop.xlane.xlu0 %1956
    %1958 = vadd.xlane.f32.xlu0 %v1863
    %v1959 = vpop.xlane.xlu0 %1958
    %1960 = vadd.xlane.f32.xlu0 %v1865
    %v1961 = vpop.xlane.xlu0 %1960
    %1962 = vadd.xlane.f32.xlu0 %v1867
    %v1963 = vpop.xlane.xlu0 %1962
    %1964 = vadd.xlane.f32.xlu0 %v1869
    %v1965 = vpop.xlane.xlu0 %1964
    %1966 = vadd.xlane.f32.xlu0 %v1871
    %v1967 = vpop.xlane.xlu0 %1966
    %1968 = vadd.xlane.f32.xlu0 %v1873
    %v1969 = vpop.xlane.xlu0 %1968
    %1970 = vadd.xlane.f32.xlu0 %v1875
    %v1971 = vpop.xlane.xlu0 %1970
    %1972 = vadd.xlane.f32.xlu0 %v1877
    %v1973 = vpop.xlane.xlu0 %1972
    %1974 = vadd.xlane.f32.xlu0 %v1879
    %v1975 = vpop.xlane.xlu0 %1974
    %1976 = vadd.xlane.f32.xlu0 %v1881
    %v1977 = vpop.xlane.xlu0 %1976
    %1978 = vadd.xlane.f32.xlu0 %v1883
    %v1979 = vpop.xlane.xlu0 %1978
    %1980 = vadd.xlane.f32.xlu0 %v1885
    %v1981 = vpop.xlane.xlu0 %1980
    %1982 = vadd.xlane.f32.xlu0 %v1887
    %v1983 = vpop.xlane.xlu0 %1982
    %1984 = vadd.xlane.f32.xlu0 %v1889
    %v1985 = vpop.xlane.xlu0 %1984
    %v1986 = vrcp.pop %v1891
    %v1987 = vrcp.pop %v1893
    %v1988 = vrcp.pop %v1895
    %v1989 = vrcp.pop %v1897
    %v1990 = vrcp.pop %v1899
    %v1991 = vrcp.pop %v1901
    %v1992 = vrcp.pop %v1903
    %v1993 = vrcp.pop %v1905
    %v1994 = vrcp.pop %v1907
    %v1995 = vrcp.pop %v1909
    %v1996 = vrcp.pop %v1911
    %v1997 = vrcp.pop %v1913
    %v1998 = vrcp.pop %v1915
    %v1999 = vrcp.pop %v1917
    %v2000 = vrcp.pop %v1919
    %v2001 = vrcp.pop %v1921
    %v2002 = vrcp.pop %v1923
    %v2003 = vrcp.pop %v1925
    %v2004 = vrcp.pop %v1927
    %v2005 = vrcp.pop %v1929
    %v2006 = vrcp.pop %v1931
    %v2007 = vrcp.pop %v1933
    %v2008 = vrcp.pop %v1935
    %v2009 = vrcp.pop %v1937
    %v2010 = vrcp.pop %v1939
    %v2011 = vrcp.pop %v1941
    %v2012 = vrcp.pop %v1943
    %v2013 = vrcp.pop %v1945
    %v2014 = vrcp.pop %v1947
    %v2015 = vrcp.pop %v1949
    %v2016 = vrcp.pop %v1951
    %v2017 = vrcp.pop %v1953
    %v2018 = vrcp.pop %v1955
    %v2019 = vrcp.pop %v1957
    %v2020 = vrcp.pop %v1959
    %v2021 = vrcp.pop %v1961
    %v2022 = vrcp.pop %v1963
    %v2023 = vrcp.pop %v1965
    %v2024 = vrcp.pop %v1967
    %v2025 = vrcp.pop %v1969
    %v2026 = vrcp.pop %v1971
    %v2027 = vrcp.pop %v1973
    %v2028 = vrcp.pop %v1975
    %v2029 = vrcp.pop %v1977
    %v2030 = vrcp.pop %v1979
    %v2031 = vrcp.pop %v1981
    %v2032 = vrcp.pop %v1983
    %v2033 = vrcp.pop %v1985
    %v2034 = vmul.f32 %v1891, %v1986
    %v2035 = vmul.f32 %v1893, %v1987
    %v2036 = vmul.f32 %v1895, %v1988
    %v2037 = vmul.f32 %v1897, %v1989
    %v2038 = vmul.f32 %v1899, %v1990
    %v2039 = vmul.f32 %v1901, %v1991
    %v2040 = vmul.f32 %v1903, %v1992
    %v2041 = vmul.f32 %v1905, %v1993
    %v2042 = vmul.f32 %v1907, %v1994
    %v2043 = vmul.f32 %v1909, %v1995
    %v2044 = vmul.f32 %v1911, %v1996
    %v2045 = vmul.f32 %v1913, %v1997
    %v2046 = vmul.f32 %v1915, %v1998
    %v2047 = vmul.f32 %v1917, %v1999
    %v2048 = vmul.f32 %v1919, %v2000
    %v2049 = vmul.f32 %v1921, %v2001
    %v2050 = vmul.f32 %v1923, %v2002
    %v2051 = vmul.f32 %v1925, %v2003
    %v2052 = vmul.f32 %v1927, %v2004
    %v2053 = vmul.f32 %v1929, %v2005
    %v2054 = vmul.f32 %v1931, %v2006
    %v2055 = vmul.f32 %v1933, %v2007
    %v2056 = vmul.f32 %v1935, %v2008
    %v2057 = vmul.f32 %v1937, %v2009
    %v2058 = vmul.f32 %v1939, %v2010
    %v2059 = vmul.f32 %v1941, %v2011
    %v2060 = vmul.f32 %v1943, %v2012
    %v2061 = vmul.f32 %v1945, %v2013
    %v2062 = vmul.f32 %v1947, %v2014
    %v2063 = vmul.f32 %v1949, %v2015
    %v2064 = vmul.f32 %v1951, %v2016
    %v2065 = vmul.f32 %v1953, %v2017
    %v2066 = vmul.f32 %v1955, %v2018
    %v2067 = vmul.f32 %v1957, %v2019
    %v2068 = vmul.f32 %v1959, %v2020
    %v2069 = vmul.f32 %v1961, %v2021
    %v2070 = vmul.f32 %v1963, %v2022
    %v2071 = vmul.f32 %v1965, %v2023
    %v2072 = vmul.f32 %v1967, %v2024
    %v2073 = vmul.f32 %v1969, %v2025
    %v2074 = vmul.f32 %v1971, %v2026
    %v2075 = vmul.f32 %v1973, %v2027
    %v2076 = vmul.f32 %v1975, %v2028
    %v2077 = vmul.f32 %v1977, %v2029
    %v2078 = vmul.f32 %v1979, %v2030
    %v2079 = vmul.f32 %v1981, %v2031
    %v2080 = vmul.f32 %v1983, %v2032
    %v2081 = vmul.f32 %v1985, %v2033
    %v2082 = vsub.f32 2.0, %v2034
    %v2083 = vsub.f32 2.0, %v2035
    %v2084 = vsub.f32 2.0, %v2036
    %v2085 = vsub.f32 2.0, %v2037
    %v2086 = vsub.f32 2.0, %v2038
    %v2087 = vsub.f32 2.0, %v2039
    %v2088 = vsub.f32 2.0, %v2040
    %v2089 = vsub.f32 2.0, %v2041
    %v2090 = vsub.f32 2.0, %v2042
    %v2091 = vsub.f32 2.0, %v2043
    %v2092 = vsub.f32 2.0, %v2044
    %v2093 = vsub.f32 2.0, %v2045
    %v2094 = vsub.f32 2.0, %v2046
    %v2095 = vsub.f32 2.0, %v2047
    %v2096 = vsub.f32 2.0, %v2048
    %v2097 = vsub.f32 2.0, %v2049
    %v2098 = vsub.f32 2.0, %v2050
    %v2099 = vsub.f32 2.0, %v2051
    %v2100 = vsub.f32 2.0, %v2052
    %v2101 = vsub.f32 2.0, %v2053
    %v2102 = vsub.f32 2.0, %v2054
    %v2103 = vsub.f32 2.0, %v2055
    %v2104 = vsub.f32 2.0, %v2056
    %v2105 = vsub.f32 2.0, %v2057
    %v2106 = vsub.f32 2.0, %v2058
    %v2107 = vsub.f32 2.0, %v2059
    %v2108 = vsub.f32 2.0, %v2060
    %v2109 = vsub.f32 2.0, %v2061
    %v2110 = vsub.f32 2.0, %v2062
    %v2111 = vsub.f32 2.0, %v2063
    %v2112 = vsub.f32 2.0, %v2064
    %v2113 = vsub.f32 2.0, %v2065
    %v2114 = vsub.f32 2.0, %v2066
    %v2115 = vsub.f32 2.0, %v2067
    %v2116 = vsub.f32 2.0, %v2068
    %v2117 = vsub.f32 2.0, %v2069
    %v2118 = vsub.f32 2.0, %v2070
    %v2119 = vsub.f32 2.0, %v2071
    %v2120 = vsub.f32 2.0, %v2072
    %v2121 = vsub.f32 2.0, %v2073
    %v2122 = vsub.f32 2.0, %v2074
    %v2123 = vsub.f32 2.0, %v2075
    %v2124 = vsub.f32 2.0, %v2076
    %v2125 = vsub.f32 2.0, %v2077
    %v2126 = vsub.f32 2.0, %v2078
    %v2127 = vsub.f32 2.0, %v2079
    %v2128 = vsub.f32 2.0, %v2080
    %v2129 = vsub.f32 2.0, %v2081
    %v2130 = vmul.f32 %v1986, %v2082
    %v2131 = vmul.f32 %v1987, %v2083
    %v2132 = vmul.f32 %v1988, %v2084
    %v2133 = vmul.f32 %v1989, %v2085
    %v2134 = vmul.f32 %v1990, %v2086
    %v2135 = vmul.f32 %v1991, %v2087
    %v2136 = vmul.f32 %v1992, %v2088
    %v2137 = vmul.f32 %v1993, %v2089
    %v2138 = vmul.f32 %v1994, %v2090
    %v2139 = vmul.f32 %v1995, %v2091
    %v2140 = vmul.f32 %v1996, %v2092
    %v2141 = vmul.f32 %v1997, %v2093
    %v2142 = vmul.f32 %v1998, %v2094
    %v2143 = vmul.f32 %v1999, %v2095
    %v2144 = vmul.f32 %v2000, %v2096
    %v2145 = vmul.f32 %v2001, %v2097
    %v2146 = vmul.f32 %v2002, %v2098
    %v2147 = vmul.f32 %v2003, %v2099
    %v2148 = vmul.f32 %v2004, %v2100
    %v2149 = vmul.f32 %v2005, %v2101
    %v2150 = vmul.f32 %v2006, %v2102
    %v2151 = vmul.f32 %v2007, %v2103
    %v2152 = vmul.f32 %v2008, %v2104
    %v2153 = vmul.f32 %v2009, %v2105
    %v2154 = vmul.f32 %v2010, %v2106
    %v2155 = vmul.f32 %v2011, %v2107
    %v2156 = vmul.f32 %v2012, %v2108
    %v2157 = vmul.f32 %v2013, %v2109
    %v2158 = vmul.f32 %v2014, %v2110
    %v2159 = vmul.f32 %v2015, %v2111
    %v2160 = vmul.f32 %v2016, %v2112
    %v2161 = vmul.f32 %v2017, %v2113
    %v2162 = vmul.f32 %v2018, %v2114
    %v2163 = vmul.f32 %v2019, %v2115
    %v2164 = vmul.f32 %v2020, %v2116
    %v2165 = vmul.f32 %v2021, %v2117
    %v2166 = vmul.f32 %v2022, %v2118
    %v2167 = vmul.f32 %v2023, %v2119
    %v2168 = vmul.f32 %v2024, %v2120
    %v2169 = vmul.f32 %v2025, %v2121
    %v2170 = vmul.f32 %v2026, %v2122
    %v2171 = vmul.f32 %v2027, %v2123
    %v2172 = vmul.f32 %v2028, %v2124
    %v2173 = vmul.f32 %v2029, %v2125
    %v2174 = vmul.f32 %v2030, %v2126
    %v2175 = vmul.f32 %v2031, %v2127
    %v2176 = vmul.f32 %v2032, %v2128
    %v2177 = vmul.f32 %v2033, %v2129
    %v2178 = vmul.f32 %v1795, %v2130
    %v2179 = vmul.f32 %v1797, %v2131
    %v2180 = vmul.f32 %v1799, %v2132
    %v2181 = vmul.f32 %v1801, %v2133
    %v2182 = vmul.f32 %v1803, %v2134
    %v2183 = vmul.f32 %v1805, %v2135
    %v2184 = vmul.f32 %v1807, %v2136
    %v2185 = vmul.f32 %v1809, %v2137
    %v2186 = vmul.f32 %v1811, %v2138
    %v2187 = vmul.f32 %v1813, %v2139
    %v2188 = vmul.f32 %v1815, %v2140
    %v2189 = vmul.f32 %v1817, %v2141
    %v2190 = vmul.f32 %v1819, %v2142
    %v2191 = vmul.f32 %v1821, %v2143
    %v2192 = vmul.f32 %v1823, %v2144
    %v2193 = vmul.f32 %v1825, %v2145
    %v2194 = vmul.f32 %v1827, %v2146
    %v2195 = vmul.f32 %v1829, %v2147
    %v2196 = vmul.f32 %v1831, %v2148
    %v2197 = vmul.f32 %v1833, %v2149
    %v2198 = vmul.f32 %v1835, %v2150
    %v2199 = vmul.f32 %v1837, %v2151
    %v2200 = vmul.f32 %v1839, %v2152
    %v2201 = vmul.f32 %v1841, %v2153
    %v2202 = vmul.f32 %v1843, %v2154
    %v2203 = vmul.f32 %v1845, %v2155
    %v2204 = vmul.f32 %v1847, %v2156
    %v2205 = vmul.f32 %v1849, %v2157
    %v2206 = vmul.f32 %v1851, %v2158
    %v2207 = vmul.f32 %v1853, %v2159
    %v2208 = vmul.f32 %v1855, %v2160
    %v2209 = vmul.f32 %v1857, %v2161
    %v2210 = vmul.f32 %v1859, %v2162
    %v2211 = vmul.f32 %v1861, %v2163
    %v2212 = vmul.f32 %v1863, %v2164
    %v2213 = vmul.f32 %v1865, %v2165
    %v2214 = vmul.f32 %v1867, %v2166
    %v2215 = vmul.f32 %v1869, %v2167
    %v2216 = vmul.f32 %v1871, %v2168
    %v2217 = vmul.f32 %v1873, %v2169
    %v2218 = vmul.f32 %v1875, %v2170
    %v2219 = vmul.f32 %v1877, %v2171
    %v2220 = vmul.f32 %v1879, %v2172
    %v2221 = vmul.f32 %v1881, %v2173
    %v2222 = vmul.f32 %v1883, %v2174
    %v2223 = vmul.f32 %v1885, %v2175
    %v2224 = vmul.f32 %v1887, %v2176
    %v2225 = vmul.f32 %v1889, %v2177
    %2226 = vst [vmem:[#allocation2] sm:$0xff] %v2178
    %2227 = vst [vmem:[#allocation2 + $0x8] sm:$0xff] %v2179
    %2228 = vst [vmem:[#allocation2 + $0x10] sm:$0xff] %v2180
    %2229 = vst [vmem:[#allocation2 + $0x18] sm:$0xff] %v2181
    %2230 = vst [vmem:[#allocation2 + $0x20] sm:$0xff] %v2182
    %2231 = vst [vmem:[#allocation2 + $0x28] sm:$0xff] %v2183
    %2232 = vst [vmem:[#allocation2 + $0x30] sm:$0xff] %v2184
    %2233 = vst [vmem:[#allocation2 + $0x38] sm:$0xff] %v2185
    %2234 = vst [vmem:[#allocation2 + $0x40] sm:$0xff] %v2186
    %2235 = vst [vmem:[#allocation2 + $0x48] sm:$0xff] %v2187
    %2236 = vst [vmem:[#allocation2 + $0x50] sm:$0xff] %v2188
    %2237 = vst [vmem:[#allocation2 + $0x58] sm:$0xff] %v2189
    %2238 = vst [vmem:[#allocation2 + $0x60] sm:$0xff] %v2190
    %2239 = vst [vmem:[#allocation2 + $0x68] sm:$0xff] %v2191
    %2240 = vst [vmem:[#allocation2 + $0x70] sm:$0xff] %v2192
    %2241 = vst [vmem:[#allocation2 + $0x78] sm:$0xff] %v2193
    %2242 = vst [vmem:[#allocation2 + $0x80] sm:$0xff] %v2194
    %2243 = vst [vmem:[#allocation2 + $0x88] sm:$0xff] %v2195
    %2244 = vst [vmem:[#allocation2 + $0x90] sm:$0xff] %v2196
    %2245 = vst [vmem:[#allocation2 + $0x98] sm:$0xff] %v2197
    %2246 = vst [vmem:[#allocation2 + $0xa0] sm:$0xff] %v2198
    %2247 = vst [vmem:[#allocation2 + $0xa8] sm:$0xff] %v2199
    %2248 = vst [vmem:[#allocation2 + $0xb0] sm:$0xff] %v2200
    %2249 = vst [vmem:[#allocation2 + $0xb8] sm:$0xff] %v2201
    %2250 = vst [vmem:[#allocation2 + $0xc0] sm:$0xff] %v2202
    %2251 = vst [vmem:[#allocation2 + $0xc8] sm:$0xff] %v2203
    %2252 = vst [vmem:[#allocation2 + $0xd0] sm:$0xff] %v2204
    %2253 = vst [vmem:[#allocation2 + $0xd8] sm:$0xff] %v2205
    %2254 = vst [vmem:[#allocation2 + $0xe0] sm:$0xff] %v2206
    %2255 = vst [vmem:[#allocation2 + $0xe8] sm:$0xff] %v2207
    %2256 = vst [vmem:[#allocation2 + $0xf0] sm:$0xff] %v2208
    %2257 = vst [vmem:[#allocation2 + $0xf8] sm:$0xff] %v2209
    %2258 = vst [vmem:[#allocation2 + $0x100] sm:$0xff] %v2210
    %2259 = vst [vmem:[#allocation2 + $0x108] sm:$0xff] %v2211
    %2260 = vst [vmem:[#allocation2 + $0x110] sm:$0xff] %v2212
    %2261 = vst [vmem:[#allocation2 + $0x118] sm:$0xff] %v2213
    %2262 = vst [vmem:[#allocation2 + $0x120] sm:$0xff] %v2214
    %2263 = vst [vmem:[#allocation2 + $0x128] sm:$0xff] %v2215
    %2264 = vst [vmem:[#allocation2 + $0x130] sm:$0xff] %v2216
    %2265 = vst [vmem:[#allocation2 + $0x138] sm:$0xff] %v2217
    %2266 = vst [vmem:[#allocation2 + $0x140] sm:$0xff] %v2218
    %2267 = vst [vmem:[#allocation2 + $0x148] sm:$0xff] %v2219
    %2268 = vst [vmem:[#allocation2 + $0x150] sm:$0xff] %v2220
    %2269 = vst [vmem:[#allocation2 + $0x158] sm:$0xff] %v2221
    %2270 = vst [vmem:[#allocation2 + $0x160] sm:$0xff] %v2222
    %2271 = vst [vmem:[#allocation2 + $0x168] sm:$0xff] %v2223
    %2272 = vst [vmem:[#allocation2 + $0x170] sm:$0xff] %v2224
    %2273 = vst [vmem:[#allocation2 + $0x178] sm:$0xff] %v2225
    // Predicated region
    $region30: #{tpu_custom_call.1} parent=1 // pred_check
      _
    $region31: #{tpu_custom_call.1} parent=1 // pred_check_branch
      %2275 = sbr.rel (0) target = $region33
    $region32: #{tpu_custom_call.1} parent=1 // pred_region
      %s2277 = ssub.s32 6144, 4864
      %2278 = vsyncadd [#allocation3], %s2277
      %s2279 = sshll.u32 [#allocation2], 4
      %s2280 = int_to_ptr.vmem [resolvable:$true] %s2279
      %2285 = dma.vmem_to_hbm [thread:$0]  %s2280, 4864, %s7, [#allocation3], 128, 128, 8
    $region33: #{tpu_custom_call.1} parent=1 // pred_fallthru
      _
    // Predicated region
    $region34: #{tpu_custom_call.1} parent=1 // pred_check
      _
    $region35: #{tpu_custom_call.1} parent=1 // pred_check_branch
      %2287 = sbr.rel (0) target = $region37
    $region36: #{tpu_custom_call.1} parent=1 // pred_region
      %2288 = dma.done [#allocation3], 6144
    $region37: #{tpu_custom_call.1} parent=1 // pred_fallthru
      _
    %2289 = vsyncpa [#allocation3], 1

</llo_original>
